<compile_context>
chip_gen: v7x
topology: tpu7x:2x2x1
jax: 0.10.0
libtpu: 0.0.40
codegen_flags: <defaults>
</compile_context>

<pallas_src>
import jax
import jax.numpy as jnp
from jax.experimental import pallas as pl
from jax.experimental.pallas import tpu as pltpu


# ----------------------------- fused Pallas kernel ------------------------- #
def _make_fused_kernel(n_inner):
    """Whole-network kernel. refs = [patches0, w0, b0, (w,b,g)*n_inner, wh, bh, out]."""

    def kernel(*refs):
        o_ref = refs[-1]
        p0_ref, w0_ref, b0_ref = refs[0], refs[1], refs[2]
        inner_refs = refs[3:3 + 3 * n_inner]
        wh_ref = refs[3 + 3 * n_inner]
        bh_ref = refs[4 + 3 * n_inner]

        # ---- layer 0: conv 3x3/s2 (pre-im2col'd patches) + bias + LeakyReLU ----
        y = jnp.dot(p0_ref[0], w0_ref[...],
                    preferred_element_type=jnp.float32) + b0_ref[...]
        y = jnp.maximum(y, 0.2 * y)                       # LeakyReLU(0.2), f32

        # ---- inner layers: conv 3x3/s2 via gather-matmuls + IN + LeakyReLU ----
        for l in range(n_inner):
            w_ref, b_ref, g_ref = inner_refs[3 * l:3 * l + 3]
            p_out = g_ref.shape[1]                        # Ho*Wo of this layer
            c_out = w_ref.shape[2]
            act = y.astype(jnp.bfloat16)                  # (P_in, C_in) bf16
            y = jnp.zeros((p_out, c_out), jnp.float32) + b_ref[...]
            for t in range(9):                            # 3x3 taps, t = kh*3+kw
                # Exact row gather of the shifted/strided window (0/1 matrix).
                tap = jnp.dot(g_ref[t], act,
                              preferred_element_type=jnp.float32)      # (P_out, C_in)
                y = y + jnp.dot(tap.astype(jnp.bfloat16), w_ref[t],
                                preferred_element_type=jnp.float32)    # (P_out, C_out)
            # InstanceNorm2d (affine=False, eps=1e-5): per-channel over spatial,
            # biased variance -- matches PyTorch.
            mean = jnp.mean(y, axis=0, keepdims=True)
            var = jnp.mean(jnp.square(y - mean), axis=0, keepdims=True)
            y = (y - mean) * jax.lax.rsqrt(var + 1e-5)
            y = jnp.maximum(y, 0.2 * y)                   # LeakyReLU(0.2)

        # ---- head: 1x1 conv + Sigmoid (fused -- no extra launch / HBM trip) ----
        y = jnp.dot(y.astype(jnp.bfloat16), wh_ref[...],
                    preferred_element_type=jnp.float32) + bh_ref[...]
        o_ref[0] = jax.nn.sigmoid(y).astype(o_ref.dtype)

    return kernel


# ------------------------------ wrapper glue -------------------------------- #
def _const_spec(a):
    """Full-array block fetched once (constant block index across the grid)."""
    zeros = (0,) * a.ndim
    return pl.BlockSpec(a.shape, lambda n: zeros)


def _im2col_s2p1k3(x_nhwc):
    """3x3 / stride 2 / pad 1 patch extraction for the FIRST layer only.

    This reads the HBM input once; everything downstream stays in VMEM inside
    the fused kernel."""
    N, H, W, C = x_nhwc.shape
    Ho = (H - 1) // 2 + 1
    Wo = (W - 1) // 2 + 1
    xp = jnp.pad(x_nhwc, ((0, 0), (1, 1), (1, 1), (0, 0)))
    cols = []
    for kh in range(3):
        for kw in range(3):
            cols.append(xp[:, kh:kh + 2 * Ho:2, kw:kw + 2 * Wo:2, :])
    patches = jnp.concatenate(cols, axis=-1)              # (N, Ho, Wo, 9*C)
    return patches.reshape(N, Ho * Wo, 9 * C), Ho, Wo


def _gather_mats_3x3_s2(H, W):
    """Constant 0/1 matrices G[t] (t = kh*3+kw) with shape (Ho*Wo, H*W).

    G[t] @ act picks input pixel (2a+kh-1, 2b+kw-1) for output pixel (a, b);
    rows whose tap lands in the zero padding are all-zero."""
    Ho = (H - 1) // 2 + 1
    Wo = (W - 1) // 2 + 1
    pin = jnp.arange(H * W)
    mats = []
    for kh in range(3):
        hh = 2 * jnp.arange(Ho) + kh - 1                  # (Ho,)
        hv = (hh >= 0) & (hh < H)
        for kw in range(3):
            ww = 2 * jnp.arange(Wo) + kw - 1              # (Wo,)
            wv = (ww >= 0) & (ww < W)
            p = (jnp.clip(hh, 0, H - 1)[:, None] * W
                 + jnp.clip(ww, 0, W - 1)[None, :])       # (Ho, Wo)
            valid = hv[:, None] & wv[None, :]
            g = (p[..., None] == pin) & valid[..., None]  # (Ho, Wo, H*W)
            mats.append(g.reshape(Ho * Wo, H * W))
    return jnp.stack(mats).astype(jnp.bfloat16), Ho, Wo   # (9, Ho*Wo, H*W)


def discriminator_forward(params, x_nchw, cond_nchw=None):
    if cond_nchw is not None:
        x_nchw = jnp.concatenate([x_nchw, cond_nchw], axis=1)
    x = jnp.transpose(x_nchw, (0, 2, 3, 1)).astype(jnp.bfloat16)   # NCHW -> NHWC, bf16
    N = x.shape[0]

    # First-layer im2col (reads the HBM input once; constant-folded glue).
    patches0, h, w = _im2col_s2p1k3(x)                    # (N, P0, 9*Cin)

    n_inner = len(params) - 2
    gmats = []
    for _ in range(n_inner):
        g, h, w = _gather_mats_3x3_s2(h, w)               # shape-only constants
        gmats.append(g)
    hf, wf = h, w
    pf = hf * wf

    # Assemble the single fused pallas_call.
    inputs = [patches0, params[0]["w"], params[0]["b"]]
    in_specs = [pl.BlockSpec((1,) + patches0.shape[1:], lambda n: (n, 0, 0)),
                _const_spec(params[0]["w"]), _const_spec(params[0]["b"])]
    for p, g in zip(params[1:-1], gmats):
        inputs += [p["w"], p["b"], g]
        in_specs += [_const_spec(p["w"]), _const_spec(p["b"]), _const_spec(g)]
    inputs += [params[-1]["w"], params[-1]["b"]]
    in_specs += [_const_spec(params[-1]["w"]), _const_spec(params[-1]["b"])]

    # Advisory cost estimate.
    flops = 2 * N * patches0.shape[1] * patches0.shape[2] * params[0]["w"].shape[-1]
    for p, g in zip(params[1:-1], gmats):
        _, po, pi = g.shape
        _, ci, co = p["w"].shape
        flops += 2 * N * 9 * po * (pi * ci + ci * co)
    flops += 2 * N * pf * params[-1]["w"].shape[0]
    bytes_accessed = sum(int(a.size) * a.dtype.itemsize for a in inputs) + N * pf * 4

    out = pl.pallas_call(
        _make_fused_kernel(n_inner),
        out_shape=jax.ShapeDtypeStruct((N, pf, 1), jnp.float32),
        grid=(N,),
        in_specs=in_specs,
        out_specs=pl.BlockSpec((1, pf, 1), lambda n: (n, 0, 0)),
        compiler_params=pltpu.CompilerParams(dimension_semantics=("parallel",)),
        cost_estimate=pl.CostEstimate(flops=int(flops),
                                      transcendentals=int(N * pf),
                                      bytes_accessed=int(bytes_accessed)),
    )(*inputs)

    out = out.reshape(N, hf, wf, 1)
    return jnp.transpose(out, (0, 3, 1, 2))               # NHWC -> NCHW


# ------------------------------ parameters ---------------------------------- #
def _spectral_normalize(w_oihw):
    # TODO(synk): PyTorch spectral_norm does a single power-iteration step per
    # forward from a persistent random u; here the exact top singular value
    # (its fixed point) is used, so values differ slightly from a fresh init.
    cout = w_oihw.shape[0]
    sigma = jnp.linalg.svd(w_oihw.reshape(cout, -1), compute_uv=False)[0]
    return w_oihw / sigma


def init_discriminator_params(key, c_in=3, c_cond=0, c_hidden=32, depth=4):
    """Deterministic synthetic parameters mirroring Discriminator.__init__."""
    d = max(depth - 3, 3)
    layer_defs = [(c_in + c_cond, c_hidden // 2 ** d, True, 3)]     # first conv
    for i in range(depth - 1):                                      # inner convs
        ci = c_hidden // 2 ** max(d - i, 0)
        co = c_hidden // 2 ** max(d - 1 - i, 0)
        layer_defs.append((ci, co, True, 3))
    layer_defs.append((c_hidden, 1, False, 1))                      # 1x1 head

    params = []
    for idx, (ci, co, sn, k) in enumerate(layer_defs):
        key, wk, bk = jax.random.split(key, 3)
        bound = (ci * k * k) ** -0.5                                # PyTorch default
        w = jax.random.uniform(wk, (co, ci, k, k), jnp.float32, -bound, bound)
        b = jax.random.uniform(bk, (co,), jnp.float32, -bound, bound)
        if sn:
            w = _spectral_normalize(w)
        w_kkio = jnp.transpose(w, (2, 3, 1, 0))                     # (kh, kw, ci, co)
        if idx == 0 or idx == len(layer_defs) - 1:
            w_mat = w_kkio.reshape(k * k * ci, co)                  # im2col / 1x1 matrix
        else:
            w_mat = w_kkio.reshape(k * k, ci, co)                   # per-tap matrices
        params.append({"w": w_mat.astype(jnp.bfloat16),
                       "b": b.reshape(1, co).astype(jnp.float32)})
    return params


# --------------------------------- main -------------------------------------- #
if __name__ == "__main__":
    key = jax.random.PRNGKey(0)
    pkey, xkey = jax.random.split(key)
    # Small but structure-consistent config: depth=4 -> 4 stride-2 3x3 convs
    # + 1x1 sigmoid head; input 32x32 -> output 2x2.
    params = init_discriminator_params(pkey, c_in=3, c_cond=0,
                                       c_hidden=32, depth=4)
    x = jax.random.normal(xkey, (2, 3, 32, 32), jnp.float32)

    fwd = jax.jit(discriminator_forward)
    out = jax.block_until_ready(fwd(params, x))

    assert out.shape == (2, 1, 2, 2), out.shape
    assert bool(jnp.all(jnp.isfinite(out)))
    assert bool(jnp.all((out >= 0.0) & (out <= 1.0)))     # sigmoid range
    print("KERNEL_OK")
</pallas_src>

<mosaic_0001>
module attributes {stable_mosaic.version = 11 : i64} {
  func.func @kernel(%arg0: i32, %arg1: memref<1x256x27xbf16, #tpu.memory_space<vmem>>, %arg2: memref<27x4xbf16, #tpu.memory_space<vmem>>, %arg3: memref<1x4xf32, #tpu.memory_space<vmem>>, %arg4: memref<9x4x8xbf16, #tpu.memory_space<vmem>>, %arg5: memref<1x8xf32, #tpu.memory_space<vmem>>, %arg6: memref<9x64x256xbf16, #tpu.memory_space<vmem>>, %arg7: memref<9x8x16xbf16, #tpu.memory_space<vmem>>, %arg8: memref<1x16xf32, #tpu.memory_space<vmem>>, %arg9: memref<9x16x64xbf16, #tpu.memory_space<vmem>>, %arg10: memref<9x16x32xbf16, #tpu.memory_space<vmem>>, %arg11: memref<1x32xf32, #tpu.memory_space<vmem>>, %arg12: memref<9x4x16xbf16, #tpu.memory_space<vmem>>, %arg13: memref<32x1xbf16, #tpu.memory_space<vmem>>, %arg14: memref<1x1xf32, #tpu.memory_space<vmem>>, %arg15: memref<1x4x1xf32, #tpu.memory_space<vmem>>) attributes {dimension_semantics = [#tpu.dimension_semantics<parallel>], iteration_bounds = array<i64: 2>, scalar_prefetch = 0 : i64, scratch_operands = 0 : i64, tpu.core_type = #tpu.core_type<tc>, window_params = [{transform_indices = @transform_0, window_bounds = array<i64: 1, 256, 27>}, {pipeline_mode = #tpu.pipeline_mode<synchronous>, transform_indices = @transform_1, window_bounds = array<i64: 27, 4>}, {pipeline_mode = #tpu.pipeline_mode<synchronous>, transform_indices = @transform_2, window_bounds = array<i64: 1, 4>}, {pipeline_mode = #tpu.pipeline_mode<synchronous>, transform_indices = @transform_3, window_bounds = array<i64: 9, 4, 8>}, {pipeline_mode = #tpu.pipeline_mode<synchronous>, transform_indices = @transform_4, window_bounds = array<i64: 1, 8>}, {pipeline_mode = #tpu.pipeline_mode<synchronous>, transform_indices = @transform_5, window_bounds = array<i64: 9, 64, 256>}, {pipeline_mode = #tpu.pipeline_mode<synchronous>, transform_indices = @transform_6, window_bounds = array<i64: 9, 8, 16>}, {pipeline_mode = #tpu.pipeline_mode<synchronous>, transform_indices = @transform_7, window_bounds = array<i64: 1, 16>}, {pipeline_mode = #tpu.pipeline_mode<synchronous>, transform_indices = @transform_8, window_bounds = array<i64: 9, 16, 64>}, {pipeline_mode = #tpu.pipeline_mode<synchronous>, transform_indices = @transform_9, window_bounds = array<i64: 9, 16, 32>}, {pipeline_mode = #tpu.pipeline_mode<synchronous>, transform_indices = @transform_10, window_bounds = array<i64: 1, 32>}, {pipeline_mode = #tpu.pipeline_mode<synchronous>, transform_indices = @transform_11, window_bounds = array<i64: 9, 4, 16>}, {pipeline_mode = #tpu.pipeline_mode<synchronous>, transform_indices = @transform_12, window_bounds = array<i64: 32, 1>}, {pipeline_mode = #tpu.pipeline_mode<synchronous>, transform_indices = @transform_13, window_bounds = array<i64: 1, 1>}, {transform_indices = @transform_14, window_bounds = array<i64: 1, 4, 1>}]} {
    %c0 = arith.constant 0 : index
    %c0_0 = arith.constant 0 : index
    %c0_1 = arith.constant 0 : index
    %0 = vector.load %arg1[%c0, %c0_0, %c0_1] : memref<1x256x27xbf16, #tpu.memory_space<vmem>>, vector<1x256x27xbf16>
    %1 = vector.shape_cast %0 : vector<1x256x27xbf16> to vector<256x27xbf16>
    %c0_2 = arith.constant 0 : index
    %c0_3 = arith.constant 0 : index
    %2 = vector.load %arg2[%c0_2, %c0_3] : memref<27x4xbf16, #tpu.memory_space<vmem>>, vector<27x4xbf16>
    %cst = arith.constant dense<0.000000e+00> : vector<256x4xf32>
    %3 = tpu.matmul %1, %2, %cst {dimension_numbers = #tpu.dot_dimension_numbers<[1], [0], [0], [1], [0, 0, 1, 1], [], []>} : vector<256x27xbf16>, vector<27x4xbf16>, vector<256x4xf32> -> vector<256x4xf32>
    %c0_4 = arith.constant 0 : index
    %c0_5 = arith.constant 0 : index
    %4 = vector.load %arg3[%c0_4, %c0_5] : memref<1x4xf32, #tpu.memory_space<vmem>>, vector<1x4xf32>
    %5 = vector.broadcast %4 : vector<1x4xf32> to vector<256x4xf32>
    %6 = arith.addf %3, %5 : vector<256x4xf32>
    %cst_6 = arith.constant 2.000000e-01 : f32
    %7 = vector.broadcast %cst_6 : f32 to vector<256x4xf32>
    %8 = arith.mulf %7, %6 : vector<256x4xf32>
    %9 = arith.maximumf %6, %8 : vector<256x4xf32>
    %10 = arith.truncf %9 : vector<256x4xf32> to vector<256x4xbf16>
    %cst_7 = arith.constant 0.000000e+00 : f32
    %11 = vector.broadcast %cst_7 : f32 to vector<64x8xf32>
    %c0_8 = arith.constant 0 : index
    %c0_9 = arith.constant 0 : index
    %12 = vector.load %arg5[%c0_8, %c0_9] : memref<1x8xf32, #tpu.memory_space<vmem>>, vector<1x8xf32>
    %13 = vector.broadcast %12 : vector<1x8xf32> to vector<64x8xf32>
    %14 = arith.addf %11, %13 : vector<64x8xf32>
    %c0_10 = arith.constant 0 : index
    %c0_11 = arith.constant 0 : index
    %c0_12 = arith.constant 0 : index
    %15 = vector.load %arg6[%c0_10, %c0_11, %c0_12] : memref<9x64x256xbf16, #tpu.memory_space<vmem>>, vector<1x64x256xbf16>
    %16 = vector.shape_cast %15 : vector<1x64x256xbf16> to vector<64x256xbf16>
    %cst_13 = arith.constant dense<0.000000e+00> : vector<64x4xf32>
    %17 = tpu.matmul %16, %10, %cst_13 {dimension_numbers = #tpu.dot_dimension_numbers<[1], [0], [0], [1], [0, 0, 1, 1], [], []>} : vector<64x256xbf16>, vector<256x4xbf16>, vector<64x4xf32> -> vector<64x4xf32>
    %18 = arith.truncf %17 : vector<64x4xf32> to vector<64x4xbf16>
    %c0_14 = arith.constant 0 : index
    %c0_15 = arith.constant 0 : index
    %c0_16 = arith.constant 0 : index
    %19 = vector.load %arg4[%c0_14, %c0_15, %c0_16] : memref<9x4x8xbf16, #tpu.memory_space<vmem>>, vector<1x4x8xbf16>
    %20 = vector.shape_cast %19 : vector<1x4x8xbf16> to vector<4x8xbf16>
    %cst_17 = arith.constant dense<0.000000e+00> : vector<64x8xf32>
    %21 = tpu.matmul %18, %20, %cst_17 {dimension_numbers = #tpu.dot_dimension_numbers<[1], [0], [0], [1], [0, 0, 1, 1], [], []>} : vector<64x4xbf16>, vector<4x8xbf16>, vector<64x8xf32> -> vector<64x8xf32>
    %22 = arith.addf %14, %21 : vector<64x8xf32>
    %c1 = arith.constant 1 : index
    %c0_18 = arith.constant 0 : index
    %c0_19 = arith.constant 0 : index
    %23 = vector.load %arg6[%c1, %c0_18, %c0_19] : memref<9x64x256xbf16, #tpu.memory_space<vmem>>, vector<1x64x256xbf16>
    %24 = vector.shape_cast %23 : vector<1x64x256xbf16> to vector<64x256xbf16>
    %cst_20 = arith.constant dense<0.000000e+00> : vector<64x4xf32>
    %25 = tpu.matmul %24, %10, %cst_20 {dimension_numbers = #tpu.dot_dimension_numbers<[1], [0], [0], [1], [0, 0, 1, 1], [], []>} : vector<64x256xbf16>, vector<256x4xbf16>, vector<64x4xf32> -> vector<64x4xf32>
    %26 = arith.truncf %25 : vector<64x4xf32> to vector<64x4xbf16>
    %c1_21 = arith.constant 1 : index
    %c0_22 = arith.constant 0 : index
    %c0_23 = arith.constant 0 : index
    %27 = vector.load %arg4[%c1_21, %c0_22, %c0_23] : memref<9x4x8xbf16, #tpu.memory_space<vmem>>, vector<1x4x8xbf16>
    %28 = vector.shape_cast %27 : vector<1x4x8xbf16> to vector<4x8xbf16>
    %cst_24 = arith.constant dense<0.000000e+00> : vector<64x8xf32>
    %29 = tpu.matmul %26, %28, %cst_24 {dimension_numbers = #tpu.dot_dimension_numbers<[1], [0], [0], [1], [0, 0, 1, 1], [], []>} : vector<64x4xbf16>, vector<4x8xbf16>, vector<64x8xf32> -> vector<64x8xf32>
    %30 = arith.addf %22, %29 : vector<64x8xf32>
    %c2 = arith.constant 2 : index
    %c0_25 = arith.constant 0 : index
    %c0_26 = arith.constant 0 : index
    %31 = vector.load %arg6[%c2, %c0_25, %c0_26] : memref<9x64x256xbf16, #tpu.memory_space<vmem>>, vector<1x64x256xbf16>
    %32 = vector.shape_cast %31 : vector<1x64x256xbf16> to vector<64x256xbf16>
    %cst_27 = arith.constant dense<0.000000e+00> : vector<64x4xf32>
    %33 = tpu.matmul %32, %10, %cst_27 {dimension_numbers = #tpu.dot_dimension_numbers<[1], [0], [0], [1], [0, 0, 1, 1], [], []>} : vector<64x256xbf16>, vector<256x4xbf16>, vector<64x4xf32> -> vector<64x4xf32>
    %34 = arith.truncf %33 : vector<64x4xf32> to vector<64x4xbf16>
    %c2_28 = arith.constant 2 : index
    %c0_29 = arith.constant 0 : index
    %c0_30 = arith.constant 0 : index
    %35 = vector.load %arg4[%c2_28, %c0_29, %c0_30] : memref<9x4x8xbf16, #tpu.memory_space<vmem>>, vector<1x4x8xbf16>
    %36 = vector.shape_cast %35 : vector<1x4x8xbf16> to vector<4x8xbf16>
    %cst_31 = arith.constant dense<0.000000e+00> : vector<64x8xf32>
    %37 = tpu.matmul %34, %36, %cst_31 {dimension_numbers = #tpu.dot_dimension_numbers<[1], [0], [0], [1], [0, 0, 1, 1], [], []>} : vector<64x4xbf16>, vector<4x8xbf16>, vector<64x8xf32> -> vector<64x8xf32>
    %38 = arith.addf %30, %37 : vector<64x8xf32>
    %c3 = arith.constant 3 : index
    %c0_32 = arith.constant 0 : index
    %c0_33 = arith.constant 0 : index
    %39 = vector.load %arg6[%c3, %c0_32, %c0_33] : memref<9x64x256xbf16, #tpu.memory_space<vmem>>, vector<1x64x256xbf16>
    %40 = vector.shape_cast %39 : vector<1x64x256xbf16> to vector<64x256xbf16>
    %cst_34 = arith.constant dense<0.000000e+00> : vector<64x4xf32>
    %41 = tpu.matmul %40, %10, %cst_34 {dimension_numbers = #tpu.dot_dimension_numbers<[1], [0], [0], [1], [0, 0, 1, 1], [], []>} : vector<64x256xbf16>, vector<256x4xbf16>, vector<64x4xf32> -> vector<64x4xf32>
    %42 = arith.truncf %41 : vector<64x4xf32> to vector<64x4xbf16>
    %c3_35 = arith.constant 3 : index
    %c0_36 = arith.constant 0 : index
    %c0_37 = arith.constant 0 : index
    %43 = vector.load %arg4[%c3_35, %c0_36, %c0_37] : memref<9x4x8xbf16, #tpu.memory_space<vmem>>, vector<1x4x8xbf16>
    %44 = vector.shape_cast %43 : vector<1x4x8xbf16> to vector<4x8xbf16>
    %cst_38 = arith.constant dense<0.000000e+00> : vector<64x8xf32>
    %45 = tpu.matmul %42, %44, %cst_38 {dimension_numbers = #tpu.dot_dimension_numbers<[1], [0], [0], [1], [0, 0, 1, 1], [], []>} : vector<64x4xbf16>, vector<4x8xbf16>, vector<64x8xf32> -> vector<64x8xf32>
    %46 = arith.addf %38, %45 : vector<64x8xf32>
    %c4 = arith.constant 4 : index
    %c0_39 = arith.constant 0 : index
    %c0_40 = arith.constant 0 : index
    %47 = vector.load %arg6[%c4, %c0_39, %c0_40] : memref<9x64x256xbf16, #tpu.memory_space<vmem>>, vector<1x64x256xbf16>
    %48 = vector.shape_cast %47 : vector<1x64x256xbf16> to vector<64x256xbf16>
    %cst_41 = arith.constant dense<0.000000e+00> : vector<64x4xf32>
    %49 = tpu.matmul %48, %10, %cst_41 {dimension_numbers = #tpu.dot_dimension_numbers<[1], [0], [0], [1], [0, 0, 1, 1], [], []>} : vector<64x256xbf16>, vector<256x4xbf16>, vector<64x4xf32> -> vector<64x4xf32>
    %50 = arith.truncf %49 : vector<64x4xf32> to vector<64x4xbf16>
    %c4_42 = arith.constant 4 : index
    %c0_43 = arith.constant 0 : index
    %c0_44 = arith.constant 0 : index
    %51 = vector.load %arg4[%c4_42, %c0_43, %c0_44] : memref<9x4x8xbf16, #tpu.memory_space<vmem>>, vector<1x4x8xbf16>
    %52 = vector.shape_cast %51 : vector<1x4x8xbf16> to vector<4x8xbf16>
    %cst_45 = arith.constant dense<0.000000e+00> : vector<64x8xf32>
    %53 = tpu.matmul %50, %52, %cst_45 {dimension_numbers = #tpu.dot_dimension_numbers<[1], [0], [0], [1], [0, 0, 1, 1], [], []>} : vector<64x4xbf16>, vector<4x8xbf16>, vector<64x8xf32> -> vector<64x8xf32>
    %54 = arith.addf %46, %53 : vector<64x8xf32>
    %c5 = arith.constant 5 : index
    %c0_46 = arith.constant 0 : index
    %c0_47 = arith.constant 0 : index
    %55 = vector.load %arg6[%c5, %c0_46, %c0_47] : memref<9x64x256xbf16, #tpu.memory_space<vmem>>, vector<1x64x256xbf16>
    %56 = vector.shape_cast %55 : vector<1x64x256xbf16> to vector<64x256xbf16>
    %cst_48 = arith.constant dense<0.000000e+00> : vector<64x4xf32>
    %57 = tpu.matmul %56, %10, %cst_48 {dimension_numbers = #tpu.dot_dimension_numbers<[1], [0], [0], [1], [0, 0, 1, 1], [], []>} : vector<64x256xbf16>, vector<256x4xbf16>, vector<64x4xf32> -> vector<64x4xf32>
    %58 = arith.truncf %57 : vector<64x4xf32> to vector<64x4xbf16>
    %c5_49 = arith.constant 5 : index
    %c0_50 = arith.constant 0 : index
    %c0_51 = arith.constant 0 : index
    %59 = vector.load %arg4[%c5_49, %c0_50, %c0_51] : memref<9x4x8xbf16, #tpu.memory_space<vmem>>, vector<1x4x8xbf16>
    %60 = vector.shape_cast %59 : vector<1x4x8xbf16> to vector<4x8xbf16>
    %cst_52 = arith.constant dense<0.000000e+00> : vector<64x8xf32>
    %61 = tpu.matmul %58, %60, %cst_52 {dimension_numbers = #tpu.dot_dimension_numbers<[1], [0], [0], [1], [0, 0, 1, 1], [], []>} : vector<64x4xbf16>, vector<4x8xbf16>, vector<64x8xf32> -> vector<64x8xf32>
    %62 = arith.addf %54, %61 : vector<64x8xf32>
    %c6 = arith.constant 6 : index
    %c0_53 = arith.constant 0 : index
    %c0_54 = arith.constant 0 : index
    %63 = vector.load %arg6[%c6, %c0_53, %c0_54] : memref<9x64x256xbf16, #tpu.memory_space<vmem>>, vector<1x64x256xbf16>
    %64 = vector.shape_cast %63 : vector<1x64x256xbf16> to vector<64x256xbf16>
    %cst_55 = arith.constant dense<0.000000e+00> : vector<64x4xf32>
    %65 = tpu.matmul %64, %10, %cst_55 {dimension_numbers = #tpu.dot_dimension_numbers<[1], [0], [0], [1], [0, 0, 1, 1], [], []>} : vector<64x256xbf16>, vector<256x4xbf16>, vector<64x4xf32> -> vector<64x4xf32>
    %66 = arith.truncf %65 : vector<64x4xf32> to vector<64x4xbf16>
    %c6_56 = arith.constant 6 : index
    %c0_57 = arith.constant 0 : index
    %c0_58 = arith.constant 0 : index
    %67 = vector.load %arg4[%c6_56, %c0_57, %c0_58] : memref<9x4x8xbf16, #tpu.memory_space<vmem>>, vector<1x4x8xbf16>
    %68 = vector.shape_cast %67 : vector<1x4x8xbf16> to vector<4x8xbf16>
    %cst_59 = arith.constant dense<0.000000e+00> : vector<64x8xf32>
    %69 = tpu.matmul %66, %68, %cst_59 {dimension_numbers = #tpu.dot_dimension_numbers<[1], [0], [0], [1], [0, 0, 1, 1], [], []>} : vector<64x4xbf16>, vector<4x8xbf16>, vector<64x8xf32> -> vector<64x8xf32>
    %70 = arith.addf %62, %69 : vector<64x8xf32>
    %c7 = arith.constant 7 : index
    %c0_60 = arith.constant 0 : index
    %c0_61 = arith.constant 0 : index
    %71 = vector.load %arg6[%c7, %c0_60, %c0_61] : memref<9x64x256xbf16, #tpu.memory_space<vmem>>, vector<1x64x256xbf16>
    %72 = vector.shape_cast %71 : vector<1x64x256xbf16> to vector<64x256xbf16>
    %cst_62 = arith.constant dense<0.000000e+00> : vector<64x4xf32>
    %73 = tpu.matmul %72, %10, %cst_62 {dimension_numbers = #tpu.dot_dimension_numbers<[1], [0], [0], [1], [0, 0, 1, 1], [], []>} : vector<64x256xbf16>, vector<256x4xbf16>, vector<64x4xf32> -> vector<64x4xf32>
    %74 = arith.truncf %73 : vector<64x4xf32> to vector<64x4xbf16>
    %c7_63 = arith.constant 7 : index
    %c0_64 = arith.constant 0 : index
    %c0_65 = arith.constant 0 : index
    %75 = vector.load %arg4[%c7_63, %c0_64, %c0_65] : memref<9x4x8xbf16, #tpu.memory_space<vmem>>, vector<1x4x8xbf16>
    %76 = vector.shape_cast %75 : vector<1x4x8xbf16> to vector<4x8xbf16>
    %cst_66 = arith.constant dense<0.000000e+00> : vector<64x8xf32>
    %77 = tpu.matmul %74, %76, %cst_66 {dimension_numbers = #tpu.dot_dimension_numbers<[1], [0], [0], [1], [0, 0, 1, 1], [], []>} : vector<64x4xbf16>, vector<4x8xbf16>, vector<64x8xf32> -> vector<64x8xf32>
    %78 = arith.addf %70, %77 : vector<64x8xf32>
    %c8 = arith.constant 8 : index
    %c0_67 = arith.constant 0 : index
    %c0_68 = arith.constant 0 : index
    %79 = vector.load %arg6[%c8, %c0_67, %c0_68] : memref<9x64x256xbf16, #tpu.memory_space<vmem>>, vector<1x64x256xbf16>
    %80 = vector.shape_cast %79 : vector<1x64x256xbf16> to vector<64x256xbf16>
    %cst_69 = arith.constant dense<0.000000e+00> : vector<64x4xf32>
    %81 = tpu.matmul %80, %10, %cst_69 {dimension_numbers = #tpu.dot_dimension_numbers<[1], [0], [0], [1], [0, 0, 1, 1], [], []>} : vector<64x256xbf16>, vector<256x4xbf16>, vector<64x4xf32> -> vector<64x4xf32>
    %82 = arith.truncf %81 : vector<64x4xf32> to vector<64x4xbf16>
    %c8_70 = arith.constant 8 : index
    %c0_71 = arith.constant 0 : index
    %c0_72 = arith.constant 0 : index
    %83 = vector.load %arg4[%c8_70, %c0_71, %c0_72] : memref<9x4x8xbf16, #tpu.memory_space<vmem>>, vector<1x4x8xbf16>
    %84 = vector.shape_cast %83 : vector<1x4x8xbf16> to vector<4x8xbf16>
    %cst_73 = arith.constant dense<0.000000e+00> : vector<64x8xf32>
    %85 = tpu.matmul %82, %84, %cst_73 {dimension_numbers = #tpu.dot_dimension_numbers<[1], [0], [0], [1], [0, 0, 1, 1], [], []>} : vector<64x4xbf16>, vector<4x8xbf16>, vector<64x8xf32> -> vector<64x8xf32>
    %86 = arith.addf %78, %85 : vector<64x8xf32>
    %cst_74 = arith.constant dense<0.000000e+00> : vector<8xf32>
    %87 = vector.multi_reduction <add>, %86, %cst_74 [0] : vector<64x8xf32> to vector<8xf32>
    %88 = vector.shape_cast %87 : vector<8xf32> to vector<1x8xf32>
    %cst_75 = arith.constant 6.400000e+01 : f32
    %89 = vector.broadcast %cst_75 : f32 to vector<1x8xf32>
    %90 = arith.divf %88, %89 : vector<1x8xf32>
    %91 = vector.broadcast %90 : vector<1x8xf32> to vector<64x8xf32>
    %92 = arith.subf %86, %91 : vector<64x8xf32>
    %93 = arith.mulf %92, %92 : vector<64x8xf32>
    %cst_76 = arith.constant dense<0.000000e+00> : vector<8xf32>
    %94 = vector.multi_reduction <add>, %93, %cst_76 [0] : vector<64x8xf32> to vector<8xf32>
    %95 = vector.shape_cast %94 : vector<8xf32> to vector<1x8xf32>
    %cst_77 = arith.constant 6.400000e+01 : f32
    %96 = vector.broadcast %cst_77 : f32 to vector<1x8xf32>
    %97 = arith.divf %95, %96 : vector<1x8xf32>
    %98 = vector.broadcast %90 : vector<1x8xf32> to vector<64x8xf32>
    %99 = arith.subf %86, %98 : vector<64x8xf32>
    %cst_78 = arith.constant 9.99999974E-6 : f32
    %100 = vector.broadcast %cst_78 : f32 to vector<1x8xf32>
    %101 = arith.addf %97, %100 : vector<1x8xf32>
    %102 = math.rsqrt %101 : vector<1x8xf32>
    %103 = vector.broadcast %102 : vector<1x8xf32> to vector<64x8xf32>
    %104 = arith.mulf %99, %103 : vector<64x8xf32>
    %cst_79 = arith.constant 2.000000e-01 : f32
    %105 = vector.broadcast %cst_79 : f32 to vector<64x8xf32>
    %106 = arith.mulf %105, %104 : vector<64x8xf32>
    %107 = arith.maximumf %104, %106 : vector<64x8xf32>
    %108 = arith.truncf %107 : vector<64x8xf32> to vector<64x8xbf16>
    %cst_80 = arith.constant 0.000000e+00 : f32
    %109 = vector.broadcast %cst_80 : f32 to vector<16x16xf32>
    %c0_81 = arith.constant 0 : index
    %c0_82 = arith.constant 0 : index
    %110 = vector.load %arg8[%c0_81, %c0_82] : memref<1x16xf32, #tpu.memory_space<vmem>>, vector<1x16xf32>
    %111 = vector.broadcast %110 : vector<1x16xf32> to vector<16x16xf32>
    %112 = arith.addf %109, %111 : vector<16x16xf32>
    %c0_83 = arith.constant 0 : index
    %c0_84 = arith.constant 0 : index
    %c0_85 = arith.constant 0 : index
    %113 = vector.load %arg9[%c0_83, %c0_84, %c0_85] : memref<9x16x64xbf16, #tpu.memory_space<vmem>>, vector<1x16x64xbf16>
    %114 = vector.shape_cast %113 : vector<1x16x64xbf16> to vector<16x64xbf16>
    %cst_86 = arith.constant dense<0.000000e+00> : vector<16x8xf32>
    %115 = tpu.matmul %114, %108, %cst_86 {dimension_numbers = #tpu.dot_dimension_numbers<[1], [0], [0], [1], [0, 0, 1, 1], [], []>} : vector<16x64xbf16>, vector<64x8xbf16>, vector<16x8xf32> -> vector<16x8xf32>
    %116 = arith.truncf %115 : vector<16x8xf32> to vector<16x8xbf16>
    %c0_87 = arith.constant 0 : index
    %c0_88 = arith.constant 0 : index
    %c0_89 = arith.constant 0 : index
    %117 = vector.load %arg7[%c0_87, %c0_88, %c0_89] : memref<9x8x16xbf16, #tpu.memory_space<vmem>>, vector<1x8x16xbf16>
    %118 = vector.shape_cast %117 : vector<1x8x16xbf16> to vector<8x16xbf16>
    %cst_90 = arith.constant dense<0.000000e+00> : vector<16x16xf32>
    %119 = tpu.matmul %116, %118, %cst_90 {dimension_numbers = #tpu.dot_dimension_numbers<[1], [0], [0], [1], [0, 0, 1, 1], [], []>} : vector<16x8xbf16>, vector<8x16xbf16>, vector<16x16xf32> -> vector<16x16xf32>
    %120 = arith.addf %112, %119 : vector<16x16xf32>
    %c1_91 = arith.constant 1 : index
    %c0_92 = arith.constant 0 : index
    %c0_93 = arith.constant 0 : index
    %121 = vector.load %arg9[%c1_91, %c0_92, %c0_93] : memref<9x16x64xbf16, #tpu.memory_space<vmem>>, vector<1x16x64xbf16>
    %122 = vector.shape_cast %121 : vector<1x16x64xbf16> to vector<16x64xbf16>
    %cst_94 = arith.constant dense<0.000000e+00> : vector<16x8xf32>
    %123 = tpu.matmul %122, %108, %cst_94 {dimension_numbers = #tpu.dot_dimension_numbers<[1], [0], [0], [1], [0, 0, 1, 1], [], []>} : vector<16x64xbf16>, vector<64x8xbf16>, vector<16x8xf32> -> vector<16x8xf32>
    %124 = arith.truncf %123 : vector<16x8xf32> to vector<16x8xbf16>
    %c1_95 = arith.constant 1 : index
    %c0_96 = arith.constant 0 : index
    %c0_97 = arith.constant 0 : index
    %125 = vector.load %arg7[%c1_95, %c0_96, %c0_97] : memref<9x8x16xbf16, #tpu.memory_space<vmem>>, vector<1x8x16xbf16>
    %126 = vector.shape_cast %125 : vector<1x8x16xbf16> to vector<8x16xbf16>
    %cst_98 = arith.constant dense<0.000000e+00> : vector<16x16xf32>
    %127 = tpu.matmul %124, %126, %cst_98 {dimension_numbers = #tpu.dot_dimension_numbers<[1], [0], [0], [1], [0, 0, 1, 1], [], []>} : vector<16x8xbf16>, vector<8x16xbf16>, vector<16x16xf32> -> vector<16x16xf32>
    %128 = arith.addf %120, %127 : vector<16x16xf32>
    %c2_99 = arith.constant 2 : index
    %c0_100 = arith.constant 0 : index
    %c0_101 = arith.constant 0 : index
    %129 = vector.load %arg9[%c2_99, %c0_100, %c0_101] : memref<9x16x64xbf16, #tpu.memory_space<vmem>>, vector<1x16x64xbf16>
    %130 = vector.shape_cast %129 : vector<1x16x64xbf16> to vector<16x64xbf16>
    %cst_102 = arith.constant dense<0.000000e+00> : vector<16x8xf32>
    %131 = tpu.matmul %130, %108, %cst_102 {dimension_numbers = #tpu.dot_dimension_numbers<[1], [0], [0], [1], [0, 0, 1, 1], [], []>} : vector<16x64xbf16>, vector<64x8xbf16>, vector<16x8xf32> -> vector<16x8xf32>
    %132 = arith.truncf %131 : vector<16x8xf32> to vector<16x8xbf16>
    %c2_103 = arith.constant 2 : index
    %c0_104 = arith.constant 0 : index
    %c0_105 = arith.constant 0 : index
    %133 = vector.load %arg7[%c2_103, %c0_104, %c0_105] : memref<9x8x16xbf16, #tpu.memory_space<vmem>>, vector<1x8x16xbf16>
    %134 = vector.shape_cast %133 : vector<1x8x16xbf16> to vector<8x16xbf16>
    %cst_106 = arith.constant dense<0.000000e+00> : vector<16x16xf32>
    %135 = tpu.matmul %132, %134, %cst_106 {dimension_numbers = #tpu.dot_dimension_numbers<[1], [0], [0], [1], [0, 0, 1, 1], [], []>} : vector<16x8xbf16>, vector<8x16xbf16>, vector<16x16xf32> -> vector<16x16xf32>
    %136 = arith.addf %128, %135 : vector<16x16xf32>
    %c3_107 = arith.constant 3 : index
    %c0_108 = arith.constant 0 : index
    %c0_109 = arith.constant 0 : index
    %137 = vector.load %arg9[%c3_107, %c0_108, %c0_109] : memref<9x16x64xbf16, #tpu.memory_space<vmem>>, vector<1x16x64xbf16>
    %138 = vector.shape_cast %137 : vector<1x16x64xbf16> to vector<16x64xbf16>
    %cst_110 = arith.constant dense<0.000000e+00> : vector<16x8xf32>
    %139 = tpu.matmul %138, %108, %cst_110 {dimension_numbers = #tpu.dot_dimension_numbers<[1], [0], [0], [1], [0, 0, 1, 1], [], []>} : vector<16x64xbf16>, vector<64x8xbf16>, vector<16x8xf32> -> vector<16x8xf32>
    %140 = arith.truncf %139 : vector<16x8xf32> to vector<16x8xbf16>
    %c3_111 = arith.constant 3 : index
    %c0_112 = arith.constant 0 : index
    %c0_113 = arith.constant 0 : index
    %141 = vector.load %arg7[%c3_111, %c0_112, %c0_113] : memref<9x8x16xbf16, #tpu.memory_space<vmem>>, vector<1x8x16xbf16>
    %142 = vector.shape_cast %141 : vector<1x8x16xbf16> to vector<8x16xbf16>
    %cst_114 = arith.constant dense<0.000000e+00> : vector<16x16xf32>
    %143 = tpu.matmul %140, %142, %cst_114 {dimension_numbers = #tpu.dot_dimension_numbers<[1], [0], [0], [1], [0, 0, 1, 1], [], []>} : vector<16x8xbf16>, vector<8x16xbf16>, vector<16x16xf32> -> vector<16x16xf32>
    %144 = arith.addf %136, %143 : vector<16x16xf32>
    %c4_115 = arith.constant 4 : index
    %c0_116 = arith.constant 0 : index
    %c0_117 = arith.constant 0 : index
    %145 = vector.load %arg9[%c4_115, %c0_116, %c0_117] : memref<9x16x64xbf16, #tpu.memory_space<vmem>>, vector<1x16x64xbf16>
    %146 = vector.shape_cast %145 : vector<1x16x64xbf16> to vector<16x64xbf16>
    %cst_118 = arith.constant dense<0.000000e+00> : vector<16x8xf32>
    %147 = tpu.matmul %146, %108, %cst_118 {dimension_numbers = #tpu.dot_dimension_numbers<[1], [0], [0], [1], [0, 0, 1, 1], [], []>} : vector<16x64xbf16>, vector<64x8xbf16>, vector<16x8xf32> -> vector<16x8xf32>
    %148 = arith.truncf %147 : vector<16x8xf32> to vector<16x8xbf16>
    %c4_119 = arith.constant 4 : index
    %c0_120 = arith.constant 0 : index
    %c0_121 = arith.constant 0 : index
    %149 = vector.load %arg7[%c4_119, %c0_120, %c0_121] : memref<9x8x16xbf16, #tpu.memory_space<vmem>>, vector<1x8x16xbf16>
    %150 = vector.shape_cast %149 : vector<1x8x16xbf16> to vector<8x16xbf16>
    %cst_122 = arith.constant dense<0.000000e+00> : vector<16x16xf32>
    %151 = tpu.matmul %148, %150, %cst_122 {dimension_numbers = #tpu.dot_dimension_numbers<[1], [0], [0], [1], [0, 0, 1, 1], [], []>} : vector<16x8xbf16>, vector<8x16xbf16>, vector<16x16xf32> -> vector<16x16xf32>
    %152 = arith.addf %144, %151 : vector<16x16xf32>
    %c5_123 = arith.constant 5 : index
    %c0_124 = arith.constant 0 : index
    %c0_125 = arith.constant 0 : index
    %153 = vector.load %arg9[%c5_123, %c0_124, %c0_125] : memref<9x16x64xbf16, #tpu.memory_space<vmem>>, vector<1x16x64xbf16>
    %154 = vector.shape_cast %153 : vector<1x16x64xbf16> to vector<16x64xbf16>
    %cst_126 = arith.constant dense<0.000000e+00> : vector<16x8xf32>
    %155 = tpu.matmul %154, %108, %cst_126 {dimension_numbers = #tpu.dot_dimension_numbers<[1], [0], [0], [1], [0, 0, 1, 1], [], []>} : vector<16x64xbf16>, vector<64x8xbf16>, vector<16x8xf32> -> vector<16x8xf32>
    %156 = arith.truncf %155 : vector<16x8xf32> to vector<16x8xbf16>
    %c5_127 = arith.constant 5 : index
    %c0_128 = arith.constant 0 : index
    %c0_129 = arith.constant 0 : index
    %157 = vector.load %arg7[%c5_127, %c0_128, %c0_129] : memref<9x8x16xbf16, #tpu.memory_space<vmem>>, vector<1x8x16xbf16>
    %158 = vector.shape_cast %157 : vector<1x8x16xbf16> to vector<8x16xbf16>
    %cst_130 = arith.constant dense<0.000000e+00> : vector<16x16xf32>
    %159 = tpu.matmul %156, %158, %cst_130 {dimension_numbers = #tpu.dot_dimension_numbers<[1], [0], [0], [1], [0, 0, 1, 1], [], []>} : vector<16x8xbf16>, vector<8x16xbf16>, vector<16x16xf32> -> vector<16x16xf32>
    %160 = arith.addf %152, %159 : vector<16x16xf32>
    %c6_131 = arith.constant 6 : index
    %c0_132 = arith.constant 0 : index
    %c0_133 = arith.constant 0 : index
    %161 = vector.load %arg9[%c6_131, %c0_132, %c0_133] : memref<9x16x64xbf16, #tpu.memory_space<vmem>>, vector<1x16x64xbf16>
    %162 = vector.shape_cast %161 : vector<1x16x64xbf16> to vector<16x64xbf16>
    %cst_134 = arith.constant dense<0.000000e+00> : vector<16x8xf32>
    %163 = tpu.matmul %162, %108, %cst_134 {dimension_numbers = #tpu.dot_dimension_numbers<[1], [0], [0], [1], [0, 0, 1, 1], [], []>} : vector<16x64xbf16>, vector<64x8xbf16>, vector<16x8xf32> -> vector<16x8xf32>
    %164 = arith.truncf %163 : vector<16x8xf32> to vector<16x8xbf16>
    %c6_135 = arith.constant 6 : index
    %c0_136 = arith.constant 0 : index
    %c0_137 = arith.constant 0 : index
    %165 = vector.load %arg7[%c6_135, %c0_136, %c0_137] : memref<9x8x16xbf16, #tpu.memory_space<vmem>>, vector<1x8x16xbf16>
    %166 = vector.shape_cast %165 : vector<1x8x16xbf16> to vector<8x16xbf16>
    %cst_138 = arith.constant dense<0.000000e+00> : vector<16x16xf32>
    %167 = tpu.matmul %164, %166, %cst_138 {dimension_numbers = #tpu.dot_dimension_numbers<[1], [0], [0], [1], [0, 0, 1, 1], [], []>} : vector<16x8xbf16>, vector<8x16xbf16>, vector<16x16xf32> -> vector<16x16xf32>
    %168 = arith.addf %160, %167 : vector<16x16xf32>
    %c7_139 = arith.constant 7 : index
    %c0_140 = arith.constant 0 : index
    %c0_141 = arith.constant 0 : index
    %169 = vector.load %arg9[%c7_139, %c0_140, %c0_141] : memref<9x16x64xbf16, #tpu.memory_space<vmem>>, vector<1x16x64xbf16>
    %170 = vector.shape_cast %169 : vector<1x16x64xbf16> to vector<16x64xbf16>
    %cst_142 = arith.constant dense<0.000000e+00> : vector<16x8xf32>
    %171 = tpu.matmul %170, %108, %cst_142 {dimension_numbers = #tpu.dot_dimension_numbers<[1], [0], [0], [1], [0, 0, 1, 1], [], []>} : vector<16x64xbf16>, vector<64x8xbf16>, vector<16x8xf32> -> vector<16x8xf32>
    %172 = arith.truncf %171 : vector<16x8xf32> to vector<16x8xbf16>
    %c7_143 = arith.constant 7 : index
    %c0_144 = arith.constant 0 : index
    %c0_145 = arith.constant 0 : index
    %173 = vector.load %arg7[%c7_143, %c0_144, %c0_145] : memref<9x8x16xbf16, #tpu.memory_space<vmem>>, vector<1x8x16xbf16>
    %174 = vector.shape_cast %173 : vector<1x8x16xbf16> to vector<8x16xbf16>
    %cst_146 = arith.constant dense<0.000000e+00> : vector<16x16xf32>
    %175 = tpu.matmul %172, %174, %cst_146 {dimension_numbers = #tpu.dot_dimension_numbers<[1], [0], [0], [1], [0, 0, 1, 1], [], []>} : vector<16x8xbf16>, vector<8x16xbf16>, vector<16x16xf32> -> vector<16x16xf32>
    %176 = arith.addf %168, %175 : vector<16x16xf32>
    %c8_147 = arith.constant 8 : index
    %c0_148 = arith.constant 0 : index
    %c0_149 = arith.constant 0 : index
    %177 = vector.load %arg9[%c8_147, %c0_148, %c0_149] : memref<9x16x64xbf16, #tpu.memory_space<vmem>>, vector<1x16x64xbf16>
    %178 = vector.shape_cast %177 : vector<1x16x64xbf16> to vector<16x64xbf16>
    %cst_150 = arith.constant dense<0.000000e+00> : vector<16x8xf32>
    %179 = tpu.matmul %178, %108, %cst_150 {dimension_numbers = #tpu.dot_dimension_numbers<[1], [0], [0], [1], [0, 0, 1, 1], [], []>} : vector<16x64xbf16>, vector<64x8xbf16>, vector<16x8xf32> -> vector<16x8xf32>
    %180 = arith.truncf %179 : vector<16x8xf32> to vector<16x8xbf16>
    %c8_151 = arith.constant 8 : index
    %c0_152 = arith.constant 0 : index
    %c0_153 = arith.constant 0 : index
    %181 = vector.load %arg7[%c8_151, %c0_152, %c0_153] : memref<9x8x16xbf16, #tpu.memory_space<vmem>>, vector<1x8x16xbf16>
    %182 = vector.shape_cast %181 : vector<1x8x16xbf16> to vector<8x16xbf16>
    %cst_154 = arith.constant dense<0.000000e+00> : vector<16x16xf32>
    %183 = tpu.matmul %180, %182, %cst_154 {dimension_numbers = #tpu.dot_dimension_numbers<[1], [0], [0], [1], [0, 0, 1, 1], [], []>} : vector<16x8xbf16>, vector<8x16xbf16>, vector<16x16xf32> -> vector<16x16xf32>
    %184 = arith.addf %176, %183 : vector<16x16xf32>
    %cst_155 = arith.constant dense<0.000000e+00> : vector<16xf32>
    %185 = vector.multi_reduction <add>, %184, %cst_155 [0] : vector<16x16xf32> to vector<16xf32>
    %186 = vector.shape_cast %185 : vector<16xf32> to vector<1x16xf32>
    %cst_156 = arith.constant 1.600000e+01 : f32
    %187 = vector.broadcast %cst_156 : f32 to vector<1x16xf32>
    %188 = arith.divf %186, %187 : vector<1x16xf32>
    %189 = vector.broadcast %188 : vector<1x16xf32> to vector<16x16xf32>
    %190 = arith.subf %184, %189 : vector<16x16xf32>
    %191 = arith.mulf %190, %190 : vector<16x16xf32>
    %cst_157 = arith.constant dense<0.000000e+00> : vector<16xf32>
    %192 = vector.multi_reduction <add>, %191, %cst_157 [0] : vector<16x16xf32> to vector<16xf32>
    %193 = vector.shape_cast %192 : vector<16xf32> to vector<1x16xf32>
    %cst_158 = arith.constant 1.600000e+01 : f32
    %194 = vector.broadcast %cst_158 : f32 to vector<1x16xf32>
    %195 = arith.divf %193, %194 : vector<1x16xf32>
    %196 = vector.broadcast %188 : vector<1x16xf32> to vector<16x16xf32>
    %197 = arith.subf %184, %196 : vector<16x16xf32>
    %cst_159 = arith.constant 9.99999974E-6 : f32
    %198 = vector.broadcast %cst_159 : f32 to vector<1x16xf32>
    %199 = arith.addf %195, %198 : vector<1x16xf32>
    %200 = math.rsqrt %199 : vector<1x16xf32>
    %201 = vector.broadcast %200 : vector<1x16xf32> to vector<16x16xf32>
    %202 = arith.mulf %197, %201 : vector<16x16xf32>
    %cst_160 = arith.constant 2.000000e-01 : f32
    %203 = vector.broadcast %cst_160 : f32 to vector<16x16xf32>
    %204 = arith.mulf %203, %202 : vector<16x16xf32>
    %205 = arith.maximumf %202, %204 : vector<16x16xf32>
    %206 = arith.truncf %205 : vector<16x16xf32> to vector<16x16xbf16>
    %cst_161 = arith.constant 0.000000e+00 : f32
    %207 = vector.broadcast %cst_161 : f32 to vector<4x32xf32>
    %c0_162 = arith.constant 0 : index
    %c0_163 = arith.constant 0 : index
    %208 = vector.load %arg11[%c0_162, %c0_163] : memref<1x32xf32, #tpu.memory_space<vmem>>, vector<1x32xf32>
    %209 = vector.broadcast %208 : vector<1x32xf32> to vector<4x32xf32>
    %210 = arith.addf %207, %209 : vector<4x32xf32>
    %c0_164 = arith.constant 0 : index
    %c0_165 = arith.constant 0 : index
    %c0_166 = arith.constant 0 : index
    %211 = vector.load %arg12[%c0_164, %c0_165, %c0_166] : memref<9x4x16xbf16, #tpu.memory_space<vmem>>, vector<1x4x16xbf16>
    %212 = vector.shape_cast %211 : vector<1x4x16xbf16> to vector<4x16xbf16>
    %cst_167 = arith.constant dense<0.000000e+00> : vector<4x16xf32>
    %213 = tpu.matmul %212, %206, %cst_167 {dimension_numbers = #tpu.dot_dimension_numbers<[1], [0], [0], [1], [0, 0, 1, 1], [], []>} : vector<4x16xbf16>, vector<16x16xbf16>, vector<4x16xf32> -> vector<4x16xf32>
    %214 = arith.truncf %213 : vector<4x16xf32> to vector<4x16xbf16>
    %c0_168 = arith.constant 0 : index
    %c0_169 = arith.constant 0 : index
    %c0_170 = arith.constant 0 : index
    %215 = vector.load %arg10[%c0_168, %c0_169, %c0_170] : memref<9x16x32xbf16, #tpu.memory_space<vmem>>, vector<1x16x32xbf16>
    %216 = vector.shape_cast %215 : vector<1x16x32xbf16> to vector<16x32xbf16>
    %cst_171 = arith.constant dense<0.000000e+00> : vector<4x32xf32>
    %217 = tpu.matmul %214, %216, %cst_171 {dimension_numbers = #tpu.dot_dimension_numbers<[1], [0], [0], [1], [0, 0, 1, 1], [], []>} : vector<4x16xbf16>, vector<16x32xbf16>, vector<4x32xf32> -> vector<4x32xf32>
    %218 = arith.addf %210, %217 : vector<4x32xf32>
    %c1_172 = arith.constant 1 : index
    %c0_173 = arith.constant 0 : index
    %c0_174 = arith.constant 0 : index
    %219 = vector.load %arg12[%c1_172, %c0_173, %c0_174] : memref<9x4x16xbf16, #tpu.memory_space<vmem>>, vector<1x4x16xbf16>
    %220 = vector.shape_cast %219 : vector<1x4x16xbf16> to vector<4x16xbf16>
    %cst_175 = arith.constant dense<0.000000e+00> : vector<4x16xf32>
    %221 = tpu.matmul %220, %206, %cst_175 {dimension_numbers = #tpu.dot_dimension_numbers<[1], [0], [0], [1], [0, 0, 1, 1], [], []>} : vector<4x16xbf16>, vector<16x16xbf16>, vector<4x16xf32> -> vector<4x16xf32>
    %222 = arith.truncf %221 : vector<4x16xf32> to vector<4x16xbf16>
    %c1_176 = arith.constant 1 : index
    %c0_177 = arith.constant 0 : index
    %c0_178 = arith.constant 0 : index
    %223 = vector.load %arg10[%c1_176, %c0_177, %c0_178] : memref<9x16x32xbf16, #tpu.memory_space<vmem>>, vector<1x16x32xbf16>
    %224 = vector.shape_cast %223 : vector<1x16x32xbf16> to vector<16x32xbf16>
    %cst_179 = arith.constant dense<0.000000e+00> : vector<4x32xf32>
    %225 = tpu.matmul %222, %224, %cst_179 {dimension_numbers = #tpu.dot_dimension_numbers<[1], [0], [0], [1], [0, 0, 1, 1], [], []>} : vector<4x16xbf16>, vector<16x32xbf16>, vector<4x32xf32> -> vector<4x32xf32>
    %226 = arith.addf %218, %225 : vector<4x32xf32>
    %c2_180 = arith.constant 2 : index
    %c0_181 = arith.constant 0 : index
    %c0_182 = arith.constant 0 : index
    %227 = vector.load %arg12[%c2_180, %c0_181, %c0_182] : memref<9x4x16xbf16, #tpu.memory_space<vmem>>, vector<1x4x16xbf16>
    %228 = vector.shape_cast %227 : vector<1x4x16xbf16> to vector<4x16xbf16>
    %cst_183 = arith.constant dense<0.000000e+00> : vector<4x16xf32>
    %229 = tpu.matmul %228, %206, %cst_183 {dimension_numbers = #tpu.dot_dimension_numbers<[1], [0], [0], [1], [0, 0, 1, 1], [], []>} : vector<4x16xbf16>, vector<16x16xbf16>, vector<4x16xf32> -> vector<4x16xf32>
    %230 = arith.truncf %229 : vector<4x16xf32> to vector<4x16xbf16>
    %c2_184 = arith.constant 2 : index
    %c0_185 = arith.constant 0 : index
    %c0_186 = arith.constant 0 : index
    %231 = vector.load %arg10[%c2_184, %c0_185, %c0_186] : memref<9x16x32xbf16, #tpu.memory_space<vmem>>, vector<1x16x32xbf16>
    %232 = vector.shape_cast %231 : vector<1x16x32xbf16> to vector<16x32xbf16>
    %cst_187 = arith.constant dense<0.000000e+00> : vector<4x32xf32>
    %233 = tpu.matmul %230, %232, %cst_187 {dimension_numbers = #tpu.dot_dimension_numbers<[1], [0], [0], [1], [0, 0, 1, 1], [], []>} : vector<4x16xbf16>, vector<16x32xbf16>, vector<4x32xf32> -> vector<4x32xf32>
    %234 = arith.addf %226, %233 : vector<4x32xf32>
    %c3_188 = arith.constant 3 : index
    %c0_189 = arith.constant 0 : index
    %c0_190 = arith.constant 0 : index
    %235 = vector.load %arg12[%c3_188, %c0_189, %c0_190] : memref<9x4x16xbf16, #tpu.memory_space<vmem>>, vector<1x4x16xbf16>
    %236 = vector.shape_cast %235 : vector<1x4x16xbf16> to vector<4x16xbf16>
    %cst_191 = arith.constant dense<0.000000e+00> : vector<4x16xf32>
    %237 = tpu.matmul %236, %206, %cst_191 {dimension_numbers = #tpu.dot_dimension_numbers<[1], [0], [0], [1], [0, 0, 1, 1], [], []>} : vector<4x16xbf16>, vector<16x16xbf16>, vector<4x16xf32> -> vector<4x16xf32>
    %238 = arith.truncf %237 : vector<4x16xf32> to vector<4x16xbf16>
    %c3_192 = arith.constant 3 : index
    %c0_193 = arith.constant 0 : index
    %c0_194 = arith.constant 0 : index
    %239 = vector.load %arg10[%c3_192, %c0_193, %c0_194] : memref<9x16x32xbf16, #tpu.memory_space<vmem>>, vector<1x16x32xbf16>
    %240 = vector.shape_cast %239 : vector<1x16x32xbf16> to vector<16x32xbf16>
    %cst_195 = arith.constant dense<0.000000e+00> : vector<4x32xf32>
    %241 = tpu.matmul %238, %240, %cst_195 {dimension_numbers = #tpu.dot_dimension_numbers<[1], [0], [0], [1], [0, 0, 1, 1], [], []>} : vector<4x16xbf16>, vector<16x32xbf16>, vector<4x32xf32> -> vector<4x32xf32>
    %242 = arith.addf %234, %241 : vector<4x32xf32>
    %c4_196 = arith.constant 4 : index
    %c0_197 = arith.constant 0 : index
    %c0_198 = arith.constant 0 : index
    %243 = vector.load %arg12[%c4_196, %c0_197, %c0_198] : memref<9x4x16xbf16, #tpu.memory_space<vmem>>, vector<1x4x16xbf16>
    %244 = vector.shape_cast %243 : vector<1x4x16xbf16> to vector<4x16xbf16>
    %cst_199 = arith.constant dense<0.000000e+00> : vector<4x16xf32>
    %245 = tpu.matmul %244, %206, %cst_199 {dimension_numbers = #tpu.dot_dimension_numbers<[1], [0], [0], [1], [0, 0, 1, 1], [], []>} : vector<4x16xbf16>, vector<16x16xbf16>, vector<4x16xf32> -> vector<4x16xf32>
    %246 = arith.truncf %245 : vector<4x16xf32> to vector<4x16xbf16>
    %c4_200 = arith.constant 4 : index
    %c0_201 = arith.constant 0 : index
    %c0_202 = arith.constant 0 : index
    %247 = vector.load %arg10[%c4_200, %c0_201, %c0_202] : memref<9x16x32xbf16, #tpu.memory_space<vmem>>, vector<1x16x32xbf16>
    %248 = vector.shape_cast %247 : vector<1x16x32xbf16> to vector<16x32xbf16>
    %cst_203 = arith.constant dense<0.000000e+00> : vector<4x32xf32>
    %249 = tpu.matmul %246, %248, %cst_203 {dimension_numbers = #tpu.dot_dimension_numbers<[1], [0], [0], [1], [0, 0, 1, 1], [], []>} : vector<4x16xbf16>, vector<16x32xbf16>, vector<4x32xf32> -> vector<4x32xf32>
    %250 = arith.addf %242, %249 : vector<4x32xf32>
    %c5_204 = arith.constant 5 : index
    %c0_205 = arith.constant 0 : index
    %c0_206 = arith.constant 0 : index
    %251 = vector.load %arg12[%c5_204, %c0_205, %c0_206] : memref<9x4x16xbf16, #tpu.memory_space<vmem>>, vector<1x4x16xbf16>
    %252 = vector.shape_cast %251 : vector<1x4x16xbf16> to vector<4x16xbf16>
    %cst_207 = arith.constant dense<0.000000e+00> : vector<4x16xf32>
    %253 = tpu.matmul %252, %206, %cst_207 {dimension_numbers = #tpu.dot_dimension_numbers<[1], [0], [0], [1], [0, 0, 1, 1], [], []>} : vector<4x16xbf16>, vector<16x16xbf16>, vector<4x16xf32> -> vector<4x16xf32>
    %254 = arith.truncf %253 : vector<4x16xf32> to vector<4x16xbf16>
    %c5_208 = arith.constant 5 : index
    %c0_209 = arith.constant 0 : index
    %c0_210 = arith.constant 0 : index
    %255 = vector.load %arg10[%c5_208, %c0_209, %c0_210] : memref<9x16x32xbf16, #tpu.memory_space<vmem>>, vector<1x16x32xbf16>
    %256 = vector.shape_cast %255 : vector<1x16x32xbf16> to vector<16x32xbf16>
    %cst_211 = arith.constant dense<0.000000e+00> : vector<4x32xf32>
    %257 = tpu.matmul %254, %256, %cst_211 {dimension_numbers = #tpu.dot_dimension_numbers<[1], [0], [0], [1], [0, 0, 1, 1], [], []>} : vector<4x16xbf16>, vector<16x32xbf16>, vector<4x32xf32> -> vector<4x32xf32>
    %258 = arith.addf %250, %257 : vector<4x32xf32>
    %c6_212 = arith.constant 6 : index
    %c0_213 = arith.constant 0 : index
    %c0_214 = arith.constant 0 : index
    %259 = vector.load %arg12[%c6_212, %c0_213, %c0_214] : memref<9x4x16xbf16, #tpu.memory_space<vmem>>, vector<1x4x16xbf16>
    %260 = vector.shape_cast %259 : vector<1x4x16xbf16> to vector<4x16xbf16>
    %cst_215 = arith.constant dense<0.000000e+00> : vector<4x16xf32>
    %261 = tpu.matmul %260, %206, %cst_215 {dimension_numbers = #tpu.dot_dimension_numbers<[1], [0], [0], [1], [0, 0, 1, 1], [], []>} : vector<4x16xbf16>, vector<16x16xbf16>, vector<4x16xf32> -> vector<4x16xf32>
    %262 = arith.truncf %261 : vector<4x16xf32> to vector<4x16xbf16>
    %c6_216 = arith.constant 6 : index
    %c0_217 = arith.constant 0 : index
    %c0_218 = arith.constant 0 : index
    %263 = vector.load %arg10[%c6_216, %c0_217, %c0_218] : memref<9x16x32xbf16, #tpu.memory_space<vmem>>, vector<1x16x32xbf16>
    %264 = vector.shape_cast %263 : vector<1x16x32xbf16> to vector<16x32xbf16>
    %cst_219 = arith.constant dense<0.000000e+00> : vector<4x32xf32>
    %265 = tpu.matmul %262, %264, %cst_219 {dimension_numbers = #tpu.dot_dimension_numbers<[1], [0], [0], [1], [0, 0, 1, 1], [], []>} : vector<4x16xbf16>, vector<16x32xbf16>, vector<4x32xf32> -> vector<4x32xf32>
    %266 = arith.addf %258, %265 : vector<4x32xf32>
    %c7_220 = arith.constant 7 : index
    %c0_221 = arith.constant 0 : index
    %c0_222 = arith.constant 0 : index
    %267 = vector.load %arg12[%c7_220, %c0_221, %c0_222] : memref<9x4x16xbf16, #tpu.memory_space<vmem>>, vector<1x4x16xbf16>
    %268 = vector.shape_cast %267 : vector<1x4x16xbf16> to vector<4x16xbf16>
    %cst_223 = arith.constant dense<0.000000e+00> : vector<4x16xf32>
    %269 = tpu.matmul %268, %206, %cst_223 {dimension_numbers = #tpu.dot_dimension_numbers<[1], [0], [0], [1], [0, 0, 1, 1], [], []>} : vector<4x16xbf16>, vector<16x16xbf16>, vector<4x16xf32> -> vector<4x16xf32>
    %270 = arith.truncf %269 : vector<4x16xf32> to vector<4x16xbf16>
    %c7_224 = arith.constant 7 : index
    %c0_225 = arith.constant 0 : index
    %c0_226 = arith.constant 0 : index
    %271 = vector.load %arg10[%c7_224, %c0_225, %c0_226] : memref<9x16x32xbf16, #tpu.memory_space<vmem>>, vector<1x16x32xbf16>
    %272 = vector.shape_cast %271 : vector<1x16x32xbf16> to vector<16x32xbf16>
    %cst_227 = arith.constant dense<0.000000e+00> : vector<4x32xf32>
    %273 = tpu.matmul %270, %272, %cst_227 {dimension_numbers = #tpu.dot_dimension_numbers<[1], [0], [0], [1], [0, 0, 1, 1], [], []>} : vector<4x16xbf16>, vector<16x32xbf16>, vector<4x32xf32> -> vector<4x32xf32>
    %274 = arith.addf %266, %273 : vector<4x32xf32>
    %c8_228 = arith.constant 8 : index
    %c0_229 = arith.constant 0 : index
    %c0_230 = arith.constant 0 : index
    %275 = vector.load %arg12[%c8_228, %c0_229, %c0_230] : memref<9x4x16xbf16, #tpu.memory_space<vmem>>, vector<1x4x16xbf16>
    %276 = vector.shape_cast %275 : vector<1x4x16xbf16> to vector<4x16xbf16>
    %cst_231 = arith.constant dense<0.000000e+00> : vector<4x16xf32>
    %277 = tpu.matmul %276, %206, %cst_231 {dimension_numbers = #tpu.dot_dimension_numbers<[1], [0], [0], [1], [0, 0, 1, 1], [], []>} : vector<4x16xbf16>, vector<16x16xbf16>, vector<4x16xf32> -> vector<4x16xf32>
    %278 = arith.truncf %277 : vector<4x16xf32> to vector<4x16xbf16>
    %c8_232 = arith.constant 8 : index
    %c0_233 = arith.constant 0 : index
    %c0_234 = arith.constant 0 : index
    %279 = vector.load %arg10[%c8_232, %c0_233, %c0_234] : memref<9x16x32xbf16, #tpu.memory_space<vmem>>, vector<1x16x32xbf16>
    %280 = vector.shape_cast %279 : vector<1x16x32xbf16> to vector<16x32xbf16>
    %cst_235 = arith.constant dense<0.000000e+00> : vector<4x32xf32>
    %281 = tpu.matmul %278, %280, %cst_235 {dimension_numbers = #tpu.dot_dimension_numbers<[1], [0], [0], [1], [0, 0, 1, 1], [], []>} : vector<4x16xbf16>, vector<16x32xbf16>, vector<4x32xf32> -> vector<4x32xf32>
    %282 = arith.addf %274, %281 : vector<4x32xf32>
    %cst_236 = arith.constant dense<0.000000e+00> : vector<32xf32>
    %283 = vector.multi_reduction <add>, %282, %cst_236 [0] : vector<4x32xf32> to vector<32xf32>
    %284 = vector.shape_cast %283 : vector<32xf32> to vector<1x32xf32>
    %cst_237 = arith.constant 4.000000e+00 : f32
    %285 = vector.broadcast %cst_237 : f32 to vector<1x32xf32>
    %286 = arith.divf %284, %285 : vector<1x32xf32>
    %287 = vector.broadcast %286 : vector<1x32xf32> to vector<4x32xf32>
    %288 = arith.subf %282, %287 : vector<4x32xf32>
    %289 = arith.mulf %288, %288 : vector<4x32xf32>
    %cst_238 = arith.constant dense<0.000000e+00> : vector<32xf32>
    %290 = vector.multi_reduction <add>, %289, %cst_238 [0] : vector<4x32xf32> to vector<32xf32>
    %291 = vector.shape_cast %290 : vector<32xf32> to vector<1x32xf32>
    %cst_239 = arith.constant 4.000000e+00 : f32
    %292 = vector.broadcast %cst_239 : f32 to vector<1x32xf32>
    %293 = arith.divf %291, %292 : vector<1x32xf32>
    %294 = vector.broadcast %286 : vector<1x32xf32> to vector<4x32xf32>
    %295 = arith.subf %282, %294 : vector<4x32xf32>
    %cst_240 = arith.constant 9.99999974E-6 : f32
    %296 = vector.broadcast %cst_240 : f32 to vector<1x32xf32>
    %297 = arith.addf %293, %296 : vector<1x32xf32>
    %298 = math.rsqrt %297 : vector<1x32xf32>
    %299 = vector.broadcast %298 : vector<1x32xf32> to vector<4x32xf32>
    %300 = arith.mulf %295, %299 : vector<4x32xf32>
    %cst_241 = arith.constant 2.000000e-01 : f32
    %301 = vector.broadcast %cst_241 : f32 to vector<4x32xf32>
    %302 = arith.mulf %301, %300 : vector<4x32xf32>
    %303 = arith.maximumf %300, %302 : vector<4x32xf32>
    %304 = arith.truncf %303 : vector<4x32xf32> to vector<4x32xbf16>
    %c0_242 = arith.constant 0 : index
    %c0_243 = arith.constant 0 : index
    %305 = vector.load %arg13[%c0_242, %c0_243] : memref<32x1xbf16, #tpu.memory_space<vmem>>, vector<32x1xbf16>
    %cst_244 = arith.constant dense<0.000000e+00> : vector<4x1xf32>
    %306 = tpu.matmul %304, %305, %cst_244 {dimension_numbers = #tpu.dot_dimension_numbers<[1], [0], [0], [1], [0, 0, 1, 1], [], []>} : vector<4x32xbf16>, vector<32x1xbf16>, vector<4x1xf32> -> vector<4x1xf32>
    %c0_245 = arith.constant 0 : index
    %c0_246 = arith.constant 0 : index
    %307 = vector.load %arg14[%c0_245, %c0_246] : memref<1x1xf32, #tpu.memory_space<vmem>>, vector<1x1xf32>
    %308 = vector.broadcast %307 : vector<1x1xf32> to vector<4x1xf32>
    %309 = arith.addf %306, %308 : vector<4x1xf32>
    %310 = arith.negf %309 : vector<4x1xf32>
    %311 = math.exp %310 : vector<4x1xf32>
    %cst_247 = arith.constant 1.000000e+00 : f32
    %312 = vector.broadcast %cst_247 : f32 to vector<4x1xf32>
    %313 = arith.addf %312, %311 : vector<4x1xf32>
    %314 = arith.divf %312, %313 : vector<4x1xf32>
    %c0_248 = arith.constant 0 : index
    %c0_249 = arith.constant 0 : index
    %c0_250 = arith.constant 0 : index
    %315 = vector.load %arg15[%c0_248, %c0_249, %c0_250] : memref<1x4x1xf32, #tpu.memory_space<vmem>>, vector<1x4x1xf32>
    %316 = vector.shape_cast %315 : vector<1x4x1xf32> to vector<4x1xf32>
    %317 = vector.shape_cast %314 : vector<4x1xf32> to vector<1x4x1xf32>
    tpu.vector_store %arg15[%c0_248, %c0_249, %c0_250], %317 {strides = array<i32>} : memref<1x4x1xf32, #tpu.memory_space<vmem>>, vector<1x4x1xf32>,
    return
  }
  func.func @transform_0(%arg0: i32) -> (i32, i32, i32) {
    %c0_i32 = arith.constant 0 : i32
    %c0_i32_0 = arith.constant 0 : i32
    %c0_i32_1 = arith.constant 0 : i32
    return %arg0, %c0_i32, %c0_i32_0 : i32, i32, i32
  }
  func.func @transform_1(%arg0: i32) -> (i32, i32) {
    %c0_i32 = arith.constant 0 : i32
    %c0_i32_0 = arith.constant 0 : i32
    %c0_i32_1 = arith.constant 0 : i32
    return %c0_i32, %c0_i32_0 : i32, i32
  }
  func.func @transform_2(%arg0: i32) -> (i32, i32) {
    %c0_i32 = arith.constant 0 : i32
    %c0_i32_0 = arith.constant 0 : i32
    %c0_i32_1 = arith.constant 0 : i32
    return %c0_i32, %c0_i32_0 : i32, i32
  }
  func.func @transform_3(%arg0: i32) -> (i32, i32, i32) {
    %c0_i32 = arith.constant 0 : i32
    %c0_i32_0 = arith.constant 0 : i32
    %c0_i32_1 = arith.constant 0 : i32
    %c0_i32_2 = arith.constant 0 : i32
    return %c0_i32, %c0_i32_0, %c0_i32_1 : i32, i32, i32
  }
  func.func @transform_4(%arg0: i32) -> (i32, i32) {
    %c0_i32 = arith.constant 0 : i32
    %c0_i32_0 = arith.constant 0 : i32
    %c0_i32_1 = arith.constant 0 : i32
    return %c0_i32, %c0_i32_0 : i32, i32
  }
  func.func @transform_5(%arg0: i32) -> (i32, i32, i32) {
    %c0_i32 = arith.constant 0 : i32
    %c0_i32_0 = arith.constant 0 : i32
    %c0_i32_1 = arith.constant 0 : i32
    %c0_i32_2 = arith.constant 0 : i32
    return %c0_i32, %c0_i32_0, %c0_i32_1 : i32, i32, i32
  }
  func.func @transform_6(%arg0: i32) -> (i32, i32, i32) {
    %c0_i32 = arith.constant 0 : i32
    %c0_i32_0 = arith.constant 0 : i32
    %c0_i32_1 = arith.constant 0 : i32
    %c0_i32_2 = arith.constant 0 : i32
    return %c0_i32, %c0_i32_0, %c0_i32_1 : i32, i32, i32
  }
  func.func @transform_7(%arg0: i32) -> (i32, i32) {
    %c0_i32 = arith.constant 0 : i32
    %c0_i32_0 = arith.constant 0 : i32
    %c0_i32_1 = arith.constant 0 : i32
    return %c0_i32, %c0_i32_0 : i32, i32
  }
  func.func @transform_8(%arg0: i32) -> (i32, i32, i32) {
    %c0_i32 = arith.constant 0 : i32
    %c0_i32_0 = arith.constant 0 : i32
    %c0_i32_1 = arith.constant 0 : i32
    %c0_i32_2 = arith.constant 0 : i32
    return %c0_i32, %c0_i32_0, %c0_i32_1 : i32, i32, i32
  }
  func.func @transform_9(%arg0: i32) -> (i32, i32, i32) {
    %c0_i32 = arith.constant 0 : i32
    %c0_i32_0 = arith.constant 0 : i32
    %c0_i32_1 = arith.constant 0 : i32
    %c0_i32_2 = arith.constant 0 : i32
    return %c0_i32, %c0_i32_0, %c0_i32_1 : i32, i32, i32
  }
  func.func @transform_10(%arg0: i32) -> (i32, i32) {
    %c0_i32 = arith.constant 0 : i32
    %c0_i32_0 = arith.constant 0 : i32
    %c0_i32_1 = arith.constant 0 : i32
    return %c0_i32, %c0_i32_0 : i32, i32
  }
  func.func @transform_11(%arg0: i32) -> (i32, i32, i32) {
    %c0_i32 = arith.constant 0 : i32
    %c0_i32_0 = arith.constant 0 : i32
    %c0_i32_1 = arith.constant 0 : i32
    %c0_i32_2 = arith.constant 0 : i32
    return %c0_i32, %c0_i32_0, %c0_i32_1 : i32, i32, i32
  }
  func.func @transform_12(%arg0: i32) -> (i32, i32) {
    %c0_i32 = arith.constant 0 : i32
    %c0_i32_0 = arith.constant 0 : i32
    %c0_i32_1 = arith.constant 0 : i32
    return %c0_i32, %c0_i32_0 : i32, i32
  }
  func.func @transform_13(%arg0: i32) -> (i32, i32) {
    %c0_i32 = arith.constant 0 : i32
    %c0_i32_0 = arith.constant 0 : i32
    %c0_i32_1 = arith.constant 0 : i32
    return %c0_i32, %c0_i32_0 : i32, i32
  }
  func.func @transform_14(%arg0: i32) -> (i32, i32, i32) {
    %c0_i32 = arith.constant 0 : i32
    %c0_i32_0 = arith.constant 0 : i32
    %c0_i32_1 = arith.constant 0 : i32
    return %arg0, %c0_i32, %c0_i32_0 : i32, i32, i32
  }
}

</mosaic_0001>

<llo_original>
// kernel: discriminator_forward.1
$region0: #{discriminator_forward.1}
  #allocation0 [shape = 'u32[]', space=smem, size = 0x4, offset = 0x4, fixed_abs, tag = 'smem constant byte address 0x4 - core index']
  #allocation1 [shape = 'u32[144,128]{1,0:T(1,128)}', space=vmem, size = 0x12000, scoped, tag = 'internal scratch']
  #allocation2 [shape = 'f32[1,1]{1,0:T(1,128)S(1)}', space=vmem, size = 0x200, scoped, tag = 'scoped memory for discriminator_forward.1']
  %s0 = inlined_call_operand.vmem [shape: bf16[2,256,27], index: 0, kind: input, shape index: {}]
  %s1 = inlined_call_operand.vmem [shape: bf16[27,4], index: 1, kind: input, shape index: {}]
  %s2 = inlined_call_operand.vmem [shape: f32[1,4], index: 2, kind: input, shape index: {}]
  %s3 = inlined_call_operand.vmem [shape: bf16[9,4,8], index: 3, kind: input, shape index: {}]
  %s4 = inlined_call_operand.vmem [shape: f32[1,8], index: 4, kind: input, shape index: {}]
  %s5 = inlined_call_operand.vmem [shape: bf16[9,64,256], index: 5, kind: input, shape index: {}]
  %s6 = inlined_call_operand.vmem [shape: bf16[9,8,16], index: 6, kind: input, shape index: {}]
  %s7 = inlined_call_operand.vmem [shape: f32[1,16], index: 7, kind: input, shape index: {}]
  %s8 = inlined_call_operand.vmem [shape: bf16[9,16,64], index: 8, kind: input, shape index: {}]
  %s9 = inlined_call_operand.vmem [shape: bf16[9,16,32], index: 9, kind: input, shape index: {}]
  %s10 = inlined_call_operand.vmem [shape: f32[1,32], index: 10, kind: input, shape index: {}]
  %s11 = inlined_call_operand.vmem [shape: bf16[9,4,16], index: 11, kind: input, shape index: {}]
  %s12 = inlined_call_operand.vmem [shape: bf16[32,1], index: 12, kind: input, shape index: {}]
  %s13 = inlined_call_operand.<no memory space> [shape: f32[1,1], index: 13, kind: input, shape index: {}]
  %s14 = inlined_call_operand.vmem [shape: f32[2,4,1], index: 14, kind: output, shape index: {}]
  %s15 = sld [smem:[#allocation0]]
  $region89: #{discriminator_forward.1} parent=0
    _
  %s17 = ssub.s32 1, %s15
  %s18 = scalar_select 0, %s17, %s15
  %v19 = vstv %s13
  %20 = vst [vmem:[#allocation2] sm:$0x1] %v19
  loop: start=0, step=1, limit=4
  $region2: #{discriminator_forward.1} parent=0 // loop_pre_header
    _
  $region3: #{discriminator_forward.1} parent=0 // loop_header
    %s22 = sphi 0, %s26
    %p23 = scmp.ge.s32.totalorder %s22, 4
    %s32 = sphi 0, %s34
    %s35 = sphi 0, %s32
    %s36 = sphi 0, %s35
    %s52 = sphi 0, %s36
    %s56 = sphi 0, %s56
    %s58 = sphi 0, %s56
    %s59 = sphi 0, %s58
    %s73 = sphi 0, %s59
    %s77 = sphi 0, %s77
    %s79 = sphi 0, %s77
    %s80 = sphi 0, %s79
    %s94 = sphi 0, %s80
    %s98 = sphi 0, %s98
    %s100 = sphi 0, %s98
    %s101 = sphi 0, %s100
    %s115 = sphi 0, %s101
    %s119 = sphi 0, %s119
    %s121 = sphi 0, %s119
    %s122 = sphi 0, %s121
    %s136 = sphi 0, %s122
    %s140 = sphi 0, %s140
    %s142 = sphi 0, %s140
    %s143 = sphi 0, %s142
    %s157 = sphi 0, %s143
    %s161 = sphi 0, %s161
    %s163 = sphi 0, %s161
    %s164 = sphi 0, %s163
    %s178 = sphi 0, %s164
    %s182 = sphi 0, %s182
    %s184 = sphi 0, %s182
    %s185 = sphi 0, %s184
    %s199 = sphi 0, %s185
    %s203 = sphi 0, %s203
    %s205 = sphi 0, %s203
    %s206 = sphi 0, %s205
    %s220 = sphi 0, %s206
    %s224 = sphi 0, %s224
    %s226 = sphi 0, %s224
    %s227 = sphi 0, %s226
    %s241 = sphi 0, %s227
    %s245 = sphi 0, %s245
    %s247 = sphi 0, %s245
    %s248 = sphi 0, %s247
    %s262 = sphi 0, %s248
    %s266 = sphi 0, %s266
    %s268 = sphi 0, %s266
    %s269 = sphi 0, %s268
    %s283 = sphi 0, %s269
    %s287 = sphi 0, %s287
    %s289 = sphi 0, %s287
    %s290 = sphi 0, %s289
    %s304 = sphi 0, %s290
    %s308 = sphi 0, %s308
    %s310 = sphi 0, %s308
    %s311 = sphi 0, %s310
    %s325 = sphi 0, %s311
    %s331 = sphi 0, %s333
    %s334 = sphi 0, %s331
    %s335 = sphi 0, %s334
    %s351 = sphi 0, %s335
  $region4: #{discriminator_forward.1} parent=0 // loop_header_branch
    %25 = sbr.rel (%p23) target = $region8
  $region5: #{discriminator_forward.1} parent=0 // loop_body
    %s27 = ssub.s32 %s22, 1
    %s28 = ssub.s32 %s22, 2
    %s29 = sadd.s32 %s22, 1
    %s30 = ssub.s32 %s22, %s29
    %p31 = scmp.eq.s32.totalorder %s30, 0
    %s33 = sadd.s32 %s32, 1
    %s34 = scalar_select %p31, %s32, %s33
    %p37 = pneg %p31
    %p38 = scmp.eq.s32.totalorder %s22, 1
    %p39 = por %p37, %p38
    %p40 = scmp.ne.s32.totalorder %s32, %s35
    %p41 = scmp.eq.s32.totalorder %s22, 0
    %p42 = por %p40, %p41
    %p43 = scmp.ne.s32.totalorder %s32, %s35
    %p44 = scmp.eq.s32.totalorder %s27, 1
    %p45 = por %p43, %p44
    %p46 = scmp.ne.s32.totalorder %s35, %s36
    %p47 = scmp.eq.s32.totalorder %s27, 0
    %p48 = por %p46, %p47
    %p49 = scmp.ne.s32.totalorder %s35, %s36
    %p50 = scmp.eq.s32.totalorder %s28, 1
    %p51 = por %p49, %p50
    %p53 = scmp.ne.s32.totalorder %s36, %s52
    %p54 = scmp.eq.s32.totalorder %s28, 0
    %p55 = por %p53, %p54
    %s57 = sadd.s32 %s56, 1
    %p60 = scmp.eq.s32.totalorder %s22, 1
    %p61 = scmp.ne.s32.totalorder %s56, %s58
    %p62 = scmp.eq.s32.totalorder %s22, 0
    %p63 = por %p61, %p62
    %p64 = scmp.ne.s32.totalorder %s56, %s58
    %p65 = scmp.eq.s32.totalorder %s27, 1
    %p66 = por %p64, %p65
    %p67 = scmp.ne.s32.totalorder %s58, %s59
    %p68 = scmp.eq.s32.totalorder %s27, 0
    %p69 = por %p67, %p68
    %p70 = scmp.ne.s32.totalorder %s58, %s59
    %p71 = scmp.eq.s32.totalorder %s28, 1
    %p72 = por %p70, %p71
    %p74 = scmp.ne.s32.totalorder %s59, %s73
    %p75 = scmp.eq.s32.totalorder %s28, 0
    %p76 = por %p74, %p75
    %s78 = sadd.s32 %s77, 1
    %p81 = scmp.eq.s32.totalorder %s22, 1
    %p82 = scmp.ne.s32.totalorder %s77, %s79
    %p83 = scmp.eq.s32.totalorder %s22, 0
    %p84 = por %p82, %p83
    %p85 = scmp.ne.s32.totalorder %s77, %s79
    %p86 = scmp.eq.s32.totalorder %s27, 1
    %p87 = por %p85, %p86
    %p88 = scmp.ne.s32.totalorder %s79, %s80
    %p89 = scmp.eq.s32.totalorder %s27, 0
    %p90 = por %p88, %p89
    %p91 = scmp.ne.s32.totalorder %s79, %s80
    %p92 = scmp.eq.s32.totalorder %s28, 1
    %p93 = por %p91, %p92
    %p95 = scmp.ne.s32.totalorder %s80, %s94
    %p96 = scmp.eq.s32.totalorder %s28, 0
    %p97 = por %p95, %p96
    %s99 = sadd.s32 %s98, 1
    %p102 = scmp.eq.s32.totalorder %s22, 1
    %p103 = scmp.ne.s32.totalorder %s98, %s100
    %p104 = scmp.eq.s32.totalorder %s22, 0
    %p105 = por %p103, %p104
    %p106 = scmp.ne.s32.totalorder %s98, %s100
    %p107 = scmp.eq.s32.totalorder %s27, 1
    %p108 = por %p106, %p107
    %p109 = scmp.ne.s32.totalorder %s100, %s101
    %p110 = scmp.eq.s32.totalorder %s27, 0
    %p111 = por %p109, %p110
    %p112 = scmp.ne.s32.totalorder %s100, %s101
    %p113 = scmp.eq.s32.totalorder %s28, 1
    %p114 = por %p112, %p113
    %p116 = scmp.ne.s32.totalorder %s101, %s115
    %p117 = scmp.eq.s32.totalorder %s28, 0
    %p118 = por %p116, %p117
    %s120 = sadd.s32 %s119, 1
    %p123 = scmp.eq.s32.totalorder %s22, 1
    %p124 = scmp.ne.s32.totalorder %s119, %s121
    %p125 = scmp.eq.s32.totalorder %s22, 0
    %p126 = por %p124, %p125
    %p127 = scmp.ne.s32.totalorder %s119, %s121
    %p128 = scmp.eq.s32.totalorder %s27, 1
    %p129 = por %p127, %p128
    %p130 = scmp.ne.s32.totalorder %s121, %s122
    %p131 = scmp.eq.s32.totalorder %s27, 0
    %p132 = por %p130, %p131
    %p133 = scmp.ne.s32.totalorder %s121, %s122
    %p134 = scmp.eq.s32.totalorder %s28, 1
    %p135 = por %p133, %p134
    %p137 = scmp.ne.s32.totalorder %s122, %s136
    %p138 = scmp.eq.s32.totalorder %s28, 0
    %p139 = por %p137, %p138
    %s141 = sadd.s32 %s140, 1
    %p144 = scmp.eq.s32.totalorder %s22, 1
    %p145 = scmp.ne.s32.totalorder %s140, %s142
    %p146 = scmp.eq.s32.totalorder %s22, 0
    %p147 = por %p145, %p146
    %p148 = scmp.ne.s32.totalorder %s140, %s142
    %p149 = scmp.eq.s32.totalorder %s27, 1
    %p150 = por %p148, %p149
    %p151 = scmp.ne.s32.totalorder %s142, %s143
    %p152 = scmp.eq.s32.totalorder %s27, 0
    %p153 = por %p151, %p152
    %p154 = scmp.ne.s32.totalorder %s142, %s143
    %p155 = scmp.eq.s32.totalorder %s28, 1
    %p156 = por %p154, %p155
    %p158 = scmp.ne.s32.totalorder %s143, %s157
    %p159 = scmp.eq.s32.totalorder %s28, 0
    %p160 = por %p158, %p159
    %s162 = sadd.s32 %s161, 1
    %p165 = scmp.eq.s32.totalorder %s22, 1
    %p166 = scmp.ne.s32.totalorder %s161, %s163
    %p167 = scmp.eq.s32.totalorder %s22, 0
    %p168 = por %p166, %p167
    %p169 = scmp.ne.s32.totalorder %s161, %s163
    %p170 = scmp.eq.s32.totalorder %s27, 1
    %p171 = por %p169, %p170
    %p172 = scmp.ne.s32.totalorder %s163, %s164
    %p173 = scmp.eq.s32.totalorder %s27, 0
    %p174 = por %p172, %p173
    %p175 = scmp.ne.s32.totalorder %s163, %s164
    %p176 = scmp.eq.s32.totalorder %s28, 1
    %p177 = por %p175, %p176
    %p179 = scmp.ne.s32.totalorder %s164, %s178
    %p180 = scmp.eq.s32.totalorder %s28, 0
    %p181 = por %p179, %p180
    %s183 = sadd.s32 %s182, 1
    %p186 = scmp.eq.s32.totalorder %s22, 1
    %p187 = scmp.ne.s32.totalorder %s182, %s184
    %p188 = scmp.eq.s32.totalorder %s22, 0
    %p189 = por %p187, %p188
    %p190 = scmp.ne.s32.totalorder %s182, %s184
    %p191 = scmp.eq.s32.totalorder %s27, 1
    %p192 = por %p190, %p191
    %p193 = scmp.ne.s32.totalorder %s184, %s185
    %p194 = scmp.eq.s32.totalorder %s27, 0
    %p195 = por %p193, %p194
    %p196 = scmp.ne.s32.totalorder %s184, %s185
    %p197 = scmp.eq.s32.totalorder %s28, 1
    %p198 = por %p196, %p197
    %p200 = scmp.ne.s32.totalorder %s185, %s199
    %p201 = scmp.eq.s32.totalorder %s28, 0
    %p202 = por %p200, %p201
    %s204 = sadd.s32 %s203, 1
    %p207 = scmp.eq.s32.totalorder %s22, 1
    %p208 = scmp.ne.s32.totalorder %s203, %s205
    %p209 = scmp.eq.s32.totalorder %s22, 0
    %p210 = por %p208, %p209
    %p211 = scmp.ne.s32.totalorder %s203, %s205
    %p212 = scmp.eq.s32.totalorder %s27, 1
    %p213 = por %p211, %p212
    %p214 = scmp.ne.s32.totalorder %s205, %s206
    %p215 = scmp.eq.s32.totalorder %s27, 0
    %p216 = por %p214, %p215
    %p217 = scmp.ne.s32.totalorder %s205, %s206
    %p218 = scmp.eq.s32.totalorder %s28, 1
    %p219 = por %p217, %p218
    %p221 = scmp.ne.s32.totalorder %s206, %s220
    %p222 = scmp.eq.s32.totalorder %s28, 0
    %p223 = por %p221, %p222
    %s225 = sadd.s32 %s224, 1
    %p228 = scmp.eq.s32.totalorder %s22, 1
    %p229 = scmp.ne.s32.totalorder %s224, %s226
    %p230 = scmp.eq.s32.totalorder %s22, 0
    %p231 = por %p229, %p230
    %p232 = scmp.ne.s32.totalorder %s224, %s226
    %p233 = scmp.eq.s32.totalorder %s27, 1
    %p234 = por %p232, %p233
    %p235 = scmp.ne.s32.totalorder %s226, %s227
    %p236 = scmp.eq.s32.totalorder %s27, 0
    %p237 = por %p235, %p236
    %p238 = scmp.ne.s32.totalorder %s226, %s227
    %p239 = scmp.eq.s32.totalorder %s28, 1
    %p240 = por %p238, %p239
    %p242 = scmp.ne.s32.totalorder %s227, %s241
    %p243 = scmp.eq.s32.totalorder %s28, 0
    %p244 = por %p242, %p243
    %s246 = sadd.s32 %s245, 1
    %p249 = scmp.eq.s32.totalorder %s22, 1
    %p250 = scmp.ne.s32.totalorder %s245, %s247
    %p251 = scmp.eq.s32.totalorder %s22, 0
    %p252 = por %p250, %p251
    %p253 = scmp.ne.s32.totalorder %s245, %s247
    %p254 = scmp.eq.s32.totalorder %s27, 1
    %p255 = por %p253, %p254
    %p256 = scmp.ne.s32.totalorder %s247, %s248
    %p257 = scmp.eq.s32.totalorder %s27, 0
    %p258 = por %p256, %p257
    %p259 = scmp.ne.s32.totalorder %s247, %s248
    %p260 = scmp.eq.s32.totalorder %s28, 1
    %p261 = por %p259, %p260
    %p263 = scmp.ne.s32.totalorder %s248, %s262
    %p264 = scmp.eq.s32.totalorder %s28, 0
    %p265 = por %p263, %p264
    %s267 = sadd.s32 %s266, 1
    %p270 = scmp.eq.s32.totalorder %s22, 1
    %p271 = scmp.ne.s32.totalorder %s266, %s268
    %p272 = scmp.eq.s32.totalorder %s22, 0
    %p273 = por %p271, %p272
    %p274 = scmp.ne.s32.totalorder %s266, %s268
    %p275 = scmp.eq.s32.totalorder %s27, 1
    %p276 = por %p274, %p275
    %p277 = scmp.ne.s32.totalorder %s268, %s269
    %p278 = scmp.eq.s32.totalorder %s27, 0
    %p279 = por %p277, %p278
    %p280 = scmp.ne.s32.totalorder %s268, %s269
    %p281 = scmp.eq.s32.totalorder %s28, 1
    %p282 = por %p280, %p281
    %p284 = scmp.ne.s32.totalorder %s269, %s283
    %p285 = scmp.eq.s32.totalorder %s28, 0
    %p286 = por %p284, %p285
    %s288 = sadd.s32 %s287, 1
    %p291 = scmp.eq.s32.totalorder %s22, 1
    %p292 = scmp.ne.s32.totalorder %s287, %s289
    %p293 = scmp.eq.s32.totalorder %s22, 0
    %p294 = por %p292, %p293
    %p295 = scmp.ne.s32.totalorder %s287, %s289
    %p296 = scmp.eq.s32.totalorder %s27, 1
    %p297 = por %p295, %p296
    %p298 = scmp.ne.s32.totalorder %s289, %s290
    %p299 = scmp.eq.s32.totalorder %s27, 0
    %p300 = por %p298, %p299
    %p301 = scmp.ne.s32.totalorder %s289, %s290
    %p302 = scmp.eq.s32.totalorder %s28, 1
    %p303 = por %p301, %p302
    %p305 = scmp.ne.s32.totalorder %s290, %s304
    %p306 = scmp.eq.s32.totalorder %s28, 0
    %p307 = por %p305, %p306
    %s309 = sadd.s32 %s308, 1
    %p312 = scmp.eq.s32.totalorder %s22, 1
    %p313 = scmp.ne.s32.totalorder %s308, %s310
    %p314 = scmp.eq.s32.totalorder %s22, 0
    %p315 = por %p313, %p314
    %p316 = scmp.ne.s32.totalorder %s308, %s310
    %p317 = scmp.eq.s32.totalorder %s27, 1
    %p318 = por %p316, %p317
    %p319 = scmp.ne.s32.totalorder %s310, %s311
    %p320 = scmp.eq.s32.totalorder %s27, 0
    %p321 = por %p319, %p320
    %p322 = scmp.ne.s32.totalorder %s310, %s311
    %p323 = scmp.eq.s32.totalorder %s28, 1
    %p324 = por %p322, %p323
    %p326 = scmp.ne.s32.totalorder %s311, %s325
    %p327 = scmp.eq.s32.totalorder %s28, 0
    %p328 = por %p326, %p327
    %s329 = ssub.s32 %s22, %s29
    %p330 = scmp.eq.s32.totalorder %s329, 0
    %s332 = sadd.s32 %s331, 1
    %s333 = scalar_select %p330, %s331, %s332
    %p336 = pneg %p330
    %p337 = scmp.eq.s32.totalorder %s22, 1
    %p338 = por %p336, %p337
    %p339 = scmp.ne.s32.totalorder %s331, %s334
    %p340 = scmp.eq.s32.totalorder %s22, 0
    %p341 = por %p339, %p340
    %p342 = scmp.ne.s32.totalorder %s331, %s334
    %p343 = scmp.eq.s32.totalorder %s27, 1
    %p344 = por %p342, %p343
    %p345 = scmp.ne.s32.totalorder %s334, %s335
    %p346 = scmp.eq.s32.totalorder %s27, 0
    %p347 = por %p345, %p346
    %p348 = scmp.ne.s32.totalorder %s334, %s335
    %p349 = scmp.eq.s32.totalorder %s28, 1
    %p350 = por %p348, %p349
    %p352 = scmp.ne.s32.totalorder %s335, %s351
    %p353 = scmp.eq.s32.totalorder %s28, 0
    %p354 = por %p352, %p353
    %p355 = scmp.le.s32.totalorder 1, %s22
    %p356 = scmp.lt.s32.totalorder %s22, 3
    %p357 = pnand %p355, %p356
    %p358 = pneg %p357
    // Predicated region
    $region9: #{discriminator_forward.1} parent=5 // pred_check
      _
    $region10: #{discriminator_forward.1} parent=5 // pred_check_branch
      %360 = sbr.rel (%p357) target = $region12
    $region11: #{discriminator_forward.1} parent=5 // pred_region
      %s361 = ssub.s32 %s22, 1
      // Predicated region
      $region13: #{discriminator_forward.1} parent=11 // pred_check
        %p362 = pneg %p69
      $region14: #{discriminator_forward.1} parent=11 // pred_check_branch
        %364 = sbr.rel (%p362) target = $region16
      $region15: #{discriminator_forward.1} parent=11 // pred_region
        _
      $region16: #{discriminator_forward.1} parent=11 // pred_fallthru
        _
      // Predicated region
      $region17: #{discriminator_forward.1} parent=11 // pred_check
        %p365 = pneg %p90
      $region18: #{discriminator_forward.1} parent=11 // pred_check_branch
        %367 = sbr.rel (%p365) target = $region20
      $region19: #{discriminator_forward.1} parent=11 // pred_region
        _
      $region20: #{discriminator_forward.1} parent=11 // pred_fallthru
        _
      // Predicated region
      $region21: #{discriminator_forward.1} parent=11 // pred_check
        %p368 = pneg %p111
      $region22: #{discriminator_forward.1} parent=11 // pred_check_branch
        %370 = sbr.rel (%p368) target = $region24
      $region23: #{discriminator_forward.1} parent=11 // pred_region
        _
      $region24: #{discriminator_forward.1} parent=11 // pred_fallthru
        _
      // Predicated region
      $region25: #{discriminator_forward.1} parent=11 // pred_check
        %p371 = pneg %p132
      $region26: #{discriminator_forward.1} parent=11 // pred_check_branch
        %373 = sbr.rel (%p371) target = $region28
      $region27: #{discriminator_forward.1} parent=11 // pred_region
        _
      $region28: #{discriminator_forward.1} parent=11 // pred_fallthru
        _
      // Predicated region
      $region29: #{discriminator_forward.1} parent=11 // pred_check
        %p374 = pneg %p153
      $region30: #{discriminator_forward.1} parent=11 // pred_check_branch
        %376 = sbr.rel (%p374) target = $region32
      $region31: #{discriminator_forward.1} parent=11 // pred_region
        _
      $region32: #{discriminator_forward.1} parent=11 // pred_fallthru
        _
      // Predicated region
      $region33: #{discriminator_forward.1} parent=11 // pred_check
        %p377 = pneg %p174
      $region34: #{discriminator_forward.1} parent=11 // pred_check_branch
        %379 = sbr.rel (%p377) target = $region36
      $region35: #{discriminator_forward.1} parent=11 // pred_region
        _
      $region36: #{discriminator_forward.1} parent=11 // pred_fallthru
        _
      // Predicated region
      $region37: #{discriminator_forward.1} parent=11 // pred_check
        %p380 = pneg %p195
      $region38: #{discriminator_forward.1} parent=11 // pred_check_branch
        %382 = sbr.rel (%p380) target = $region40
      $region39: #{discriminator_forward.1} parent=11 // pred_region
        _
      $region40: #{discriminator_forward.1} parent=11 // pred_fallthru
        _
      // Predicated region
      $region41: #{discriminator_forward.1} parent=11 // pred_check
        %p383 = pneg %p216
      $region42: #{discriminator_forward.1} parent=11 // pred_check_branch
        %385 = sbr.rel (%p383) target = $region44
      $region43: #{discriminator_forward.1} parent=11 // pred_region
        _
      $region44: #{discriminator_forward.1} parent=11 // pred_fallthru
        _
      // Predicated region
      $region45: #{discriminator_forward.1} parent=11 // pred_check
        %p386 = pneg %p237
      $region46: #{discriminator_forward.1} parent=11 // pred_check_branch
        %388 = sbr.rel (%p386) target = $region48
      $region47: #{discriminator_forward.1} parent=11 // pred_region
        _
      $region48: #{discriminator_forward.1} parent=11 // pred_fallthru
        _
      // Predicated region
      $region49: #{discriminator_forward.1} parent=11 // pred_check
        %p389 = pneg %p258
      $region50: #{discriminator_forward.1} parent=11 // pred_check_branch
        %391 = sbr.rel (%p389) target = $region52
      $region51: #{discriminator_forward.1} parent=11 // pred_region
        _
      $region52: #{discriminator_forward.1} parent=11 // pred_fallthru
        _
      // Predicated region
      $region53: #{discriminator_forward.1} parent=11 // pred_check
        %p392 = pneg %p279
      $region54: #{discriminator_forward.1} parent=11 // pred_check_branch
        %394 = sbr.rel (%p392) target = $region56
      $region55: #{discriminator_forward.1} parent=11 // pred_region
        _
      $region56: #{discriminator_forward.1} parent=11 // pred_fallthru
        _
      // Predicated region
      $region57: #{discriminator_forward.1} parent=11 // pred_check
        %p395 = pneg %p300
      $region58: #{discriminator_forward.1} parent=11 // pred_check_branch
        %397 = sbr.rel (%p395) target = $region60
      $region59: #{discriminator_forward.1} parent=11 // pred_region
        _
      $region60: #{discriminator_forward.1} parent=11 // pred_fallthru
        _
      // Predicated region
      $region61: #{discriminator_forward.1} parent=11 // pred_check
        %p398 = pneg %p321
      $region62: #{discriminator_forward.1} parent=11 // pred_check_branch
        %400 = sbr.rel (%p398) target = $region64
      $region63: #{discriminator_forward.1} parent=11 // pred_region
        _
      $region64: #{discriminator_forward.1} parent=11 // pred_fallthru
        _
    $region12: #{discriminator_forward.1} parent=5 // pred_fallthru
      _
    %p401 = scmp.lt.s32.totalorder %s22, 2
    // Predicated region
    $region65: #{discriminator_forward.1} parent=5 // pred_check
      %p402 = pneg %p401
    $region66: #{discriminator_forward.1} parent=5 // pred_check_branch
      %404 = sbr.rel (%p402) target = $region68
    $region67: #{discriminator_forward.1} parent=5 // pred_region
      // Predicated region
      $region69: #{discriminator_forward.1} parent=67 // pred_check
        %p405 = pneg %p42
      $region70: #{discriminator_forward.1} parent=67 // pred_check_branch
        %407 = sbr.rel (%p405) target = $region72
      $region71: #{discriminator_forward.1} parent=67 // pred_region
        %p408 = scmp.lt.s32.totalorder %s22, 1
        %s409 = scalar_select %p408, %s22, 1
        %s410 = smul.addr %s409, 32
        %s411 = smul.addr %s410, 4
        %s412 = scalar_lea.vmem %s0, %s411
      $region72: #{discriminator_forward.1} parent=67 // pred_fallthru
        _
    $region68: #{discriminator_forward.1} parent=5 // pred_fallthru
      _
    %p413 = scmp.le.s32.totalorder 1, %s22
    %p414 = scmp.lt.s32.totalorder %s22, 3
    %p415 = pnand %p413, %p414
    %p416 = pneg %p415
    // Predicated region
    $region73: #{discriminator_forward.1} parent=5 // pred_check
      _
    $region74: #{discriminator_forward.1} parent=5 // pred_check_branch
      %418 = sbr.rel (%p415) target = $region76
    $region75: #{discriminator_forward.1} parent=5 // pred_region
      %s419 = ssub.s32 %s22, 1
      %p420 = scmp.lt.s32.totalorder %s27, 1
      %s421 = scalar_select %p420, %s27, 1
      %s422 = smul.addr %s421, 32
      %s423 = smul.addr %s422, 4
      %s424 = scalar_lea.vmem %s0, %s423
      %p425 = pneg %p48
      %p426 = pneg %p45
      %p427 = pneg %p69
      %p428 = pneg %p66
      %p429 = pneg %p90
      %p430 = pneg %p87
      %p431 = pneg %p111
      %p432 = pneg %p108
      %p433 = pneg %p132
      %p434 = pneg %p129
      %p435 = pneg %p153
      %p436 = pneg %p150
      %p437 = pneg %p174
      %p438 = pneg %p171
      %p439 = pneg %p195
      %p440 = pneg %p192
      %p441 = pneg %p216
      %p442 = pneg %p213
      %p443 = pneg %p237
      %p444 = pneg %p234
      %p445 = pneg %p258
      %p446 = pneg %p255
      %p447 = pneg %p279
      %p448 = pneg %p276
      %p449 = pneg %p300
      %p450 = pneg %p297
      %p451 = pneg %p321
      %p452 = pneg %p318
      %p453 = pneg %p347
      %p454 = pneg %p344
      %p455 = scmp.lt.s32.totalorder %s27, 1
      %s456 = scalar_select %p455, %s27, 1
      %s457 = smul.addr %s456, 4
      %s458 = scalar_lea.vmem %s14, %s457
      %p459 = scmp.lt.s32.totalorder %s27, 1
      %s460 = scalar_select %p459, %s27, 1
      %s461 = smul.addr %s460, 32
      %s462 = smul.addr %s461, 4
      %s463 = scalar_lea.vmem %s0, %s462
      %p464 = scmp.lt.s32.totalorder %s27, 1
      %s465 = scalar_select %p464, %s27, 1
      %s466 = smul.addr %s465, 4
      %s467 = scalar_lea.vmem %s14, %s466
      %v469 = vld [vmem:[%s463] sm:$0xf]
      %v470 = vld [vmem:[%s463 + $0x4] sm:$0xf]
      %v471 = vld [vmem:[%s463 + $0x8] sm:$0xf]
      %v472 = vld [vmem:[%s463 + $0xc] sm:$0xf]
      %v473 = vld [vmem:[%s463 + $0x10] sm:$0xf]
      %v474 = vld [vmem:[%s463 + $0x14] sm:$0xf]
      %v475 = vld [vmem:[%s463 + $0x18] sm:$0xf]
      %v476 = vld [vmem:[%s463 + $0x1c] sm:$0xf]
      %v477 = vld [vmem:[%s463 + $0x20] sm:$0xf]
      %v478 = vld [vmem:[%s463 + $0x24] sm:$0xf]
      %v479 = vld [vmem:[%s463 + $0x28] sm:$0xf]
      %v480 = vld [vmem:[%s463 + $0x2c] sm:$0xf]
      %v481 = vld [vmem:[%s463 + $0x30] sm:$0xf]
      %v482 = vld [vmem:[%s463 + $0x34] sm:$0xf]
      %v483 = vld [vmem:[%s463 + $0x38] sm:$0xf]
      %v484 = vld [vmem:[%s463 + $0x3c] sm:$0xf]
      %v485 = vld [vmem:[%s463 + $0x40] sm:$0xf]
      %v486 = vld [vmem:[%s463 + $0x44] sm:$0xf]
      %v487 = vld [vmem:[%s463 + $0x48] sm:$0xf]
      %v488 = vld [vmem:[%s463 + $0x4c] sm:$0xf]
      %v489 = vld [vmem:[%s463 + $0x50] sm:$0xf]
      %v490 = vld [vmem:[%s463 + $0x54] sm:$0xf]
      %v491 = vld [vmem:[%s463 + $0x58] sm:$0xf]
      %v492 = vld [vmem:[%s463 + $0x5c] sm:$0xf]
      %v493 = vld [vmem:[%s463 + $0x60] sm:$0xf]
      %v494 = vld [vmem:[%s463 + $0x64] sm:$0xf]
      %v495 = vld [vmem:[%s463 + $0x68] sm:$0xf]
      %v496 = vld [vmem:[%s463 + $0x6c] sm:$0xf]
      %v497 = vld [vmem:[%s463 + $0x70] sm:$0xf]
      %v498 = vld [vmem:[%s463 + $0x74] sm:$0xf]
      %v499 = vld [vmem:[%s463 + $0x78] sm:$0xf]
      %v500 = vld [vmem:[%s463 + $0x7c] sm:$0xf]
      %v501 = vld [vmem:[%s1] sm:$0xf]
      %v502 = vld [vmem:[%s1 + $0x4] sm:$0xf]
      %v503 = vld [vmem:[%s1 + $0x8] sm:$0xf]
      %v504 = vld [vmem:[%s1 + $0xc] sm:$0x3]
      %v505 = vld [vmem:[%s2] sm:$0x1]
      %v507 = vlaneseq
      %v508 = vshrl.u32 %v507, 7
      %v509 = vsub.s32 0, %v508
      %v510 = vrot.slane %v505, %v509
      %v544 = vunpack.c.l.b16 %v469
      %v545 = vunpack.c.l.b16 %v470
      %v546 = vunpack.c.l.b16 %v471
      %v547 = vunpack.c.l.b16 %v472
      %v548 = vunpack.c.l.b16 %v473
      %v549 = vunpack.c.l.b16 %v474
      %v550 = vunpack.c.l.b16 %v475
      %v551 = vunpack.c.l.b16 %v476
      %v552 = vunpack.c.l.b16 %v477
      %v553 = vunpack.c.l.b16 %v478
      %v554 = vunpack.c.l.b16 %v479
      %v555 = vunpack.c.l.b16 %v480
      %v556 = vunpack.c.l.b16 %v481
      %v557 = vunpack.c.l.b16 %v482
      %v558 = vunpack.c.l.b16 %v483
      %v559 = vunpack.c.l.b16 %v484
      %v560 = vunpack.c.l.b16 %v485
      %v561 = vunpack.c.l.b16 %v486
      %v562 = vunpack.c.l.b16 %v487
      %v563 = vunpack.c.l.b16 %v488
      %v564 = vunpack.c.l.b16 %v489
      %v565 = vunpack.c.l.b16 %v490
      %v566 = vunpack.c.l.b16 %v491
      %v567 = vunpack.c.l.b16 %v492
      %v568 = vunpack.c.l.b16 %v493
      %v569 = vunpack.c.l.b16 %v494
      %v570 = vunpack.c.l.b16 %v495
      %v571 = vunpack.c.l.b16 %v496
      %v572 = vunpack.c.l.b16 %v497
      %v573 = vunpack.c.l.b16 %v498
      %v574 = vunpack.c.l.b16 %v499
      %v575 = vunpack.c.l.b16 %v500
      %v576 = vpack.c.b16 %v545, %v544
      %v577 = vpack.c.b16 %v547, %v546
      %v578 = vpack.c.b16 %v549, %v548
      %v579 = vpack.c.b16 %v551, %v550
      %v580 = vpack.c.b16 %v553, %v552
      %v581 = vpack.c.b16 %v555, %v554
      %v582 = vpack.c.b16 %v557, %v556
      %v583 = vpack.c.b16 %v559, %v558
      %v584 = vpack.c.b16 %v561, %v560
      %v585 = vpack.c.b16 %v563, %v562
      %v586 = vpack.c.b16 %v565, %v564
      %v587 = vpack.c.b16 %v567, %v566
      %v588 = vpack.c.b16 %v569, %v568
      %v589 = vpack.c.b16 %v571, %v570
      %v590 = vpack.c.b16 %v573, %v572
      %v591 = vpack.c.b16 %v575, %v574
      %v596 = vunpack.c.l.b16 %v501
      %v597 = vunpack.c.l.b16 %v502
      %v598 = vunpack.c.l.b16 %v503
      %v599 = vunpack.c.l.b16 %v504
      %v600 = vpack.c.b16 %v597, %v596
      %v601 = vpack.c.b16 %v599, %v598
      %vm603 = vcmask 220160
      %v605 = vsel %vm603, %v576, 0
      %v608 = vsel %vm603, %v577, 0
      %v611 = vsel %vm603, %v578, 0
      %v614 = vsel %vm603, %v579, 0
      %v617 = vsel %vm603, %v580, 0
      %v620 = vsel %vm603, %v581, 0
      %v623 = vsel %vm603, %v582, 0
      %v626 = vsel %vm603, %v583, 0
      %v629 = vsel %vm603, %v584, 0
      %v632 = vsel %vm603, %v585, 0
      %v635 = vsel %vm603, %v586, 0
      %v638 = vsel %vm603, %v587, 0
      %v641 = vsel %vm603, %v588, 0
      %v644 = vsel %vm603, %v589, 0
      %v647 = vsel %vm603, %v590, 0
      %v650 = vsel %vm603, %v591, 0
      %vm652 = vcmask 1044480
      %vm653 = vcmask 1045504
      %v654 = vsel %vm652, 4294967295, 65535
      %v655 = vsel %vm653, %v654, 0
      %v657 = vand.u32 %v601, %v655
      %659 = vmatprep.subr.bf16.mxu0 0
      %660 = vmatpush1.bf16.msra.mxu0 %v600
      %661 = vmatprep.subr.bf16.mxu0 0
      %662 = vmatpush1.bf16.msra.mxu0 %v657
      %663 = vmatprep.subr.bf16.mxu0 0
      %664 = vmatpush1.bf16.msra.mxu0 0
      %665 = vmatprep.subr.bf16.mxu0 0
      %666 = vmatpush1.bf16.msra.mxu0 0
      %667 = vmatprep.subr.bf16.mxu0 0
      %668 = vmatpush1.bf16.msra.mxu0 0
      %669 = vmatprep.subr.bf16.mxu0 0
      %670 = vmatpush1.bf16.msra.mxu0 0
      %671 = vmatprep.subr.bf16.mxu0 0
      %672 = vmatpush1.bf16.msra.mxu0 0
      %673 = vmatprep.subr.bf16.mxu0 0
      %674 = vmatpush1.bf16.msra.mxu0 0
      %675 = vmatprep.subr.bf16.mxu0 0
      %676 = vmatpush1.bf16.msra.mxu0 0
      %677 = vmatprep.subr.bf16.mxu0 0
      %678 = vmatpush1.bf16.msra.mxu0 0
      %679 = vmatprep.subr.bf16.mxu0 0
      %680 = vmatpush1.bf16.msra.mxu0 0
      %681 = vmatprep.subr.bf16.mxu0 0
      %682 = vmatpush1.bf16.msra.mxu0 0
      %683 = vmatprep.subr.bf16.mxu0 0
      %684 = vmatpush1.bf16.msra.mxu0 0
      %685 = vmatprep.subr.bf16.mxu0 0
      %686 = vmatpush1.bf16.msra.mxu0 0
      %687 = vmatprep.subr.bf16.mxu0 0
      %688 = vmatpush1.bf16.msra.mxu0 0
      %689 = vmatprep.subr.bf16.mxu0 0
      %690 = vmatpush1.bf16.msra.mxu0 0
      %691 = vmatprep.mubr.bf16.mxu0 0
      %692 = vmatmul.mubr.bf16.gmra.mrb[0].mxu0 %v605
      %v693 = vpop.f32.mrb[0].mxu0
      %v694 = vadd.f32 %v510, %v693
      %v695 = vpop.f32.mrb[0].mxu0
      %v696 = vpop.f32.mrb[0].mxu0
      %v697 = vadd.f32 %v510, %v696
      %v698 = vpop.f32.mrb[0].mxu0
      %699 = vmatprep.mubr.bf16.mxu0 0
      %700 = vmatmul.mubr.bf16.gmra.mrb[0].mxu0 %v608
      %v701 = vpop.f32.mrb[0].mxu0
      %v702 = vadd.f32 %v510, %v701
      %v703 = vpop.f32.mrb[0].mxu0
      %v704 = vpop.f32.mrb[0].mxu0
      %v705 = vadd.f32 %v510, %v704
      %v706 = vpop.f32.mrb[0].mxu0
      %707 = vmatprep.mubr.bf16.mxu0 0
      %708 = vmatmul.mubr.bf16.gmra.mrb[0].mxu0 %v611
      %v709 = vpop.f32.mrb[0].mxu0
      %v710 = vadd.f32 %v510, %v709
      %v711 = vpop.f32.mrb[0].mxu0
      %v712 = vpop.f32.mrb[0].mxu0
      %v713 = vadd.f32 %v510, %v712
      %v714 = vpop.f32.mrb[0].mxu0
      %715 = vmatprep.mubr.bf16.mxu0 0
      %716 = vmatmul.mubr.bf16.gmra.mrb[0].mxu0 %v614
      %v717 = vpop.f32.mrb[0].mxu0
      %v718 = vadd.f32 %v510, %v717
      %v719 = vpop.f32.mrb[0].mxu0
      %v720 = vpop.f32.mrb[0].mxu0
      %v721 = vadd.f32 %v510, %v720
      %v722 = vpop.f32.mrb[0].mxu0
      %723 = vmatprep.mubr.bf16.mxu0 0
      %724 = vmatmul.mubr.bf16.gmra.mrb[0].mxu0 %v617
      %v725 = vpop.f32.mrb[0].mxu0
      %v726 = vadd.f32 %v510, %v725
      %v727 = vpop.f32.mrb[0].mxu0
      %v728 = vpop.f32.mrb[0].mxu0
      %v729 = vadd.f32 %v510, %v728
      %v730 = vpop.f32.mrb[0].mxu0
      %731 = vmatprep.mubr.bf16.mxu0 0
      %732 = vmatmul.mubr.bf16.gmra.mrb[0].mxu0 %v620
      %v733 = vpop.f32.mrb[0].mxu0
      %v734 = vadd.f32 %v510, %v733
      %v735 = vpop.f32.mrb[0].mxu0
      %v736 = vpop.f32.mrb[0].mxu0
      %v737 = vadd.f32 %v510, %v736
      %v738 = vpop.f32.mrb[0].mxu0
      %739 = vmatprep.mubr.bf16.mxu0 0
      %740 = vmatmul.mubr.bf16.gmra.mrb[0].mxu0 %v623
      %v741 = vpop.f32.mrb[0].mxu0
      %v742 = vadd.f32 %v510, %v741
      %v743 = vpop.f32.mrb[0].mxu0
      %v744 = vpop.f32.mrb[0].mxu0
      %v745 = vadd.f32 %v510, %v744
      %v746 = vpop.f32.mrb[0].mxu0
      %747 = vmatprep.mubr.bf16.mxu0 0
      %748 = vmatmul.mubr.bf16.gmra.mrb[0].mxu0 %v626
      %v749 = vpop.f32.mrb[0].mxu0
      %v750 = vadd.f32 %v510, %v749
      %v751 = vpop.f32.mrb[0].mxu0
      %v752 = vpop.f32.mrb[0].mxu0
      %v753 = vadd.f32 %v510, %v752
      %v754 = vpop.f32.mrb[0].mxu0
      %755 = vmatprep.mubr.bf16.mxu0 0
      %756 = vmatmul.mubr.bf16.gmra.mrb[0].mxu0 %v629
      %v757 = vpop.f32.mrb[0].mxu0
      %v758 = vadd.f32 %v510, %v757
      %v759 = vpop.f32.mrb[0].mxu0
      %v760 = vpop.f32.mrb[0].mxu0
      %v761 = vadd.f32 %v510, %v760
      %v762 = vpop.f32.mrb[0].mxu0
      %763 = vmatprep.mubr.bf16.mxu0 0
      %764 = vmatmul.mubr.bf16.gmra.mrb[0].mxu0 %v632
      %v765 = vpop.f32.mrb[0].mxu0
      %v766 = vadd.f32 %v510, %v765
      %v767 = vpop.f32.mrb[0].mxu0
      %v768 = vpop.f32.mrb[0].mxu0
      %v769 = vadd.f32 %v510, %v768
      %v770 = vpop.f32.mrb[0].mxu0
      %771 = vmatprep.mubr.bf16.mxu0 0
      %772 = vmatmul.mubr.bf16.gmra.mrb[0].mxu0 %v635
      %v773 = vpop.f32.mrb[0].mxu0
      %v774 = vadd.f32 %v510, %v773
      %v775 = vpop.f32.mrb[0].mxu0
      %v776 = vpop.f32.mrb[0].mxu0
      %v777 = vadd.f32 %v510, %v776
      %v778 = vpop.f32.mrb[0].mxu0
      %779 = vmatprep.mubr.bf16.mxu0 0
      %780 = vmatmul.mubr.bf16.gmra.mrb[0].mxu0 %v638
      %v781 = vpop.f32.mrb[0].mxu0
      %v782 = vadd.f32 %v510, %v781
      %v783 = vpop.f32.mrb[0].mxu0
      %v784 = vpop.f32.mrb[0].mxu0
      %v785 = vadd.f32 %v510, %v784
      %v786 = vpop.f32.mrb[0].mxu0
      %787 = vmatprep.mubr.bf16.mxu0 0
      %788 = vmatmul.mubr.bf16.gmra.mrb[0].mxu0 %v641
      %v789 = vpop.f32.mrb[0].mxu0
      %v790 = vadd.f32 %v510, %v789
      %v791 = vpop.f32.mrb[0].mxu0
      %v792 = vpop.f32.mrb[0].mxu0
      %v793 = vadd.f32 %v510, %v792
      %v794 = vpop.f32.mrb[0].mxu0
      %795 = vmatprep.mubr.bf16.mxu0 0
      %796 = vmatmul.mubr.bf16.gmra.mrb[0].mxu0 %v644
      %v797 = vpop.f32.mrb[0].mxu0
      %v798 = vadd.f32 %v510, %v797
      %v799 = vpop.f32.mrb[0].mxu0
      %v800 = vpop.f32.mrb[0].mxu0
      %v801 = vadd.f32 %v510, %v800
      %v802 = vpop.f32.mrb[0].mxu0
      %803 = vmatprep.mubr.bf16.mxu0 0
      %804 = vmatmul.mubr.bf16.gmra.mrb[0].mxu0 %v647
      %v805 = vpop.f32.mrb[0].mxu0
      %v806 = vadd.f32 %v510, %v805
      %v807 = vpop.f32.mrb[0].mxu0
      %v808 = vpop.f32.mrb[0].mxu0
      %v809 = vadd.f32 %v510, %v808
      %v810 = vpop.f32.mrb[0].mxu0
      %811 = vmatprep.mubr.bf16.mxu0 0
      %812 = vmatmul.mubr.bf16.gmra.mrb[0].mxu0 %v650
      %v813 = vpop.f32.mrb[0].mxu0
      %v814 = vadd.f32 %v510, %v813
      %v815 = vpop.f32.mrb[0].mxu0
      %v816 = vpop.f32.mrb[0].mxu0
      %v817 = vadd.f32 %v510, %v816
      %v818 = vpop.f32.mrb[0].mxu0
      %819 = vdwg.mxu0
      %v820 = vmul.f32 %v694, 0.2
      %v821 = vmul.f32 %v697, 0.2
      %v822 = vmul.f32 %v702, 0.2
      %v823 = vmul.f32 %v705, 0.2
      %v824 = vmul.f32 %v710, 0.2
      %v825 = vmul.f32 %v713, 0.2
      %v826 = vmul.f32 %v718, 0.2
      %v827 = vmul.f32 %v721, 0.2
      %v828 = vmul.f32 %v726, 0.2
      %v829 = vmul.f32 %v729, 0.2
      %v830 = vmul.f32 %v734, 0.2
      %v831 = vmul.f32 %v737, 0.2
      %v832 = vmul.f32 %v742, 0.2
      %v833 = vmul.f32 %v745, 0.2
      %v834 = vmul.f32 %v750, 0.2
      %v835 = vmul.f32 %v753, 0.2
      %v836 = vmul.f32 %v758, 0.2
      %v837 = vmul.f32 %v761, 0.2
      %v838 = vmul.f32 %v766, 0.2
      %v839 = vmul.f32 %v769, 0.2
      %v840 = vmul.f32 %v774, 0.2
      %v841 = vmul.f32 %v777, 0.2
      %v842 = vmul.f32 %v782, 0.2
      %v843 = vmul.f32 %v785, 0.2
      %v844 = vmul.f32 %v790, 0.2
      %v845 = vmul.f32 %v793, 0.2
      %v846 = vmul.f32 %v798, 0.2
      %v847 = vmul.f32 %v801, 0.2
      %v848 = vmul.f32 %v806, 0.2
      %v849 = vmul.f32 %v809, 0.2
      %v850 = vmul.f32 %v814, 0.2
      %v851 = vmul.f32 %v817, 0.2
      %v852 = vmax.f32 %v694, %v820
      %v853 = vmax.f32 %v697, %v821
      %v854 = vmax.f32 %v702, %v822
      %v855 = vmax.f32 %v705, %v823
      %v856 = vmax.f32 %v710, %v824
      %v857 = vmax.f32 %v713, %v825
      %v858 = vmax.f32 %v718, %v826
      %v859 = vmax.f32 %v721, %v827
      %v860 = vmax.f32 %v726, %v828
      %v861 = vmax.f32 %v729, %v829
      %v862 = vmax.f32 %v734, %v830
      %v863 = vmax.f32 %v737, %v831
      %v864 = vmax.f32 %v742, %v832
      %v865 = vmax.f32 %v745, %v833
      %v866 = vmax.f32 %v750, %v834
      %v867 = vmax.f32 %v753, %v835
      %v868 = vmax.f32 %v758, %v836
      %v869 = vmax.f32 %v761, %v837
      %v870 = vmax.f32 %v766, %v838
      %v871 = vmax.f32 %v769, %v839
      %v872 = vmax.f32 %v774, %v840
      %v873 = vmax.f32 %v777, %v841
      %v874 = vmax.f32 %v782, %v842
      %v875 = vmax.f32 %v785, %v843
      %v876 = vmax.f32 %v790, %v844
      %v877 = vmax.f32 %v793, %v845
      %v878 = vmax.f32 %v798, %v846
      %v879 = vmax.f32 %v801, %v847
      %v880 = vmax.f32 %v806, %v848
      %v881 = vmax.f32 %v809, %v849
      %v882 = vmax.f32 %v814, %v850
      %v883 = vmax.f32 %v817, %v851
      %v884 = vpack.c.bf16 %v853, %v852
      %v885 = vpack.c.bf16 %v855, %v854
      %v886 = vpack.c.bf16 %v857, %v856
      %v887 = vpack.c.bf16 %v859, %v858
      %v888 = vpack.c.bf16 %v861, %v860
      %v889 = vpack.c.bf16 %v863, %v862
      %v890 = vpack.c.bf16 %v865, %v864
      %v891 = vpack.c.bf16 %v867, %v866
      %v892 = vpack.c.bf16 %v869, %v868
      %v893 = vpack.c.bf16 %v871, %v870
      %v894 = vpack.c.bf16 %v873, %v872
      %v895 = vpack.c.bf16 %v875, %v874
      %v896 = vpack.c.bf16 %v877, %v876
      %v897 = vpack.c.bf16 %v879, %v878
      %v898 = vpack.c.bf16 %v881, %v880
      %v899 = vpack.c.bf16 %v883, %v882
      %v900 = vld [vmem:[%s4] sm:$0x1]
      %v902 = vlaneseq
      %v903 = vshrl.u32 %v902, 7
      %v904 = vsub.s32 0, %v903
      %v905 = vrot.slane %v900, %v904
      %v907 = vadd.f32 %v905, 0.0
      %v908 = vld [vmem:[%s5] sm:$0xff]
      %v909 = vld [vmem:[%s5 + $0x8] sm:$0xff]
      %v910 = vld [vmem:[%s5 + $0x10] sm:$0xff]
      %v911 = vld [vmem:[%s5 + $0x18] sm:$0xff]
      %v912 = vld [vmem:[%s5 + $0x20] sm:$0xff]
      %v913 = vld [vmem:[%s5 + $0x28] sm:$0xff]
      %v914 = vld [vmem:[%s5 + $0x30] sm:$0xff]
      %v915 = vld [vmem:[%s5 + $0x38] sm:$0xff]
      %v924 = vunpack.c.l.b16 %v908
      %v925 = vunpack.c.h.b16 %v908
      %v926 = vunpack.c.l.b16 %v909
      %v927 = vunpack.c.h.b16 %v909
      %v928 = vunpack.c.l.b16 %v910
      %v929 = vunpack.c.h.b16 %v910
      %v930 = vunpack.c.l.b16 %v911
      %v931 = vunpack.c.h.b16 %v911
      %v932 = vunpack.c.l.b16 %v912
      %v933 = vunpack.c.h.b16 %v912
      %v934 = vunpack.c.l.b16 %v913
      %v935 = vunpack.c.h.b16 %v913
      %v936 = vunpack.c.l.b16 %v914
      %v937 = vunpack.c.h.b16 %v914
      %v938 = vunpack.c.l.b16 %v915
      %v939 = vunpack.c.h.b16 %v915
      %v940 = vpack.c.b16 %v926, %v924
      %v941 = vpack.c.b16 %v927, %v925
      %v942 = vpack.c.b16 %v930, %v928
      %v943 = vpack.c.b16 %v931, %v929
      %v944 = vpack.c.b16 %v934, %v932
      %v945 = vpack.c.b16 %v935, %v933
      %v946 = vpack.c.b16 %v938, %v936
      %v947 = vpack.c.b16 %v939, %v937
      %956 = vmatprep.subr.bf16.mxu0 0
      %957 = vmatpush1.bf16.msra.mxu0 %v884
      %958 = vmatprep.subr.bf16.mxu0 0
      %959 = vmatpush1.bf16.msra.mxu0 %v885
      %960 = vmatprep.subr.bf16.mxu0 0
      %961 = vmatpush1.bf16.msra.mxu0 %v886
      %962 = vmatprep.subr.bf16.mxu0 0
      %963 = vmatpush1.bf16.msra.mxu0 %v887
      %964 = vmatprep.subr.bf16.mxu0 0
      %965 = vmatpush1.bf16.msra.mxu0 %v888
      %966 = vmatprep.subr.bf16.mxu0 0
      %967 = vmatpush1.bf16.msra.mxu0 %v889
      %968 = vmatprep.subr.bf16.mxu0 0
      %969 = vmatpush1.bf16.msra.mxu0 %v890
      %970 = vmatprep.subr.bf16.mxu0 0
      %971 = vmatpush1.bf16.msra.mxu0 %v891
      %972 = vmatprep.subr.bf16.mxu0 0
      %973 = vmatpush1.bf16.msra.mxu0 %v892
      %974 = vmatprep.subr.bf16.mxu0 0
      %975 = vmatpush1.bf16.msra.mxu0 %v893
      %976 = vmatprep.subr.bf16.mxu0 0
      %977 = vmatpush1.bf16.msra.mxu0 %v894
      %978 = vmatprep.subr.bf16.mxu0 0
      %979 = vmatpush1.bf16.msra.mxu0 %v895
      %980 = vmatprep.subr.bf16.mxu0 0
      %981 = vmatpush1.bf16.msra.mxu0 %v896
      %982 = vmatprep.subr.bf16.mxu0 0
      %983 = vmatpush1.bf16.msra.mxu0 %v897
      %984 = vmatprep.subr.bf16.mxu0 0
      %985 = vmatpush1.bf16.msra.mxu0 %v898
      %986 = vmatprep.subr.bf16.mxu0 0
      %987 = vmatpush1.bf16.msra.mxu0 %v899
      %988 = vmatprep.mubr.bf16.mxu0 %v941
      %989 = vmatmul.mubr.bf16.gmra.mrb[0].mxu0 %v940
      %v990 = vpop.f32.mrb[0].mxu0
      %v991 = vadd.f32 0.0, %v990
      %v992 = vpop.f32.mrb[0].mxu0
      %v993 = vpop.f32.mrb[0].mxu0
      %v994 = vadd.f32 0.0, %v993
      %v995 = vpop.f32.mrb[0].mxu0
      %996 = vmatprep.mubr.bf16.mxu0 %v943
      %997 = vmatmul.mubr.bf16.gmra.mrb[0].mxu0 %v942
      %v998 = vpop.f32.mrb[0].mxu0
      %v999 = vadd.f32 0.0, %v998
      %v1000 = vpop.f32.mrb[0].mxu0
      %v1001 = vpop.f32.mrb[0].mxu0
      %v1002 = vadd.f32 0.0, %v1001
      %v1003 = vpop.f32.mrb[0].mxu0
      %1004 = vmatprep.mubr.bf16.mxu0 %v945
      %1005 = vmatmul.mubr.bf16.gmra.mrb[0].mxu0 %v944
      %v1006 = vpop.f32.mrb[0].mxu0
      %v1007 = vadd.f32 0.0, %v1006
      %v1008 = vpop.f32.mrb[0].mxu0
      %v1009 = vpop.f32.mrb[0].mxu0
      %v1010 = vadd.f32 0.0, %v1009
      %v1011 = vpop.f32.mrb[0].mxu0
      %1012 = vmatprep.mubr.bf16.mxu0 %v947
      %1013 = vmatmul.mubr.bf16.gmra.mrb[0].mxu0 %v946
      %v1014 = vpop.f32.mrb[0].mxu0
      %v1015 = vadd.f32 0.0, %v1014
      %v1016 = vpop.f32.mrb[0].mxu0
      %v1017 = vpop.f32.mrb[0].mxu0
      %v1018 = vadd.f32 0.0, %v1017
      %v1019 = vpop.f32.mrb[0].mxu0
      %1020 = vdwg.mxu0
      %v1021 = vpack.c.bf16 %v994, %v991
      %v1022 = vpack.c.bf16 %v1002, %v999
      %v1023 = vpack.c.bf16 %v1010, %v1007
      %v1024 = vpack.c.bf16 %v1018, %v1015
      %v1025 = vld [vmem:[%s3] sm:$0x3]
      %vm1026 = vcmask 31744
      %v1028 = vsel %vm1026, %v1021, 0
      %v1031 = vsel %vm1026, %v1022, 0
      %v1034 = vsel %vm1026, %v1023, 0
      %v1037 = vsel %vm1026, %v1024, 0
      %vm1039 = vcmask 1041408
      %v1041 = vsel %vm1039, %v1025, 0
      %1043 = vmatprep.subr.bf16.mxu0 0
      %1044 = vmatpush1.bf16.msra.mxu0 %v1041
      %1045 = vmatprep.subr.bf16.mxu0 0
      %1046 = vmatpush1.bf16.msra.mxu0 0
      %1047 = vmatprep.subr.bf16.mxu0 0
      %1048 = vmatpush1.bf16.msra.mxu0 0
      %1049 = vmatprep.subr.bf16.mxu0 0
      %1050 = vmatpush1.bf16.msra.mxu0 0
      %1051 = vmatprep.subr.bf16.mxu0 0
      %1052 = vmatpush1.bf16.msra.mxu0 0
      %1053 = vmatprep.subr.bf16.mxu0 0
      %1054 = vmatpush1.bf16.msra.mxu0 0
      %1055 = vmatprep.subr.bf16.mxu0 0
      %1056 = vmatpush1.bf16.msra.mxu0 0
      %1057 = vmatprep.subr.bf16.mxu0 0
      %1058 = vmatpush1.bf16.msra.mxu0 0
      %1059 = vmatprep.subr.bf16.mxu0 0
      %1060 = vmatpush1.bf16.msra.mxu0 0
      %1061 = vmatprep.subr.bf16.mxu0 0
      %1062 = vmatpush1.bf16.msra.mxu0 0
      %1063 = vmatprep.subr.bf16.mxu0 0
      %1064 = vmatpush1.bf16.msra.mxu0 0
      %1065 = vmatprep.subr.bf16.mxu0 0
      %1066 = vmatpush1.bf16.msra.mxu0 0
      %1067 = vmatprep.subr.bf16.mxu0 0
      %1068 = vmatpush1.bf16.msra.mxu0 0
      %1069 = vmatprep.subr.bf16.mxu0 0
      %1070 = vmatpush1.bf16.msra.mxu0 0
      %1071 = vmatprep.subr.bf16.mxu0 0
      %1072 = vmatpush1.bf16.msra.mxu0 0
      %1073 = vmatprep.subr.bf16.mxu0 0
      %1074 = vmatpush1.bf16.msra.mxu0 0
      %1075 = vmatprep.mubr.bf16.mxu0 0
      %1076 = vmatmul.mubr.bf16.gmra.mrb[0].mxu0 %v1028
      %v1077 = vpop.f32.mrb[0].mxu0
      %v1078 = vadd.f32 0.0, %v1077
      %v1079 = vpop.f32.mrb[0].mxu0
      %v1080 = vpop.f32.mrb[0].mxu0
      %v1081 = vadd.f32 0.0, %v1080
      %v1082 = vpop.f32.mrb[0].mxu0
      %1083 = vmatprep.mubr.bf16.mxu0 0
      %1084 = vmatmul.mubr.bf16.gmra.mrb[0].mxu0 %v1031
      %v1085 = vpop.f32.mrb[0].mxu0
      %v1086 = vadd.f32 0.0, %v1085
      %v1087 = vpop.f32.mrb[0].mxu0
      %v1088 = vpop.f32.mrb[0].mxu0
      %v1089 = vadd.f32 0.0, %v1088
      %v1090 = vpop.f32.mrb[0].mxu0
      %1091 = vmatprep.mubr.bf16.mxu0 0
      %1092 = vmatmul.mubr.bf16.gmra.mrb[0].mxu0 %v1034
      %v1093 = vpop.f32.mrb[0].mxu0
      %v1094 = vadd.f32 0.0, %v1093
      %v1095 = vpop.f32.mrb[0].mxu0
      %v1096 = vpop.f32.mrb[0].mxu0
      %v1097 = vadd.f32 0.0, %v1096
      %v1098 = vpop.f32.mrb[0].mxu0
      %1099 = vmatprep.mubr.bf16.mxu0 0
      %1100 = vmatmul.mubr.bf16.gmra.mrb[0].mxu0 %v1037
      %v1101 = vpop.f32.mrb[0].mxu0
      %v1102 = vadd.f32 0.0, %v1101
      %v1103 = vpop.f32.mrb[0].mxu0
      %v1104 = vpop.f32.mrb[0].mxu0
      %v1105 = vadd.f32 0.0, %v1104
      %v1106 = vpop.f32.mrb[0].mxu0
      %1107 = vdwg.mxu0
      %v1108 = vadd.f32 %v907, %v1078
      %v1109 = vadd.f32 %v907, %v1081
      %v1110 = vadd.f32 %v907, %v1086
      %v1111 = vadd.f32 %v907, %v1089
      %v1112 = vadd.f32 %v907, %v1094
      %v1113 = vadd.f32 %v907, %v1097
      %v1114 = vadd.f32 %v907, %v1102
      %v1115 = vadd.f32 %v907, %v1105
      %s1116 = scalar_lea.vmem %s5, 64
      %v1117 = vld [vmem:[%s1116] sm:$0xff]
      %v1118 = vld [vmem:[%s1116 + $0x8] sm:$0xff]
      %v1119 = vld [vmem:[%s1116 + $0x10] sm:$0xff]
      %v1120 = vld [vmem:[%s1116 + $0x18] sm:$0xff]
      %v1121 = vld [vmem:[%s1116 + $0x20] sm:$0xff]
      %v1122 = vld [vmem:[%s1116 + $0x28] sm:$0xff]
      %v1123 = vld [vmem:[%s1116 + $0x30] sm:$0xff]
      %v1124 = vld [vmem:[%s1116 + $0x38] sm:$0xff]
      %v1133 = vunpack.c.l.b16 %v1117
      %v1134 = vunpack.c.h.b16 %v1117
      %v1135 = vunpack.c.l.b16 %v1118
      %v1136 = vunpack.c.h.b16 %v1118
      %v1137 = vunpack.c.l.b16 %v1119
      %v1138 = vunpack.c.h.b16 %v1119
      %v1139 = vunpack.c.l.b16 %v1120
      %v1140 = vunpack.c.h.b16 %v1120
      %v1141 = vunpack.c.l.b16 %v1121
      %v1142 = vunpack.c.h.b16 %v1121
      %v1143 = vunpack.c.l.b16 %v1122
      %v1144 = vunpack.c.h.b16 %v1122
      %v1145 = vunpack.c.l.b16 %v1123
      %v1146 = vunpack.c.h.b16 %v1123
      %v1147 = vunpack.c.l.b16 %v1124
      %v1148 = vunpack.c.h.b16 %v1124
      %v1149 = vpack.c.b16 %v1135, %v1133
      %v1150 = vpack.c.b16 %v1136, %v1134
      %v1151 = vpack.c.b16 %v1139, %v1137
      %v1152 = vpack.c.b16 %v1140, %v1138
      %v1153 = vpack.c.b16 %v1143, %v1141
      %v1154 = vpack.c.b16 %v1144, %v1142
      %v1155 = vpack.c.b16 %v1147, %v1145
      %v1156 = vpack.c.b16 %v1148, %v1146
      %1165 = vmatprep.subr.bf16.mxu0 0
      %1166 = vmatpush1.bf16.msra.mxu0 %v884
      %1167 = vmatprep.subr.bf16.mxu0 0
      %1168 = vmatpush1.bf16.msra.mxu0 %v885
      %1169 = vmatprep.subr.bf16.mxu0 0
      %1170 = vmatpush1.bf16.msra.mxu0 %v886
      %1171 = vmatprep.subr.bf16.mxu0 0
      %1172 = vmatpush1.bf16.msra.mxu0 %v887
      %1173 = vmatprep.subr.bf16.mxu0 0
      %1174 = vmatpush1.bf16.msra.mxu0 %v888
      %1175 = vmatprep.subr.bf16.mxu0 0
      %1176 = vmatpush1.bf16.msra.mxu0 %v889
      %1177 = vmatprep.subr.bf16.mxu0 0
      %1178 = vmatpush1.bf16.msra.mxu0 %v890
      %1179 = vmatprep.subr.bf16.mxu0 0
      %1180 = vmatpush1.bf16.msra.mxu0 %v891
      %1181 = vmatprep.subr.bf16.mxu0 0
      %1182 = vmatpush1.bf16.msra.mxu0 %v892
      %1183 = vmatprep.subr.bf16.mxu0 0
      %1184 = vmatpush1.bf16.msra.mxu0 %v893
      %1185 = vmatprep.subr.bf16.mxu0 0
      %1186 = vmatpush1.bf16.msra.mxu0 %v894
      %1187 = vmatprep.subr.bf16.mxu0 0
      %1188 = vmatpush1.bf16.msra.mxu0 %v895
      %1189 = vmatprep.subr.bf16.mxu0 0
      %1190 = vmatpush1.bf16.msra.mxu0 %v896
      %1191 = vmatprep.subr.bf16.mxu0 0
      %1192 = vmatpush1.bf16.msra.mxu0 %v897
      %1193 = vmatprep.subr.bf16.mxu0 0
      %1194 = vmatpush1.bf16.msra.mxu0 %v898
      %1195 = vmatprep.subr.bf16.mxu0 0
      %1196 = vmatpush1.bf16.msra.mxu0 %v899
      %1197 = vmatprep.mubr.bf16.mxu0 %v1150
      %1198 = vmatmul.mubr.bf16.gmra.mrb[0].mxu0 %v1149
      %v1199 = vpop.f32.mrb[0].mxu0
      %v1200 = vadd.f32 0.0, %v1199
      %v1201 = vpop.f32.mrb[0].mxu0
      %v1202 = vpop.f32.mrb[0].mxu0
      %v1203 = vadd.f32 0.0, %v1202
      %v1204 = vpop.f32.mrb[0].mxu0
      %1205 = vmatprep.mubr.bf16.mxu0 %v1152
      %1206 = vmatmul.mubr.bf16.gmra.mrb[0].mxu0 %v1151
      %v1207 = vpop.f32.mrb[0].mxu0
      %v1208 = vadd.f32 0.0, %v1207
      %v1209 = vpop.f32.mrb[0].mxu0
      %v1210 = vpop.f32.mrb[0].mxu0
      %v1211 = vadd.f32 0.0, %v1210
      %v1212 = vpop.f32.mrb[0].mxu0
      %1213 = vmatprep.mubr.bf16.mxu0 %v1154
      %1214 = vmatmul.mubr.bf16.gmra.mrb[0].mxu0 %v1153
      %v1215 = vpop.f32.mrb[0].mxu0
      %v1216 = vadd.f32 0.0, %v1215
      %v1217 = vpop.f32.mrb[0].mxu0
      %v1218 = vpop.f32.mrb[0].mxu0
      %v1219 = vadd.f32 0.0, %v1218
      %v1220 = vpop.f32.mrb[0].mxu0
      %1221 = vmatprep.mubr.bf16.mxu0 %v1156
      %1222 = vmatmul.mubr.bf16.gmra.mrb[0].mxu0 %v1155
      %v1223 = vpop.f32.mrb[0].mxu0
      %v1224 = vadd.f32 0.0, %v1223
      %v1225 = vpop.f32.mrb[0].mxu0
      %v1226 = vpop.f32.mrb[0].mxu0
      %v1227 = vadd.f32 0.0, %v1226
      %v1228 = vpop.f32.mrb[0].mxu0
      %1229 = vdwg.mxu0
      %v1230 = vpack.c.bf16 %v1203, %v1200
      %v1231 = vpack.c.bf16 %v1211, %v1208
      %v1232 = vpack.c.bf16 %v1219, %v1216
      %v1233 = vpack.c.bf16 %v1227, %v1224
      %s1234 = scalar_lea.vmem %s3, 2
      %v1235 = vld [vmem:[%s1234] sm:$0x3]
      %v1237 = vsel %vm1026, %v1230, 0
      %v1240 = vsel %vm1026, %v1231, 0
      %v1243 = vsel %vm1026, %v1232, 0
      %v1246 = vsel %vm1026, %v1233, 0
      %v1249 = vsel %vm1039, %v1235, 0
      %1251 = vmatprep.subr.bf16.mxu0 0
      %1252 = vmatpush1.bf16.msra.mxu0 %v1249
      %1253 = vmatprep.subr.bf16.mxu0 0
      %1254 = vmatpush1.bf16.msra.mxu0 0
      %1255 = vmatprep.subr.bf16.mxu0 0
      %1256 = vmatpush1.bf16.msra.mxu0 0
      %1257 = vmatprep.subr.bf16.mxu0 0
      %1258 = vmatpush1.bf16.msra.mxu0 0
      %1259 = vmatprep.subr.bf16.mxu0 0
      %1260 = vmatpush1.bf16.msra.mxu0 0
      %1261 = vmatprep.subr.bf16.mxu0 0
      %1262 = vmatpush1.bf16.msra.mxu0 0
      %1263 = vmatprep.subr.bf16.mxu0 0
      %1264 = vmatpush1.bf16.msra.mxu0 0
      %1265 = vmatprep.subr.bf16.mxu0 0
      %1266 = vmatpush1.bf16.msra.mxu0 0
      %1267 = vmatprep.subr.bf16.mxu0 0
      %1268 = vmatpush1.bf16.msra.mxu0 0
      %1269 = vmatprep.subr.bf16.mxu0 0
      %1270 = vmatpush1.bf16.msra.mxu0 0
      %1271 = vmatprep.subr.bf16.mxu0 0
      %1272 = vmatpush1.bf16.msra.mxu0 0
      %1273 = vmatprep.subr.bf16.mxu0 0
      %1274 = vmatpush1.bf16.msra.mxu0 0
      %1275 = vmatprep.subr.bf16.mxu0 0
      %1276 = vmatpush1.bf16.msra.mxu0 0
      %1277 = vmatprep.subr.bf16.mxu0 0
      %1278 = vmatpush1.bf16.msra.mxu0 0
      %1279 = vmatprep.subr.bf16.mxu0 0
      %1280 = vmatpush1.bf16.msra.mxu0 0
      %1281 = vmatprep.subr.bf16.mxu0 0
      %1282 = vmatpush1.bf16.msra.mxu0 0
      %1283 = vmatprep.mubr.bf16.mxu0 0
      %1284 = vmatmul.mubr.bf16.gmra.mrb[0].mxu0 %v1237
      %v1285 = vpop.f32.mrb[0].mxu0
      %v1286 = vadd.f32 0.0, %v1285
      %v1287 = vpop.f32.mrb[0].mxu0
      %v1288 = vpop.f32.mrb[0].mxu0
      %v1289 = vadd.f32 0.0, %v1288
      %v1290 = vpop.f32.mrb[0].mxu0
      %1291 = vmatprep.mubr.bf16.mxu0 0
      %1292 = vmatmul.mubr.bf16.gmra.mrb[0].mxu0 %v1240
      %v1293 = vpop.f32.mrb[0].mxu0
      %v1294 = vadd.f32 0.0, %v1293
      %v1295 = vpop.f32.mrb[0].mxu0
      %v1296 = vpop.f32.mrb[0].mxu0
      %v1297 = vadd.f32 0.0, %v1296
      %v1298 = vpop.f32.mrb[0].mxu0
      %1299 = vmatprep.mubr.bf16.mxu0 0
      %1300 = vmatmul.mubr.bf16.gmra.mrb[0].mxu0 %v1243
      %v1301 = vpop.f32.mrb[0].mxu0
      %v1302 = vadd.f32 0.0, %v1301
      %v1303 = vpop.f32.mrb[0].mxu0
      %v1304 = vpop.f32.mrb[0].mxu0
      %v1305 = vadd.f32 0.0, %v1304
      %v1306 = vpop.f32.mrb[0].mxu0
      %1307 = vmatprep.mubr.bf16.mxu0 0
      %1308 = vmatmul.mubr.bf16.gmra.mrb[0].mxu0 %v1246
      %v1309 = vpop.f32.mrb[0].mxu0
      %v1310 = vadd.f32 0.0, %v1309
      %v1311 = vpop.f32.mrb[0].mxu0
      %v1312 = vpop.f32.mrb[0].mxu0
      %v1313 = vadd.f32 0.0, %v1312
      %v1314 = vpop.f32.mrb[0].mxu0
      %1315 = vdwg.mxu0
      %v1316 = vadd.f32 %v1108, %v1286
      %v1317 = vadd.f32 %v1109, %v1289
      %v1318 = vadd.f32 %v1110, %v1294
      %v1319 = vadd.f32 %v1111, %v1297
      %v1320 = vadd.f32 %v1112, %v1302
      %v1321 = vadd.f32 %v1113, %v1305
      %v1322 = vadd.f32 %v1114, %v1310
      %v1323 = vadd.f32 %v1115, %v1313
      %s1324 = scalar_lea.vmem %s5, 128
      %v1325 = vld [vmem:[%s1324] sm:$0xff]
      %v1326 = vld [vmem:[%s1324 + $0x8] sm:$0xff]
      %v1327 = vld [vmem:[%s1324 + $0x10] sm:$0xff]
      %v1328 = vld [vmem:[%s1324 + $0x18] sm:$0xff]
      %v1329 = vld [vmem:[%s1324 + $0x20] sm:$0xff]
      %v1330 = vld [vmem:[%s1324 + $0x28] sm:$0xff]
      %v1331 = vld [vmem:[%s1324 + $0x30] sm:$0xff]
      %v1332 = vld [vmem:[%s1324 + $0x38] sm:$0xff]
      %v1341 = vunpack.c.l.b16 %v1325
      %v1342 = vunpack.c.h.b16 %v1325
      %v1343 = vunpack.c.l.b16 %v1326
      %v1344 = vunpack.c.h.b16 %v1326
      %v1345 = vunpack.c.l.b16 %v1327
      %v1346 = vunpack.c.h.b16 %v1327
      %v1347 = vunpack.c.l.b16 %v1328
      %v1348 = vunpack.c.h.b16 %v1328
      %v1349 = vunpack.c.l.b16 %v1329
      %v1350 = vunpack.c.h.b16 %v1329
      %v1351 = vunpack.c.l.b16 %v1330
      %v1352 = vunpack.c.h.b16 %v1330
      %v1353 = vunpack.c.l.b16 %v1331
      %v1354 = vunpack.c.h.b16 %v1331
      %v1355 = vunpack.c.l.b16 %v1332
      %v1356 = vunpack.c.h.b16 %v1332
      %v1357 = vpack.c.b16 %v1343, %v1341
      %v1358 = vpack.c.b16 %v1344, %v1342
      %v1359 = vpack.c.b16 %v1347, %v1345
      %v1360 = vpack.c.b16 %v1348, %v1346
      %v1361 = vpack.c.b16 %v1351, %v1349
      %v1362 = vpack.c.b16 %v1352, %v1350
      %v1363 = vpack.c.b16 %v1355, %v1353
      %v1364 = vpack.c.b16 %v1356, %v1354
      %1373 = vmatprep.subr.bf16.mxu0 0
      %1374 = vmatpush1.bf16.msra.mxu0 %v884
      %1375 = vmatprep.subr.bf16.mxu0 0
      %1376 = vmatpush1.bf16.msra.mxu0 %v885
      %1377 = vmatprep.subr.bf16.mxu0 0
      %1378 = vmatpush1.bf16.msra.mxu0 %v886
      %1379 = vmatprep.subr.bf16.mxu0 0
      %1380 = vmatpush1.bf16.msra.mxu0 %v887
      %1381 = vmatprep.subr.bf16.mxu0 0
      %1382 = vmatpush1.bf16.msra.mxu0 %v888
      %1383 = vmatprep.subr.bf16.mxu0 0
      %1384 = vmatpush1.bf16.msra.mxu0 %v889
      %1385 = vmatprep.subr.bf16.mxu0 0
      %1386 = vmatpush1.bf16.msra.mxu0 %v890
      %1387 = vmatprep.subr.bf16.mxu0 0
      %1388 = vmatpush1.bf16.msra.mxu0 %v891
      %1389 = vmatprep.subr.bf16.mxu0 0
      %1390 = vmatpush1.bf16.msra.mxu0 %v892
      %1391 = vmatprep.subr.bf16.mxu0 0
      %1392 = vmatpush1.bf16.msra.mxu0 %v893
      %1393 = vmatprep.subr.bf16.mxu0 0
      %1394 = vmatpush1.bf16.msra.mxu0 %v894
      %1395 = vmatprep.subr.bf16.mxu0 0
      %1396 = vmatpush1.bf16.msra.mxu0 %v895
      %1397 = vmatprep.subr.bf16.mxu0 0
      %1398 = vmatpush1.bf16.msra.mxu0 %v896
      %1399 = vmatprep.subr.bf16.mxu0 0
      %1400 = vmatpush1.bf16.msra.mxu0 %v897
      %1401 = vmatprep.subr.bf16.mxu0 0
      %1402 = vmatpush1.bf16.msra.mxu0 %v898
      %1403 = vmatprep.subr.bf16.mxu0 0
      %1404 = vmatpush1.bf16.msra.mxu0 %v899
      %1405 = vmatprep.mubr.bf16.mxu0 %v1358
      %1406 = vmatmul.mubr.bf16.gmra.mrb[0].mxu0 %v1357
      %v1407 = vpop.f32.mrb[0].mxu0
      %v1408 = vadd.f32 0.0, %v1407
      %v1409 = vpop.f32.mrb[0].mxu0
      %v1410 = vpop.f32.mrb[0].mxu0
      %v1411 = vadd.f32 0.0, %v1410
      %v1412 = vpop.f32.mrb[0].mxu0
      %1413 = vmatprep.mubr.bf16.mxu0 %v1360
      %1414 = vmatmul.mubr.bf16.gmra.mrb[0].mxu0 %v1359
      %v1415 = vpop.f32.mrb[0].mxu0
      %v1416 = vadd.f32 0.0, %v1415
      %v1417 = vpop.f32.mrb[0].mxu0
      %v1418 = vpop.f32.mrb[0].mxu0
      %v1419 = vadd.f32 0.0, %v1418
      %v1420 = vpop.f32.mrb[0].mxu0
      %1421 = vmatprep.mubr.bf16.mxu0 %v1362
      %1422 = vmatmul.mubr.bf16.gmra.mrb[0].mxu0 %v1361
      %v1423 = vpop.f32.mrb[0].mxu0
      %v1424 = vadd.f32 0.0, %v1423
      %v1425 = vpop.f32.mrb[0].mxu0
      %v1426 = vpop.f32.mrb[0].mxu0
      %v1427 = vadd.f32 0.0, %v1426
      %v1428 = vpop.f32.mrb[0].mxu0
      %1429 = vmatprep.mubr.bf16.mxu0 %v1364
      %1430 = vmatmul.mubr.bf16.gmra.mrb[0].mxu0 %v1363
      %v1431 = vpop.f32.mrb[0].mxu0
      %v1432 = vadd.f32 0.0, %v1431
      %v1433 = vpop.f32.mrb[0].mxu0
      %v1434 = vpop.f32.mrb[0].mxu0
      %v1435 = vadd.f32 0.0, %v1434
      %v1436 = vpop.f32.mrb[0].mxu0
      %1437 = vdwg.mxu0
      %v1438 = vpack.c.bf16 %v1411, %v1408
      %v1439 = vpack.c.bf16 %v1419, %v1416
      %v1440 = vpack.c.bf16 %v1427, %v1424
      %v1441 = vpack.c.bf16 %v1435, %v1432
      %s1442 = scalar_lea.vmem %s3, 4
      %v1443 = vld [vmem:[%s1442] sm:$0x3]
      %v1445 = vsel %vm1026, %v1438, 0
      %v1448 = vsel %vm1026, %v1439, 0
      %v1451 = vsel %vm1026, %v1440, 0
      %v1454 = vsel %vm1026, %v1441, 0
      %v1457 = vsel %vm1039, %v1443, 0
      %1459 = vmatprep.subr.bf16.mxu0 0
      %1460 = vmatpush1.bf16.msra.mxu0 %v1457
      %1461 = vmatprep.subr.bf16.mxu0 0
      %1462 = vmatpush1.bf16.msra.mxu0 0
      %1463 = vmatprep.subr.bf16.mxu0 0
      %1464 = vmatpush1.bf16.msra.mxu0 0
      %1465 = vmatprep.subr.bf16.mxu0 0
      %1466 = vmatpush1.bf16.msra.mxu0 0
      %1467 = vmatprep.subr.bf16.mxu0 0
      %1468 = vmatpush1.bf16.msra.mxu0 0
      %1469 = vmatprep.subr.bf16.mxu0 0
      %1470 = vmatpush1.bf16.msra.mxu0 0
      %1471 = vmatprep.subr.bf16.mxu0 0
      %1472 = vmatpush1.bf16.msra.mxu0 0
      %1473 = vmatprep.subr.bf16.mxu0 0
      %1474 = vmatpush1.bf16.msra.mxu0 0
      %1475 = vmatprep.subr.bf16.mxu0 0
      %1476 = vmatpush1.bf16.msra.mxu0 0
      %1477 = vmatprep.subr.bf16.mxu0 0
      %1478 = vmatpush1.bf16.msra.mxu0 0
      %1479 = vmatprep.subr.bf16.mxu0 0
      %1480 = vmatpush1.bf16.msra.mxu0 0
      %1481 = vmatprep.subr.bf16.mxu0 0
      %1482 = vmatpush1.bf16.msra.mxu0 0
      %1483 = vmatprep.subr.bf16.mxu0 0
      %1484 = vmatpush1.bf16.msra.mxu0 0
      %1485 = vmatprep.subr.bf16.mxu0 0
      %1486 = vmatpush1.bf16.msra.mxu0 0
      %1487 = vmatprep.subr.bf16.mxu0 0
      %1488 = vmatpush1.bf16.msra.mxu0 0
      %1489 = vmatprep.subr.bf16.mxu0 0
      %1490 = vmatpush1.bf16.msra.mxu0 0
      %1491 = vmatprep.mubr.bf16.mxu0 0
      %1492 = vmatmul.mubr.bf16.gmra.mrb[0].mxu0 %v1445
      %v1493 = vpop.f32.mrb[0].mxu0
      %v1494 = vadd.f32 0.0, %v1493
      %v1495 = vpop.f32.mrb[0].mxu0
      %v1496 = vpop.f32.mrb[0].mxu0
      %v1497 = vadd.f32 0.0, %v1496
      %v1498 = vpop.f32.mrb[0].mxu0
      %1499 = vmatprep.mubr.bf16.mxu0 0
      %1500 = vmatmul.mubr.bf16.gmra.mrb[0].mxu0 %v1448
      %v1501 = vpop.f32.mrb[0].mxu0
      %v1502 = vadd.f32 0.0, %v1501
      %v1503 = vpop.f32.mrb[0].mxu0
      %v1504 = vpop.f32.mrb[0].mxu0
      %v1505 = vadd.f32 0.0, %v1504
      %v1506 = vpop.f32.mrb[0].mxu0
      %1507 = vmatprep.mubr.bf16.mxu0 0
      %1508 = vmatmul.mubr.bf16.gmra.mrb[0].mxu0 %v1451
      %v1509 = vpop.f32.mrb[0].mxu0
      %v1510 = vadd.f32 0.0, %v1509
      %v1511 = vpop.f32.mrb[0].mxu0
      %v1512 = vpop.f32.mrb[0].mxu0
      %v1513 = vadd.f32 0.0, %v1512
      %v1514 = vpop.f32.mrb[0].mxu0
      %1515 = vmatprep.mubr.bf16.mxu0 0
      %1516 = vmatmul.mubr.bf16.gmra.mrb[0].mxu0 %v1454
      %v1517 = vpop.f32.mrb[0].mxu0
      %v1518 = vadd.f32 0.0, %v1517
      %v1519 = vpop.f32.mrb[0].mxu0
      %v1520 = vpop.f32.mrb[0].mxu0
      %v1521 = vadd.f32 0.0, %v1520
      %v1522 = vpop.f32.mrb[0].mxu0
      %1523 = vdwg.mxu0
      %v1524 = vadd.f32 %v1316, %v1494
      %v1525 = vadd.f32 %v1317, %v1497
      %v1526 = vadd.f32 %v1318, %v1502
      %v1527 = vadd.f32 %v1319, %v1505
      %v1528 = vadd.f32 %v1320, %v1510
      %v1529 = vadd.f32 %v1321, %v1513
      %v1530 = vadd.f32 %v1322, %v1518
      %v1531 = vadd.f32 %v1323, %v1521
      %s1532 = scalar_lea.vmem %s5, 192
      %v1533 = vld [vmem:[%s1532] sm:$0xff]
      %v1534 = vld [vmem:[%s1532 + $0x8] sm:$0xff]
      %v1535 = vld [vmem:[%s1532 + $0x10] sm:$0xff]
      %v1536 = vld [vmem:[%s1532 + $0x18] sm:$0xff]
      %v1537 = vld [vmem:[%s1532 + $0x20] sm:$0xff]
      %v1538 = vld [vmem:[%s1532 + $0x28] sm:$0xff]
      %v1539 = vld [vmem:[%s1532 + $0x30] sm:$0xff]
      %v1540 = vld [vmem:[%s1532 + $0x38] sm:$0xff]
      %v1549 = vunpack.c.l.b16 %v1533
      %v1550 = vunpack.c.h.b16 %v1533
      %v1551 = vunpack.c.l.b16 %v1534
      %v1552 = vunpack.c.h.b16 %v1534
      %v1553 = vunpack.c.l.b16 %v1535
      %v1554 = vunpack.c.h.b16 %v1535
      %v1555 = vunpack.c.l.b16 %v1536
      %v1556 = vunpack.c.h.b16 %v1536
      %v1557 = vunpack.c.l.b16 %v1537
      %v1558 = vunpack.c.h.b16 %v1537
      %v1559 = vunpack.c.l.b16 %v1538
      %v1560 = vunpack.c.h.b16 %v1538
      %v1561 = vunpack.c.l.b16 %v1539
      %v1562 = vunpack.c.h.b16 %v1539
      %v1563 = vunpack.c.l.b16 %v1540
      %v1564 = vunpack.c.h.b16 %v1540
      %v1565 = vpack.c.b16 %v1551, %v1549
      %v1566 = vpack.c.b16 %v1552, %v1550
      %v1567 = vpack.c.b16 %v1555, %v1553
      %v1568 = vpack.c.b16 %v1556, %v1554
      %v1569 = vpack.c.b16 %v1559, %v1557
      %v1570 = vpack.c.b16 %v1560, %v1558
      %v1571 = vpack.c.b16 %v1563, %v1561
      %v1572 = vpack.c.b16 %v1564, %v1562
      %1581 = vmatprep.subr.bf16.mxu0 0
      %1582 = vmatpush1.bf16.msra.mxu0 %v884
      %1583 = vmatprep.subr.bf16.mxu0 0
      %1584 = vmatpush1.bf16.msra.mxu0 %v885
      %1585 = vmatprep.subr.bf16.mxu0 0
      %1586 = vmatpush1.bf16.msra.mxu0 %v886
      %1587 = vmatprep.subr.bf16.mxu0 0
      %1588 = vmatpush1.bf16.msra.mxu0 %v887
      %1589 = vmatprep.subr.bf16.mxu0 0
      %1590 = vmatpush1.bf16.msra.mxu0 %v888
      %1591 = vmatprep.subr.bf16.mxu0 0
      %1592 = vmatpush1.bf16.msra.mxu0 %v889
      %1593 = vmatprep.subr.bf16.mxu0 0
      %1594 = vmatpush1.bf16.msra.mxu0 %v890
      %1595 = vmatprep.subr.bf16.mxu0 0
      %1596 = vmatpush1.bf16.msra.mxu0 %v891
      %1597 = vmatprep.subr.bf16.mxu0 0
      %1598 = vmatpush1.bf16.msra.mxu0 %v892
      %1599 = vmatprep.subr.bf16.mxu0 0
      %1600 = vmatpush1.bf16.msra.mxu0 %v893
      %1601 = vmatprep.subr.bf16.mxu0 0
      %1602 = vmatpush1.bf16.msra.mxu0 %v894
      %1603 = vmatprep.subr.bf16.mxu0 0
      %1604 = vmatpush1.bf16.msra.mxu0 %v895
      %1605 = vmatprep.subr.bf16.mxu0 0
      %1606 = vmatpush1.bf16.msra.mxu0 %v896
      %1607 = vmatprep.subr.bf16.mxu0 0
      %1608 = vmatpush1.bf16.msra.mxu0 %v897
      %1609 = vmatprep.subr.bf16.mxu0 0
      %1610 = vmatpush1.bf16.msra.mxu0 %v898
      %1611 = vmatprep.subr.bf16.mxu0 0
      %1612 = vmatpush1.bf16.msra.mxu0 %v899
      %1613 = vmatprep.mubr.bf16.mxu0 %v1566
      %1614 = vmatmul.mubr.bf16.gmra.mrb[0].mxu0 %v1565
      %v1615 = vpop.f32.mrb[0].mxu0
      %v1616 = vadd.f32 0.0, %v1615
      %v1617 = vpop.f32.mrb[0].mxu0
      %v1618 = vpop.f32.mrb[0].mxu0
      %v1619 = vadd.f32 0.0, %v1618
      %v1620 = vpop.f32.mrb[0].mxu0
      %1621 = vmatprep.mubr.bf16.mxu0 %v1568
      %1622 = vmatmul.mubr.bf16.gmra.mrb[0].mxu0 %v1567
      %v1623 = vpop.f32.mrb[0].mxu0
      %v1624 = vadd.f32 0.0, %v1623
      %v1625 = vpop.f32.mrb[0].mxu0
      %v1626 = vpop.f32.mrb[0].mxu0
      %v1627 = vadd.f32 0.0, %v1626
      %v1628 = vpop.f32.mrb[0].mxu0
      %1629 = vmatprep.mubr.bf16.mxu0 %v1570
      %1630 = vmatmul.mubr.bf16.gmra.mrb[0].mxu0 %v1569
      %v1631 = vpop.f32.mrb[0].mxu0
      %v1632 = vadd.f32 0.0, %v1631
      %v1633 = vpop.f32.mrb[0].mxu0
      %v1634 = vpop.f32.mrb[0].mxu0
      %v1635 = vadd.f32 0.0, %v1634
      %v1636 = vpop.f32.mrb[0].mxu0
      %1637 = vmatprep.mubr.bf16.mxu0 %v1572
      %1638 = vmatmul.mubr.bf16.gmra.mrb[0].mxu0 %v1571
      %v1639 = vpop.f32.mrb[0].mxu0
      %v1640 = vadd.f32 0.0, %v1639
      %v1641 = vpop.f32.mrb[0].mxu0
      %v1642 = vpop.f32.mrb[0].mxu0
      %v1643 = vadd.f32 0.0, %v1642
      %v1644 = vpop.f32.mrb[0].mxu0
      %1645 = vdwg.mxu0
      %v1646 = vpack.c.bf16 %v1619, %v1616
      %v1647 = vpack.c.bf16 %v1627, %v1624
      %v1648 = vpack.c.bf16 %v1635, %v1632
      %v1649 = vpack.c.bf16 %v1643, %v1640
      %s1650 = scalar_lea.vmem %s3, 6
      %v1651 = vld [vmem:[%s1650] sm:$0x3]
      %v1653 = vsel %vm1026, %v1646, 0
      %v1656 = vsel %vm1026, %v1647, 0
      %v1659 = vsel %vm1026, %v1648, 0
      %v1662 = vsel %vm1026, %v1649, 0
      %v1665 = vsel %vm1039, %v1651, 0
      %1667 = vmatprep.subr.bf16.mxu0 0
      %1668 = vmatpush1.bf16.msra.mxu0 %v1665
      %1669 = vmatprep.subr.bf16.mxu0 0
      %1670 = vmatpush1.bf16.msra.mxu0 0
      %1671 = vmatprep.subr.bf16.mxu0 0
      %1672 = vmatpush1.bf16.msra.mxu0 0
      %1673 = vmatprep.subr.bf16.mxu0 0
      %1674 = vmatpush1.bf16.msra.mxu0 0
      %1675 = vmatprep.subr.bf16.mxu0 0
      %1676 = vmatpush1.bf16.msra.mxu0 0
      %1677 = vmatprep.subr.bf16.mxu0 0
      %1678 = vmatpush1.bf16.msra.mxu0 0
      %1679 = vmatprep.subr.bf16.mxu0 0
      %1680 = vmatpush1.bf16.msra.mxu0 0
      %1681 = vmatprep.subr.bf16.mxu0 0
      %1682 = vmatpush1.bf16.msra.mxu0 0
      %1683 = vmatprep.subr.bf16.mxu0 0
      %1684 = vmatpush1.bf16.msra.mxu0 0
      %1685 = vmatprep.subr.bf16.mxu0 0
      %1686 = vmatpush1.bf16.msra.mxu0 0
      %1687 = vmatprep.subr.bf16.mxu0 0
      %1688 = vmatpush1.bf16.msra.mxu0 0
      %1689 = vmatprep.subr.bf16.mxu0 0
      %1690 = vmatpush1.bf16.msra.mxu0 0
      %1691 = vmatprep.subr.bf16.mxu0 0
      %1692 = vmatpush1.bf16.msra.mxu0 0
      %1693 = vmatprep.subr.bf16.mxu0 0
      %1694 = vmatpush1.bf16.msra.mxu0 0
      %1695 = vmatprep.subr.bf16.mxu0 0
      %1696 = vmatpush1.bf16.msra.mxu0 0
      %1697 = vmatprep.subr.bf16.mxu0 0
      %1698 = vmatpush1.bf16.msra.mxu0 0
      %1699 = vmatprep.mubr.bf16.mxu0 0
      %1700 = vmatmul.mubr.bf16.gmra.mrb[0].mxu0 %v1653
      %v1701 = vpop.f32.mrb[0].mxu0
      %v1702 = vadd.f32 0.0, %v1701
      %v1703 = vpop.f32.mrb[0].mxu0
      %v1704 = vpop.f32.mrb[0].mxu0
      %v1705 = vadd.f32 0.0, %v1704
      %v1706 = vpop.f32.mrb[0].mxu0
      %1707 = vmatprep.mubr.bf16.mxu0 0
      %1708 = vmatmul.mubr.bf16.gmra.mrb[0].mxu0 %v1656
      %v1709 = vpop.f32.mrb[0].mxu0
      %v1710 = vadd.f32 0.0, %v1709
      %v1711 = vpop.f32.mrb[0].mxu0
      %v1712 = vpop.f32.mrb[0].mxu0
      %v1713 = vadd.f32 0.0, %v1712
      %v1714 = vpop.f32.mrb[0].mxu0
      %1715 = vmatprep.mubr.bf16.mxu0 0
      %1716 = vmatmul.mubr.bf16.gmra.mrb[0].mxu0 %v1659
      %v1717 = vpop.f32.mrb[0].mxu0
      %v1718 = vadd.f32 0.0, %v1717
      %v1719 = vpop.f32.mrb[0].mxu0
      %v1720 = vpop.f32.mrb[0].mxu0
      %v1721 = vadd.f32 0.0, %v1720
      %v1722 = vpop.f32.mrb[0].mxu0
      %1723 = vmatprep.mubr.bf16.mxu0 0
      %1724 = vmatmul.mubr.bf16.gmra.mrb[0].mxu0 %v1662
      %v1725 = vpop.f32.mrb[0].mxu0
      %v1726 = vadd.f32 0.0, %v1725
      %v1727 = vpop.f32.mrb[0].mxu0
      %v1728 = vpop.f32.mrb[0].mxu0
      %v1729 = vadd.f32 0.0, %v1728
      %v1730 = vpop.f32.mrb[0].mxu0
      %1731 = vdwg.mxu0
      %v1732 = vadd.f32 %v1524, %v1702
      %v1733 = vadd.f32 %v1525, %v1705
      %v1734 = vadd.f32 %v1526, %v1710
      %v1735 = vadd.f32 %v1527, %v1713
      %v1736 = vadd.f32 %v1528, %v1718
      %v1737 = vadd.f32 %v1529, %v1721
      %v1738 = vadd.f32 %v1530, %v1726
      %v1739 = vadd.f32 %v1531, %v1729
      %s1740 = scalar_lea.vmem %s5, 256
      %v1741 = vld [vmem:[%s1740] sm:$0xff]
      %v1742 = vld [vmem:[%s1740 + $0x8] sm:$0xff]
      %v1743 = vld [vmem:[%s1740 + $0x10] sm:$0xff]
      %v1744 = vld [vmem:[%s1740 + $0x18] sm:$0xff]
      %v1745 = vld [vmem:[%s1740 + $0x20] sm:$0xff]
      %v1746 = vld [vmem:[%s1740 + $0x28] sm:$0xff]
      %v1747 = vld [vmem:[%s1740 + $0x30] sm:$0xff]
      %v1748 = vld [vmem:[%s1740 + $0x38] sm:$0xff]
      %v1757 = vunpack.c.l.b16 %v1741
      %v1758 = vunpack.c.h.b16 %v1741
      %v1759 = vunpack.c.l.b16 %v1742
      %v1760 = vunpack.c.h.b16 %v1742
      %v1761 = vunpack.c.l.b16 %v1743
      %v1762 = vunpack.c.h.b16 %v1743
      %v1763 = vunpack.c.l.b16 %v1744
      %v1764 = vunpack.c.h.b16 %v1744
      %v1765 = vunpack.c.l.b16 %v1745
      %v1766 = vunpack.c.h.b16 %v1745
      %v1767 = vunpack.c.l.b16 %v1746
      %v1768 = vunpack.c.h.b16 %v1746
      %v1769 = vunpack.c.l.b16 %v1747
      %v1770 = vunpack.c.h.b16 %v1747
      %v1771 = vunpack.c.l.b16 %v1748
      %v1772 = vunpack.c.h.b16 %v1748
      %v1773 = vpack.c.b16 %v1759, %v1757
      %v1774 = vpack.c.b16 %v1760, %v1758
      %v1775 = vpack.c.b16 %v1763, %v1761
      %v1776 = vpack.c.b16 %v1764, %v1762
      %v1777 = vpack.c.b16 %v1767, %v1765
      %v1778 = vpack.c.b16 %v1768, %v1766
      %v1779 = vpack.c.b16 %v1771, %v1769
      %v1780 = vpack.c.b16 %v1772, %v1770
      %1789 = vmatprep.subr.bf16.mxu0 0
      %1790 = vmatpush1.bf16.msra.mxu0 %v884
      %1791 = vmatprep.subr.bf16.mxu0 0
      %1792 = vmatpush1.bf16.msra.mxu0 %v885
      %1793 = vmatprep.subr.bf16.mxu0 0
      %1794 = vmatpush1.bf16.msra.mxu0 %v886
      %1795 = vmatprep.subr.bf16.mxu0 0
      %1796 = vmatpush1.bf16.msra.mxu0 %v887
      %1797 = vmatprep.subr.bf16.mxu0 0
      %1798 = vmatpush1.bf16.msra.mxu0 %v888
      %1799 = vmatprep.subr.bf16.mxu0 0
      %1800 = vmatpush1.bf16.msra.mxu0 %v889
      %1801 = vmatprep.subr.bf16.mxu0 0
      %1802 = vmatpush1.bf16.msra.mxu0 %v890
      %1803 = vmatprep.subr.bf16.mxu0 0
      %1804 = vmatpush1.bf16.msra.mxu0 %v891
      %1805 = vmatprep.subr.bf16.mxu0 0
      %1806 = vmatpush1.bf16.msra.mxu0 %v892
      %1807 = vmatprep.subr.bf16.mxu0 0
      %1808 = vmatpush1.bf16.msra.mxu0 %v893
      %1809 = vmatprep.subr.bf16.mxu0 0
      %1810 = vmatpush1.bf16.msra.mxu0 %v894
      %1811 = vmatprep.subr.bf16.mxu0 0
      %1812 = vmatpush1.bf16.msra.mxu0 %v895
      %1813 = vmatprep.subr.bf16.mxu0 0
      %1814 = vmatpush1.bf16.msra.mxu0 %v896
      %1815 = vmatprep.subr.bf16.mxu0 0
      %1816 = vmatpush1.bf16.msra.mxu0 %v897
      %1817 = vmatprep.subr.bf16.mxu0 0
      %1818 = vmatpush1.bf16.msra.mxu0 %v898
      %1819 = vmatprep.subr.bf16.mxu0 0
      %1820 = vmatpush1.bf16.msra.mxu0 %v899
      %1821 = vmatprep.mubr.bf16.mxu0 %v1774
      %1822 = vmatmul.mubr.bf16.gmra.mrb[0].mxu0 %v1773
      %v1823 = vpop.f32.mrb[0].mxu0
      %v1824 = vadd.f32 0.0, %v1823
      %v1825 = vpop.f32.mrb[0].mxu0
      %v1826 = vpop.f32.mrb[0].mxu0
      %v1827 = vadd.f32 0.0, %v1826
      %v1828 = vpop.f32.mrb[0].mxu0
      %1829 = vmatprep.mubr.bf16.mxu0 %v1776
      %1830 = vmatmul.mubr.bf16.gmra.mrb[0].mxu0 %v1775
      %v1831 = vpop.f32.mrb[0].mxu0
      %v1832 = vadd.f32 0.0, %v1831
      %v1833 = vpop.f32.mrb[0].mxu0
      %v1834 = vpop.f32.mrb[0].mxu0
      %v1835 = vadd.f32 0.0, %v1834
      %v1836 = vpop.f32.mrb[0].mxu0
      %1837 = vmatprep.mubr.bf16.mxu0 %v1778
      %1838 = vmatmul.mubr.bf16.gmra.mrb[0].mxu0 %v1777
      %v1839 = vpop.f32.mrb[0].mxu0
      %v1840 = vadd.f32 0.0, %v1839
      %v1841 = vpop.f32.mrb[0].mxu0
      %v1842 = vpop.f32.mrb[0].mxu0
      %v1843 = vadd.f32 0.0, %v1842
      %v1844 = vpop.f32.mrb[0].mxu0
      %1845 = vmatprep.mubr.bf16.mxu0 %v1780
      %1846 = vmatmul.mubr.bf16.gmra.mrb[0].mxu0 %v1779
      %v1847 = vpop.f32.mrb[0].mxu0
      %v1848 = vadd.f32 0.0, %v1847
      %v1849 = vpop.f32.mrb[0].mxu0
      %v1850 = vpop.f32.mrb[0].mxu0
      %v1851 = vadd.f32 0.0, %v1850
      %v1852 = vpop.f32.mrb[0].mxu0
      %1853 = vdwg.mxu0
      %v1854 = vpack.c.bf16 %v1827, %v1824
      %v1855 = vpack.c.bf16 %v1835, %v1832
      %v1856 = vpack.c.bf16 %v1843, %v1840
      %v1857 = vpack.c.bf16 %v1851, %v1848
      %s1858 = scalar_lea.vmem %s3, 8
      %v1859 = vld [vmem:[%s1858] sm:$0x3]
      %v1861 = vsel %vm1026, %v1854, 0
      %v1864 = vsel %vm1026, %v1855, 0
      %v1867 = vsel %vm1026, %v1856, 0
      %v1870 = vsel %vm1026, %v1857, 0
      %v1873 = vsel %vm1039, %v1859, 0
      %1875 = vmatprep.subr.bf16.mxu0 0
      %1876 = vmatpush1.bf16.msra.mxu0 %v1873
      %1877 = vmatprep.subr.bf16.mxu0 0
      %1878 = vmatpush1.bf16.msra.mxu0 0
      %1879 = vmatprep.subr.bf16.mxu0 0
      %1880 = vmatpush1.bf16.msra.mxu0 0
      %1881 = vmatprep.subr.bf16.mxu0 0
      %1882 = vmatpush1.bf16.msra.mxu0 0
      %1883 = vmatprep.subr.bf16.mxu0 0
      %1884 = vmatpush1.bf16.msra.mxu0 0
      %1885 = vmatprep.subr.bf16.mxu0 0
      %1886 = vmatpush1.bf16.msra.mxu0 0
      %1887 = vmatprep.subr.bf16.mxu0 0
      %1888 = vmatpush1.bf16.msra.mxu0 0
      %1889 = vmatprep.subr.bf16.mxu0 0
      %1890 = vmatpush1.bf16.msra.mxu0 0
      %1891 = vmatprep.subr.bf16.mxu0 0
      %1892 = vmatpush1.bf16.msra.mxu0 0
      %1893 = vmatprep.subr.bf16.mxu0 0
      %1894 = vmatpush1.bf16.msra.mxu0 0
      %1895 = vmatprep.subr.bf16.mxu0 0
      %1896 = vmatpush1.bf16.msra.mxu0 0
      %1897 = vmatprep.subr.bf16.mxu0 0
      %1898 = vmatpush1.bf16.msra.mxu0 0
      %1899 = vmatprep.subr.bf16.mxu0 0
      %1900 = vmatpush1.bf16.msra.mxu0 0
      %1901 = vmatprep.subr.bf16.mxu0 0
      %1902 = vmatpush1.bf16.msra.mxu0 0
      %1903 = vmatprep.subr.bf16.mxu0 0
      %1904 = vmatpush1.bf16.msra.mxu0 0
      %1905 = vmatprep.subr.bf16.mxu0 0
      %1906 = vmatpush1.bf16.msra.mxu0 0
      %1907 = vmatprep.mubr.bf16.mxu0 0
      %1908 = vmatmul.mubr.bf16.gmra.mrb[0].mxu0 %v1861
      %v1909 = vpop.f32.mrb[0].mxu0
      %v1910 = vadd.f32 0.0, %v1909
      %v1911 = vpop.f32.mrb[0].mxu0
      %v1912 = vpop.f32.mrb[0].mxu0
      %v1913 = vadd.f32 0.0, %v1912
      %v1914 = vpop.f32.mrb[0].mxu0
      %1915 = vmatprep.mubr.bf16.mxu0 0
      %1916 = vmatmul.mubr.bf16.gmra.mrb[0].mxu0 %v1864
      %v1917 = vpop.f32.mrb[0].mxu0
      %v1918 = vadd.f32 0.0, %v1917
      %v1919 = vpop.f32.mrb[0].mxu0
      %v1920 = vpop.f32.mrb[0].mxu0
      %v1921 = vadd.f32 0.0, %v1920
      %v1922 = vpop.f32.mrb[0].mxu0
      %1923 = vmatprep.mubr.bf16.mxu0 0
      %1924 = vmatmul.mubr.bf16.gmra.mrb[0].mxu0 %v1867
      %v1925 = vpop.f32.mrb[0].mxu0
      %v1926 = vadd.f32 0.0, %v1925
      %v1927 = vpop.f32.mrb[0].mxu0
      %v1928 = vpop.f32.mrb[0].mxu0
      %v1929 = vadd.f32 0.0, %v1928
      %v1930 = vpop.f32.mrb[0].mxu0
      %1931 = vmatprep.mubr.bf16.mxu0 0
      %1932 = vmatmul.mubr.bf16.gmra.mrb[0].mxu0 %v1870
      %v1933 = vpop.f32.mrb[0].mxu0
      %v1934 = vadd.f32 0.0, %v1933
      %v1935 = vpop.f32.mrb[0].mxu0
      %v1936 = vpop.f32.mrb[0].mxu0
      %v1937 = vadd.f32 0.0, %v1936
      %v1938 = vpop.f32.mrb[0].mxu0
      %1939 = vdwg.mxu0
      %v1940 = vadd.f32 %v1732, %v1910
      %v1941 = vadd.f32 %v1733, %v1913
      %v1942 = vadd.f32 %v1734, %v1918
      %v1943 = vadd.f32 %v1735, %v1921
      %v1944 = vadd.f32 %v1736, %v1926
      %v1945 = vadd.f32 %v1737, %v1929
      %v1946 = vadd.f32 %v1738, %v1934
      %v1947 = vadd.f32 %v1739, %v1937
      %s1948 = scalar_lea.vmem %s5, 320
      %v1949 = vld [vmem:[%s1948] sm:$0xff]
      %v1950 = vld [vmem:[%s1948 + $0x8] sm:$0xff]
      %v1951 = vld [vmem:[%s1948 + $0x10] sm:$0xff]
      %v1952 = vld [vmem:[%s1948 + $0x18] sm:$0xff]
      %v1953 = vld [vmem:[%s1948 + $0x20] sm:$0xff]
      %v1954 = vld [vmem:[%s1948 + $0x28] sm:$0xff]
      %v1955 = vld [vmem:[%s1948 + $0x30] sm:$0xff]
      %v1956 = vld [vmem:[%s1948 + $0x38] sm:$0xff]
      %v1965 = vunpack.c.l.b16 %v1949
      %v1966 = vunpack.c.h.b16 %v1949
      %v1967 = vunpack.c.l.b16 %v1950
      %v1968 = vunpack.c.h.b16 %v1950
      %v1969 = vunpack.c.l.b16 %v1951
      %v1970 = vunpack.c.h.b16 %v1951
      %v1971 = vunpack.c.l.b16 %v1952
      %v1972 = vunpack.c.h.b16 %v1952
      %v1973 = vunpack.c.l.b16 %v1953
      %v1974 = vunpack.c.h.b16 %v1953
      %v1975 = vunpack.c.l.b16 %v1954
      %v1976 = vunpack.c.h.b16 %v1954
      %v1977 = vunpack.c.l.b16 %v1955
      %v1978 = vunpack.c.h.b16 %v1955
      %v1979 = vunpack.c.l.b16 %v1956
      %v1980 = vunpack.c.h.b16 %v1956
      %v1981 = vpack.c.b16 %v1967, %v1965
      %v1982 = vpack.c.b16 %v1968, %v1966
      %v1983 = vpack.c.b16 %v1971, %v1969
      %v1984 = vpack.c.b16 %v1972, %v1970
      %v1985 = vpack.c.b16 %v1975, %v1973
      %v1986 = vpack.c.b16 %v1976, %v1974
      %v1987 = vpack.c.b16 %v1979, %v1977
      %v1988 = vpack.c.b16 %v1980, %v1978
      %1997 = vmatprep.subr.bf16.mxu0 0
      %1998 = vmatpush1.bf16.msra.mxu0 %v884
      %1999 = vmatprep.subr.bf16.mxu0 0
      %2000 = vmatpush1.bf16.msra.mxu0 %v885
      %2001 = vmatprep.subr.bf16.mxu0 0
      %2002 = vmatpush1.bf16.msra.mxu0 %v886
      %2003 = vmatprep.subr.bf16.mxu0 0
      %2004 = vmatpush1.bf16.msra.mxu0 %v887
      %2005 = vmatprep.subr.bf16.mxu0 0
      %2006 = vmatpush1.bf16.msra.mxu0 %v888
      %2007 = vmatprep.subr.bf16.mxu0 0
      %2008 = vmatpush1.bf16.msra.mxu0 %v889
      %2009 = vmatprep.subr.bf16.mxu0 0
      %2010 = vmatpush1.bf16.msra.mxu0 %v890
      %2011 = vmatprep.subr.bf16.mxu0 0
      %2012 = vmatpush1.bf16.msra.mxu0 %v891
      %2013 = vmatprep.subr.bf16.mxu0 0
      %2014 = vmatpush1.bf16.msra.mxu0 %v892
      %2015 = vmatprep.subr.bf16.mxu0 0
      %2016 = vmatpush1.bf16.msra.mxu0 %v893
      %2017 = vmatprep.subr.bf16.mxu0 0
      %2018 = vmatpush1.bf16.msra.mxu0 %v894
      %2019 = vmatprep.subr.bf16.mxu0 0
      %2020 = vmatpush1.bf16.msra.mxu0 %v895
      %2021 = vmatprep.subr.bf16.mxu0 0
      %2022 = vmatpush1.bf16.msra.mxu0 %v896
      %2023 = vmatprep.subr.bf16.mxu0 0
      %2024 = vmatpush1.bf16.msra.mxu0 %v897
      %2025 = vmatprep.subr.bf16.mxu0 0
      %2026 = vmatpush1.bf16.msra.mxu0 %v898
      %2027 = vmatprep.subr.bf16.mxu0 0
      %2028 = vmatpush1.bf16.msra.mxu0 %v899
      %2029 = vmatprep.mubr.bf16.mxu0 %v1982
      %2030 = vmatmul.mubr.bf16.gmra.mrb[0].mxu0 %v1981
      %v2031 = vpop.f32.mrb[0].mxu0
      %v2032 = vadd.f32 0.0, %v2031
      %v2033 = vpop.f32.mrb[0].mxu0
      %v2034 = vpop.f32.mrb[0].mxu0
      %v2035 = vadd.f32 0.0, %v2034
      %v2036 = vpop.f32.mrb[0].mxu0
      %2037 = vmatprep.mubr.bf16.mxu0 %v1984
      %2038 = vmatmul.mubr.bf16.gmra.mrb[0].mxu0 %v1983
      %v2039 = vpop.f32.mrb[0].mxu0
      %v2040 = vadd.f32 0.0, %v2039
      %v2041 = vpop.f32.mrb[0].mxu0
      %v2042 = vpop.f32.mrb[0].mxu0
      %v2043 = vadd.f32 0.0, %v2042
      %v2044 = vpop.f32.mrb[0].mxu0
      %2045 = vmatprep.mubr.bf16.mxu0 %v1986
      %2046 = vmatmul.mubr.bf16.gmra.mrb[0].mxu0 %v1985
      %v2047 = vpop.f32.mrb[0].mxu0
      %v2048 = vadd.f32 0.0, %v2047
      %v2049 = vpop.f32.mrb[0].mxu0
      %v2050 = vpop.f32.mrb[0].mxu0
      %v2051 = vadd.f32 0.0, %v2050
      %v2052 = vpop.f32.mrb[0].mxu0
      %2053 = vmatprep.mubr.bf16.mxu0 %v1988
      %2054 = vmatmul.mubr.bf16.gmra.mrb[0].mxu0 %v1987
      %v2055 = vpop.f32.mrb[0].mxu0
      %v2056 = vadd.f32 0.0, %v2055
      %v2057 = vpop.f32.mrb[0].mxu0
      %v2058 = vpop.f32.mrb[0].mxu0
      %v2059 = vadd.f32 0.0, %v2058
      %v2060 = vpop.f32.mrb[0].mxu0
      %2061 = vdwg.mxu0
      %v2062 = vpack.c.bf16 %v2035, %v2032
      %v2063 = vpack.c.bf16 %v2043, %v2040
      %v2064 = vpack.c.bf16 %v2051, %v2048
      %v2065 = vpack.c.bf16 %v2059, %v2056
      %s2066 = scalar_lea.vmem %s3, 10
      %v2067 = vld [vmem:[%s2066] sm:$0x3]
      %v2069 = vsel %vm1026, %v2062, 0
      %v2072 = vsel %vm1026, %v2063, 0
      %v2075 = vsel %vm1026, %v2064, 0
      %v2078 = vsel %vm1026, %v2065, 0
      %v2081 = vsel %vm1039, %v2067, 0
      %2083 = vmatprep.subr.bf16.mxu0 0
      %2084 = vmatpush1.bf16.msra.mxu0 %v2081
      %2085 = vmatprep.subr.bf16.mxu0 0
      %2086 = vmatpush1.bf16.msra.mxu0 0
      %2087 = vmatprep.subr.bf16.mxu0 0
      %2088 = vmatpush1.bf16.msra.mxu0 0
      %2089 = vmatprep.subr.bf16.mxu0 0
      %2090 = vmatpush1.bf16.msra.mxu0 0
      %2091 = vmatprep.subr.bf16.mxu0 0
      %2092 = vmatpush1.bf16.msra.mxu0 0
      %2093 = vmatprep.subr.bf16.mxu0 0
      %2094 = vmatpush1.bf16.msra.mxu0 0
      %2095 = vmatprep.subr.bf16.mxu0 0
      %2096 = vmatpush1.bf16.msra.mxu0 0
      %2097 = vmatprep.subr.bf16.mxu0 0
      %2098 = vmatpush1.bf16.msra.mxu0 0
      %2099 = vmatprep.subr.bf16.mxu0 0
      %2100 = vmatpush1.bf16.msra.mxu0 0
      %2101 = vmatprep.subr.bf16.mxu0 0
      %2102 = vmatpush1.bf16.msra.mxu0 0
      %2103 = vmatprep.subr.bf16.mxu0 0
      %2104 = vmatpush1.bf16.msra.mxu0 0
      %2105 = vmatprep.subr.bf16.mxu0 0
      %2106 = vmatpush1.bf16.msra.mxu0 0
      %2107 = vmatprep.subr.bf16.mxu0 0
      %2108 = vmatpush1.bf16.msra.mxu0 0
      %2109 = vmatprep.subr.bf16.mxu0 0
      %2110 = vmatpush1.bf16.msra.mxu0 0
      %2111 = vmatprep.subr.bf16.mxu0 0
      %2112 = vmatpush1.bf16.msra.mxu0 0
      %2113 = vmatprep.subr.bf16.mxu0 0
      %2114 = vmatpush1.bf16.msra.mxu0 0
      %2115 = vmatprep.mubr.bf16.mxu0 0
      %2116 = vmatmul.mubr.bf16.gmra.mrb[0].mxu0 %v2069
      %v2117 = vpop.f32.mrb[0].mxu0
      %v2118 = vadd.f32 0.0, %v2117
      %v2119 = vpop.f32.mrb[0].mxu0
      %v2120 = vpop.f32.mrb[0].mxu0
      %v2121 = vadd.f32 0.0, %v2120
      %v2122 = vpop.f32.mrb[0].mxu0
      %2123 = vmatprep.mubr.bf16.mxu0 0
      %2124 = vmatmul.mubr.bf16.gmra.mrb[0].mxu0 %v2072
      %v2125 = vpop.f32.mrb[0].mxu0
      %v2126 = vadd.f32 0.0, %v2125
      %v2127 = vpop.f32.mrb[0].mxu0
      %v2128 = vpop.f32.mrb[0].mxu0
      %v2129 = vadd.f32 0.0, %v2128
      %v2130 = vpop.f32.mrb[0].mxu0
      %2131 = vmatprep.mubr.bf16.mxu0 0
      %2132 = vmatmul.mubr.bf16.gmra.mrb[0].mxu0 %v2075
      %v2133 = vpop.f32.mrb[0].mxu0
      %v2134 = vadd.f32 0.0, %v2133
      %v2135 = vpop.f32.mrb[0].mxu0
      %v2136 = vpop.f32.mrb[0].mxu0
      %v2137 = vadd.f32 0.0, %v2136
      %v2138 = vpop.f32.mrb[0].mxu0
      %2139 = vmatprep.mubr.bf16.mxu0 0
      %2140 = vmatmul.mubr.bf16.gmra.mrb[0].mxu0 %v2078
      %v2141 = vpop.f32.mrb[0].mxu0
      %v2142 = vadd.f32 0.0, %v2141
      %v2143 = vpop.f32.mrb[0].mxu0
      %v2144 = vpop.f32.mrb[0].mxu0
      %v2145 = vadd.f32 0.0, %v2144
      %v2146 = vpop.f32.mrb[0].mxu0
      %2147 = vdwg.mxu0
      %v2148 = vadd.f32 %v1940, %v2118
      %v2149 = vadd.f32 %v1941, %v2121
      %v2150 = vadd.f32 %v1942, %v2126
      %v2151 = vadd.f32 %v1943, %v2129
      %v2152 = vadd.f32 %v1944, %v2134
      %v2153 = vadd.f32 %v1945, %v2137
      %v2154 = vadd.f32 %v1946, %v2142
      %v2155 = vadd.f32 %v1947, %v2145
      %s2156 = scalar_lea.vmem %s5, 384
      %v2157 = vld [vmem:[%s2156] sm:$0xff]
      %v2158 = vld [vmem:[%s2156 + $0x8] sm:$0xff]
      %v2159 = vld [vmem:[%s2156 + $0x10] sm:$0xff]
      %v2160 = vld [vmem:[%s2156 + $0x18] sm:$0xff]
      %v2161 = vld [vmem:[%s2156 + $0x20] sm:$0xff]
      %v2162 = vld [vmem:[%s2156 + $0x28] sm:$0xff]
      %v2163 = vld [vmem:[%s2156 + $0x30] sm:$0xff]
      %v2164 = vld [vmem:[%s2156 + $0x38] sm:$0xff]
      %v2173 = vunpack.c.l.b16 %v2157
      %v2174 = vunpack.c.h.b16 %v2157
      %v2175 = vunpack.c.l.b16 %v2158
      %v2176 = vunpack.c.h.b16 %v2158
      %v2177 = vunpack.c.l.b16 %v2159
      %v2178 = vunpack.c.h.b16 %v2159
      %v2179 = vunpack.c.l.b16 %v2160
      %v2180 = vunpack.c.h.b16 %v2160
      %v2181 = vunpack.c.l.b16 %v2161
      %v2182 = vunpack.c.h.b16 %v2161
      %v2183 = vunpack.c.l.b16 %v2162
      %v2184 = vunpack.c.h.b16 %v2162
      %v2185 = vunpack.c.l.b16 %v2163
      %v2186 = vunpack.c.h.b16 %v2163
      %v2187 = vunpack.c.l.b16 %v2164
      %v2188 = vunpack.c.h.b16 %v2164
      %v2189 = vpack.c.b16 %v2175, %v2173
      %v2190 = vpack.c.b16 %v2176, %v2174
      %v2191 = vpack.c.b16 %v2179, %v2177
      %v2192 = vpack.c.b16 %v2180, %v2178
      %v2193 = vpack.c.b16 %v2183, %v2181
      %v2194 = vpack.c.b16 %v2184, %v2182
      %v2195 = vpack.c.b16 %v2187, %v2185
      %v2196 = vpack.c.b16 %v2188, %v2186
      %2205 = vmatprep.subr.bf16.mxu0 0
      %2206 = vmatpush1.bf16.msra.mxu0 %v884
      %2207 = vmatprep.subr.bf16.mxu0 0
      %2208 = vmatpush1.bf16.msra.mxu0 %v885
      %2209 = vmatprep.subr.bf16.mxu0 0
      %2210 = vmatpush1.bf16.msra.mxu0 %v886
      %2211 = vmatprep.subr.bf16.mxu0 0
      %2212 = vmatpush1.bf16.msra.mxu0 %v887
      %2213 = vmatprep.subr.bf16.mxu0 0
      %2214 = vmatpush1.bf16.msra.mxu0 %v888
      %2215 = vmatprep.subr.bf16.mxu0 0
      %2216 = vmatpush1.bf16.msra.mxu0 %v889
      %2217 = vmatprep.subr.bf16.mxu0 0
      %2218 = vmatpush1.bf16.msra.mxu0 %v890
      %2219 = vmatprep.subr.bf16.mxu0 0
      %2220 = vmatpush1.bf16.msra.mxu0 %v891
      %2221 = vmatprep.subr.bf16.mxu0 0
      %2222 = vmatpush1.bf16.msra.mxu0 %v892
      %2223 = vmatprep.subr.bf16.mxu0 0
      %2224 = vmatpush1.bf16.msra.mxu0 %v893
      %2225 = vmatprep.subr.bf16.mxu0 0
      %2226 = vmatpush1.bf16.msra.mxu0 %v894
      %2227 = vmatprep.subr.bf16.mxu0 0
      %2228 = vmatpush1.bf16.msra.mxu0 %v895
      %2229 = vmatprep.subr.bf16.mxu0 0
      %2230 = vmatpush1.bf16.msra.mxu0 %v896
      %2231 = vmatprep.subr.bf16.mxu0 0
      %2232 = vmatpush1.bf16.msra.mxu0 %v897
      %2233 = vmatprep.subr.bf16.mxu0 0
      %2234 = vmatpush1.bf16.msra.mxu0 %v898
      %2235 = vmatprep.subr.bf16.mxu0 0
      %2236 = vmatpush1.bf16.msra.mxu0 %v899
      %2237 = vmatprep.mubr.bf16.mxu0 %v2190
      %2238 = vmatmul.mubr.bf16.gmra.mrb[0].mxu0 %v2189
      %v2239 = vpop.f32.mrb[0].mxu0
      %v2240 = vadd.f32 0.0, %v2239
      %v2241 = vpop.f32.mrb[0].mxu0
      %v2242 = vpop.f32.mrb[0].mxu0
      %v2243 = vadd.f32 0.0, %v2242
      %v2244 = vpop.f32.mrb[0].mxu0
      %2245 = vmatprep.mubr.bf16.mxu0 %v2192
      %2246 = vmatmul.mubr.bf16.gmra.mrb[0].mxu0 %v2191
      %v2247 = vpop.f32.mrb[0].mxu0
      %v2248 = vadd.f32 0.0, %v2247
      %v2249 = vpop.f32.mrb[0].mxu0
      %v2250 = vpop.f32.mrb[0].mxu0
      %v2251 = vadd.f32 0.0, %v2250
      %v2252 = vpop.f32.mrb[0].mxu0
      %2253 = vmatprep.mubr.bf16.mxu0 %v2194
      %2254 = vmatmul.mubr.bf16.gmra.mrb[0].mxu0 %v2193
      %v2255 = vpop.f32.mrb[0].mxu0
      %v2256 = vadd.f32 0.0, %v2255
      %v2257 = vpop.f32.mrb[0].mxu0
      %v2258 = vpop.f32.mrb[0].mxu0
      %v2259 = vadd.f32 0.0, %v2258
      %v2260 = vpop.f32.mrb[0].mxu0
      %2261 = vmatprep.mubr.bf16.mxu0 %v2196
      %2262 = vmatmul.mubr.bf16.gmra.mrb[0].mxu0 %v2195
      %v2263 = vpop.f32.mrb[0].mxu0
      %v2264 = vadd.f32 0.0, %v2263
      %v2265 = vpop.f32.mrb[0].mxu0
      %v2266 = vpop.f32.mrb[0].mxu0
      %v2267 = vadd.f32 0.0, %v2266
      %v2268 = vpop.f32.mrb[0].mxu0
      %2269 = vdwg.mxu0
      %v2270 = vpack.c.bf16 %v2243, %v2240
      %v2271 = vpack.c.bf16 %v2251, %v2248
      %v2272 = vpack.c.bf16 %v2259, %v2256
      %v2273 = vpack.c.bf16 %v2267, %v2264
      %s2274 = scalar_lea.vmem %s3, 12
      %v2275 = vld [vmem:[%s2274] sm:$0x3]
      %v2277 = vsel %vm1026, %v2270, 0
      %v2280 = vsel %vm1026, %v2271, 0
      %v2283 = vsel %vm1026, %v2272, 0
      %v2286 = vsel %vm1026, %v2273, 0
      %v2289 = vsel %vm1039, %v2275, 0
      %2291 = vmatprep.subr.bf16.mxu0 0
      %2292 = vmatpush1.bf16.msra.mxu0 %v2289
      %2293 = vmatprep.subr.bf16.mxu0 0
      %2294 = vmatpush1.bf16.msra.mxu0 0
      %2295 = vmatprep.subr.bf16.mxu0 0
      %2296 = vmatpush1.bf16.msra.mxu0 0
      %2297 = vmatprep.subr.bf16.mxu0 0
      %2298 = vmatpush1.bf16.msra.mxu0 0
      %2299 = vmatprep.subr.bf16.mxu0 0
      %2300 = vmatpush1.bf16.msra.mxu0 0
      %2301 = vmatprep.subr.bf16.mxu0 0
      %2302 = vmatpush1.bf16.msra.mxu0 0
      %2303 = vmatprep.subr.bf16.mxu0 0
      %2304 = vmatpush1.bf16.msra.mxu0 0
      %2305 = vmatprep.subr.bf16.mxu0 0
      %2306 = vmatpush1.bf16.msra.mxu0 0
      %2307 = vmatprep.subr.bf16.mxu0 0
      %2308 = vmatpush1.bf16.msra.mxu0 0
      %2309 = vmatprep.subr.bf16.mxu0 0
      %2310 = vmatpush1.bf16.msra.mxu0 0
      %2311 = vmatprep.subr.bf16.mxu0 0
      %2312 = vmatpush1.bf16.msra.mxu0 0
      %2313 = vmatprep.subr.bf16.mxu0 0
      %2314 = vmatpush1.bf16.msra.mxu0 0
      %2315 = vmatprep.subr.bf16.mxu0 0
      %2316 = vmatpush1.bf16.msra.mxu0 0
      %2317 = vmatprep.subr.bf16.mxu0 0
      %2318 = vmatpush1.bf16.msra.mxu0 0
      %2319 = vmatprep.subr.bf16.mxu0 0
      %2320 = vmatpush1.bf16.msra.mxu0 0
      %2321 = vmatprep.subr.bf16.mxu0 0
      %2322 = vmatpush1.bf16.msra.mxu0 0
      %2323 = vmatprep.mubr.bf16.mxu0 0
      %2324 = vmatmul.mubr.bf16.gmra.mrb[0].mxu0 %v2277
      %v2325 = vpop.f32.mrb[0].mxu0
      %v2326 = vadd.f32 0.0, %v2325
      %v2327 = vpop.f32.mrb[0].mxu0
      %v2328 = vpop.f32.mrb[0].mxu0
      %v2329 = vadd.f32 0.0, %v2328
      %v2330 = vpop.f32.mrb[0].mxu0
      %2331 = vmatprep.mubr.bf16.mxu0 0
      %2332 = vmatmul.mubr.bf16.gmra.mrb[0].mxu0 %v2280
      %v2333 = vpop.f32.mrb[0].mxu0
      %v2334 = vadd.f32 0.0, %v2333
      %v2335 = vpop.f32.mrb[0].mxu0
      %v2336 = vpop.f32.mrb[0].mxu0
      %v2337 = vadd.f32 0.0, %v2336
      %v2338 = vpop.f32.mrb[0].mxu0
      %2339 = vmatprep.mubr.bf16.mxu0 0
      %2340 = vmatmul.mubr.bf16.gmra.mrb[0].mxu0 %v2283
      %v2341 = vpop.f32.mrb[0].mxu0
      %v2342 = vadd.f32 0.0, %v2341
      %v2343 = vpop.f32.mrb[0].mxu0
      %v2344 = vpop.f32.mrb[0].mxu0
      %v2345 = vadd.f32 0.0, %v2344
      %v2346 = vpop.f32.mrb[0].mxu0
      %2347 = vmatprep.mubr.bf16.mxu0 0
      %2348 = vmatmul.mubr.bf16.gmra.mrb[0].mxu0 %v2286
      %v2349 = vpop.f32.mrb[0].mxu0
      %v2350 = vadd.f32 0.0, %v2349
      %v2351 = vpop.f32.mrb[0].mxu0
      %v2352 = vpop.f32.mrb[0].mxu0
      %v2353 = vadd.f32 0.0, %v2352
      %v2354 = vpop.f32.mrb[0].mxu0
      %2355 = vdwg.mxu0
      %v2356 = vadd.f32 %v2148, %v2326
      %v2357 = vadd.f32 %v2149, %v2329
      %v2358 = vadd.f32 %v2150, %v2334
      %v2359 = vadd.f32 %v2151, %v2337
      %v2360 = vadd.f32 %v2152, %v2342
      %v2361 = vadd.f32 %v2153, %v2345
      %v2362 = vadd.f32 %v2154, %v2350
      %v2363 = vadd.f32 %v2155, %v2353
      %s2364 = scalar_lea.vmem %s5, 448
      %v2365 = vld [vmem:[%s2364] sm:$0xff]
      %v2366 = vld [vmem:[%s2364 + $0x8] sm:$0xff]
      %v2367 = vld [vmem:[%s2364 + $0x10] sm:$0xff]
      %v2368 = vld [vmem:[%s2364 + $0x18] sm:$0xff]
      %v2369 = vld [vmem:[%s2364 + $0x20] sm:$0xff]
      %v2370 = vld [vmem:[%s2364 + $0x28] sm:$0xff]
      %v2371 = vld [vmem:[%s2364 + $0x30] sm:$0xff]
      %v2372 = vld [vmem:[%s2364 + $0x38] sm:$0xff]
      %v2381 = vunpack.c.l.b16 %v2365
      %v2382 = vunpack.c.h.b16 %v2365
      %v2383 = vunpack.c.l.b16 %v2366
      %v2384 = vunpack.c.h.b16 %v2366
      %v2385 = vunpack.c.l.b16 %v2367
      %v2386 = vunpack.c.h.b16 %v2367
      %v2387 = vunpack.c.l.b16 %v2368
      %v2388 = vunpack.c.h.b16 %v2368
      %v2389 = vunpack.c.l.b16 %v2369
      %v2390 = vunpack.c.h.b16 %v2369
      %v2391 = vunpack.c.l.b16 %v2370
      %v2392 = vunpack.c.h.b16 %v2370
      %v2393 = vunpack.c.l.b16 %v2371
      %v2394 = vunpack.c.h.b16 %v2371
      %v2395 = vunpack.c.l.b16 %v2372
      %v2396 = vunpack.c.h.b16 %v2372
      %v2397 = vpack.c.b16 %v2383, %v2381
      %v2398 = vpack.c.b16 %v2384, %v2382
      %v2399 = vpack.c.b16 %v2387, %v2385
      %v2400 = vpack.c.b16 %v2388, %v2386
      %v2401 = vpack.c.b16 %v2391, %v2389
      %v2402 = vpack.c.b16 %v2392, %v2390
      %v2403 = vpack.c.b16 %v2395, %v2393
      %v2404 = vpack.c.b16 %v2396, %v2394
      %2413 = vmatprep.subr.bf16.mxu0 0
      %2414 = vmatpush1.bf16.msra.mxu0 %v884
      %2415 = vmatprep.subr.bf16.mxu0 0
      %2416 = vmatpush1.bf16.msra.mxu0 %v885
      %2417 = vmatprep.subr.bf16.mxu0 0
      %2418 = vmatpush1.bf16.msra.mxu0 %v886
      %2419 = vmatprep.subr.bf16.mxu0 0
      %2420 = vmatpush1.bf16.msra.mxu0 %v887
      %2421 = vmatprep.subr.bf16.mxu0 0
      %2422 = vmatpush1.bf16.msra.mxu0 %v888
      %2423 = vmatprep.subr.bf16.mxu0 0
      %2424 = vmatpush1.bf16.msra.mxu0 %v889
      %2425 = vmatprep.subr.bf16.mxu0 0
      %2426 = vmatpush1.bf16.msra.mxu0 %v890
      %2427 = vmatprep.subr.bf16.mxu0 0
      %2428 = vmatpush1.bf16.msra.mxu0 %v891
      %2429 = vmatprep.subr.bf16.mxu0 0
      %2430 = vmatpush1.bf16.msra.mxu0 %v892
      %2431 = vmatprep.subr.bf16.mxu0 0
      %2432 = vmatpush1.bf16.msra.mxu0 %v893
      %2433 = vmatprep.subr.bf16.mxu0 0
      %2434 = vmatpush1.bf16.msra.mxu0 %v894
      %2435 = vmatprep.subr.bf16.mxu0 0
      %2436 = vmatpush1.bf16.msra.mxu0 %v895
      %2437 = vmatprep.subr.bf16.mxu0 0
      %2438 = vmatpush1.bf16.msra.mxu0 %v896
      %2439 = vmatprep.subr.bf16.mxu0 0
      %2440 = vmatpush1.bf16.msra.mxu0 %v897
      %2441 = vmatprep.subr.bf16.mxu0 0
      %2442 = vmatpush1.bf16.msra.mxu0 %v898
      %2443 = vmatprep.subr.bf16.mxu0 0
      %2444 = vmatpush1.bf16.msra.mxu0 %v899
      %2445 = vmatprep.mubr.bf16.mxu0 %v2398
      %2446 = vmatmul.mubr.bf16.gmra.mrb[0].mxu0 %v2397
      %v2447 = vpop.f32.mrb[0].mxu0
      %v2448 = vadd.f32 0.0, %v2447
      %v2449 = vpop.f32.mrb[0].mxu0
      %v2450 = vpop.f32.mrb[0].mxu0
      %v2451 = vadd.f32 0.0, %v2450
      %v2452 = vpop.f32.mrb[0].mxu0
      %2453 = vmatprep.mubr.bf16.mxu0 %v2400
      %2454 = vmatmul.mubr.bf16.gmra.mrb[0].mxu0 %v2399
      %v2455 = vpop.f32.mrb[0].mxu0
      %v2456 = vadd.f32 0.0, %v2455
      %v2457 = vpop.f32.mrb[0].mxu0
      %v2458 = vpop.f32.mrb[0].mxu0
      %v2459 = vadd.f32 0.0, %v2458
      %v2460 = vpop.f32.mrb[0].mxu0
      %2461 = vmatprep.mubr.bf16.mxu0 %v2402
      %2462 = vmatmul.mubr.bf16.gmra.mrb[0].mxu0 %v2401
      %v2463 = vpop.f32.mrb[0].mxu0
      %v2464 = vadd.f32 0.0, %v2463
      %v2465 = vpop.f32.mrb[0].mxu0
      %v2466 = vpop.f32.mrb[0].mxu0
      %v2467 = vadd.f32 0.0, %v2466
      %v2468 = vpop.f32.mrb[0].mxu0
      %2469 = vmatprep.mubr.bf16.mxu0 %v2404
      %2470 = vmatmul.mubr.bf16.gmra.mrb[0].mxu0 %v2403
      %v2471 = vpop.f32.mrb[0].mxu0
      %v2472 = vadd.f32 0.0, %v2471
      %v2473 = vpop.f32.mrb[0].mxu0
      %v2474 = vpop.f32.mrb[0].mxu0
      %v2475 = vadd.f32 0.0, %v2474
      %v2476 = vpop.f32.mrb[0].mxu0
      %2477 = vdwg.mxu0
      %v2478 = vpack.c.bf16 %v2451, %v2448
      %v2479 = vpack.c.bf16 %v2459, %v2456
      %v2480 = vpack.c.bf16 %v2467, %v2464
      %v2481 = vpack.c.bf16 %v2475, %v2472
      %s2482 = scalar_lea.vmem %s3, 14
      %v2483 = vld [vmem:[%s2482] sm:$0x3]
      %v2485 = vsel %vm1026, %v2478, 0
      %v2488 = vsel %vm1026, %v2479, 0
      %v2491 = vsel %vm1026, %v2480, 0
      %v2494 = vsel %vm1026, %v2481, 0
      %v2497 = vsel %vm1039, %v2483, 0
      %2499 = vmatprep.subr.bf16.mxu0 0
      %2500 = vmatpush1.bf16.msra.mxu0 %v2497
      %2501 = vmatprep.subr.bf16.mxu0 0
      %2502 = vmatpush1.bf16.msra.mxu0 0
      %2503 = vmatprep.subr.bf16.mxu0 0
      %2504 = vmatpush1.bf16.msra.mxu0 0
      %2505 = vmatprep.subr.bf16.mxu0 0
      %2506 = vmatpush1.bf16.msra.mxu0 0
      %2507 = vmatprep.subr.bf16.mxu0 0
      %2508 = vmatpush1.bf16.msra.mxu0 0
      %2509 = vmatprep.subr.bf16.mxu0 0
      %2510 = vmatpush1.bf16.msra.mxu0 0
      %2511 = vmatprep.subr.bf16.mxu0 0
      %2512 = vmatpush1.bf16.msra.mxu0 0
      %2513 = vmatprep.subr.bf16.mxu0 0
      %2514 = vmatpush1.bf16.msra.mxu0 0
      %2515 = vmatprep.subr.bf16.mxu0 0
      %2516 = vmatpush1.bf16.msra.mxu0 0
      %2517 = vmatprep.subr.bf16.mxu0 0
      %2518 = vmatpush1.bf16.msra.mxu0 0
      %2519 = vmatprep.subr.bf16.mxu0 0
      %2520 = vmatpush1.bf16.msra.mxu0 0
      %2521 = vmatprep.subr.bf16.mxu0 0
      %2522 = vmatpush1.bf16.msra.mxu0 0
      %2523 = vmatprep.subr.bf16.mxu0 0
      %2524 = vmatpush1.bf16.msra.mxu0 0
      %2525 = vmatprep.subr.bf16.mxu0 0
      %2526 = vmatpush1.bf16.msra.mxu0 0
      %2527 = vmatprep.subr.bf16.mxu0 0
      %2528 = vmatpush1.bf16.msra.mxu0 0
      %2529 = vmatprep.subr.bf16.mxu0 0
      %2530 = vmatpush1.bf16.msra.mxu0 0
      %2531 = vmatprep.mubr.bf16.mxu0 0
      %2532 = vmatmul.mubr.bf16.gmra.mrb[0].mxu0 %v2485
      %v2533 = vpop.f32.mrb[0].mxu0
      %v2534 = vadd.f32 0.0, %v2533
      %v2535 = vpop.f32.mrb[0].mxu0
      %v2536 = vpop.f32.mrb[0].mxu0
      %v2537 = vadd.f32 0.0, %v2536
      %v2538 = vpop.f32.mrb[0].mxu0
      %2539 = vmatprep.mubr.bf16.mxu0 0
      %2540 = vmatmul.mubr.bf16.gmra.mrb[0].mxu0 %v2488
      %v2541 = vpop.f32.mrb[0].mxu0
      %v2542 = vadd.f32 0.0, %v2541
      %v2543 = vpop.f32.mrb[0].mxu0
      %v2544 = vpop.f32.mrb[0].mxu0
      %v2545 = vadd.f32 0.0, %v2544
      %v2546 = vpop.f32.mrb[0].mxu0
      %2547 = vmatprep.mubr.bf16.mxu0 0
      %2548 = vmatmul.mubr.bf16.gmra.mrb[0].mxu0 %v2491
      %v2549 = vpop.f32.mrb[0].mxu0
      %v2550 = vadd.f32 0.0, %v2549
      %v2551 = vpop.f32.mrb[0].mxu0
      %v2552 = vpop.f32.mrb[0].mxu0
      %v2553 = vadd.f32 0.0, %v2552
      %v2554 = vpop.f32.mrb[0].mxu0
      %2555 = vmatprep.mubr.bf16.mxu0 0
      %2556 = vmatmul.mubr.bf16.gmra.mrb[0].mxu0 %v2494
      %v2557 = vpop.f32.mrb[0].mxu0
      %v2558 = vadd.f32 0.0, %v2557
      %v2559 = vpop.f32.mrb[0].mxu0
      %v2560 = vpop.f32.mrb[0].mxu0
      %v2561 = vadd.f32 0.0, %v2560
      %v2562 = vpop.f32.mrb[0].mxu0
      %2563 = vdwg.mxu0
      %v2564 = vadd.f32 %v2356, %v2534
      %v2565 = vadd.f32 %v2357, %v2537
      %v2566 = vadd.f32 %v2358, %v2542
      %v2567 = vadd.f32 %v2359, %v2545
      %v2568 = vadd.f32 %v2360, %v2550
      %v2569 = vadd.f32 %v2361, %v2553
      %v2570 = vadd.f32 %v2362, %v2558
      %v2571 = vadd.f32 %v2363, %v2561
      %s2572 = scalar_lea.vmem %s5, 512
      %v2573 = vld [vmem:[%s2572] sm:$0xff]
      %v2574 = vld [vmem:[%s2572 + $0x8] sm:$0xff]
      %v2575 = vld [vmem:[%s2572 + $0x10] sm:$0xff]
      %v2576 = vld [vmem:[%s2572 + $0x18] sm:$0xff]
      %v2577 = vld [vmem:[%s2572 + $0x20] sm:$0xff]
      %v2578 = vld [vmem:[%s2572 + $0x28] sm:$0xff]
      %v2579 = vld [vmem:[%s2572 + $0x30] sm:$0xff]
      %v2580 = vld [vmem:[%s2572 + $0x38] sm:$0xff]
      %v2589 = vunpack.c.l.b16 %v2573
      %v2590 = vunpack.c.h.b16 %v2573
      %v2591 = vunpack.c.l.b16 %v2574
      %v2592 = vunpack.c.h.b16 %v2574
      %v2593 = vunpack.c.l.b16 %v2575
      %v2594 = vunpack.c.h.b16 %v2575
      %v2595 = vunpack.c.l.b16 %v2576
      %v2596 = vunpack.c.h.b16 %v2576
      %v2597 = vunpack.c.l.b16 %v2577
      %v2598 = vunpack.c.h.b16 %v2577
      %v2599 = vunpack.c.l.b16 %v2578
      %v2600 = vunpack.c.h.b16 %v2578
      %v2601 = vunpack.c.l.b16 %v2579
      %v2602 = vunpack.c.h.b16 %v2579
      %v2603 = vunpack.c.l.b16 %v2580
      %v2604 = vunpack.c.h.b16 %v2580
      %v2605 = vpack.c.b16 %v2591, %v2589
      %v2606 = vpack.c.b16 %v2592, %v2590
      %v2607 = vpack.c.b16 %v2595, %v2593
      %v2608 = vpack.c.b16 %v2596, %v2594
      %v2609 = vpack.c.b16 %v2599, %v2597
      %v2610 = vpack.c.b16 %v2600, %v2598
      %v2611 = vpack.c.b16 %v2603, %v2601
      %v2612 = vpack.c.b16 %v2604, %v2602
      %2621 = vmatprep.subr.bf16.mxu0 0
      %2622 = vmatpush1.bf16.msra.mxu0 %v884
      %2623 = vmatprep.subr.bf16.mxu0 0
      %2624 = vmatpush1.bf16.msra.mxu0 %v885
      %2625 = vmatprep.subr.bf16.mxu0 0
      %2626 = vmatpush1.bf16.msra.mxu0 %v886
      %2627 = vmatprep.subr.bf16.mxu0 0
      %2628 = vmatpush1.bf16.msra.mxu0 %v887
      %2629 = vmatprep.subr.bf16.mxu0 0
      %2630 = vmatpush1.bf16.msra.mxu0 %v888
      %2631 = vmatprep.subr.bf16.mxu0 0
      %2632 = vmatpush1.bf16.msra.mxu0 %v889
      %2633 = vmatprep.subr.bf16.mxu0 0
      %2634 = vmatpush1.bf16.msra.mxu0 %v890
      %2635 = vmatprep.subr.bf16.mxu0 0
      %2636 = vmatpush1.bf16.msra.mxu0 %v891
      %2637 = vmatprep.subr.bf16.mxu0 0
      %2638 = vmatpush1.bf16.msra.mxu0 %v892
      %2639 = vmatprep.subr.bf16.mxu0 0
      %2640 = vmatpush1.bf16.msra.mxu0 %v893
      %2641 = vmatprep.subr.bf16.mxu0 0
      %2642 = vmatpush1.bf16.msra.mxu0 %v894
      %2643 = vmatprep.subr.bf16.mxu0 0
      %2644 = vmatpush1.bf16.msra.mxu0 %v895
      %2645 = vmatprep.subr.bf16.mxu0 0
      %2646 = vmatpush1.bf16.msra.mxu0 %v896
      %2647 = vmatprep.subr.bf16.mxu0 0
      %2648 = vmatpush1.bf16.msra.mxu0 %v897
      %2649 = vmatprep.subr.bf16.mxu0 0
      %2650 = vmatpush1.bf16.msra.mxu0 %v898
      %2651 = vmatprep.subr.bf16.mxu0 0
      %2652 = vmatpush1.bf16.msra.mxu0 %v899
      %2653 = vmatprep.mubr.bf16.mxu0 %v2606
      %2654 = vmatmul.mubr.bf16.gmra.mrb[0].mxu0 %v2605
      %v2655 = vpop.f32.mrb[0].mxu0
      %v2656 = vadd.f32 0.0, %v2655
      %v2657 = vpop.f32.mrb[0].mxu0
      %v2658 = vpop.f32.mrb[0].mxu0
      %v2659 = vadd.f32 0.0, %v2658
      %v2660 = vpop.f32.mrb[0].mxu0
      %2661 = vmatprep.mubr.bf16.mxu0 %v2608
      %2662 = vmatmul.mubr.bf16.gmra.mrb[0].mxu0 %v2607
      %v2663 = vpop.f32.mrb[0].mxu0
      %v2664 = vadd.f32 0.0, %v2663
      %v2665 = vpop.f32.mrb[0].mxu0
      %v2666 = vpop.f32.mrb[0].mxu0
      %v2667 = vadd.f32 0.0, %v2666
      %v2668 = vpop.f32.mrb[0].mxu0
      %2669 = vmatprep.mubr.bf16.mxu0 %v2610
      %2670 = vmatmul.mubr.bf16.gmra.mrb[0].mxu0 %v2609
      %v2671 = vpop.f32.mrb[0].mxu0
      %v2672 = vadd.f32 0.0, %v2671
      %v2673 = vpop.f32.mrb[0].mxu0
      %v2674 = vpop.f32.mrb[0].mxu0
      %v2675 = vadd.f32 0.0, %v2674
      %v2676 = vpop.f32.mrb[0].mxu0
      %2677 = vmatprep.mubr.bf16.mxu0 %v2612
      %2678 = vmatmul.mubr.bf16.gmra.mrb[0].mxu0 %v2611
      %v2679 = vpop.f32.mrb[0].mxu0
      %v2680 = vadd.f32 0.0, %v2679
      %v2681 = vpop.f32.mrb[0].mxu0
      %v2682 = vpop.f32.mrb[0].mxu0
      %v2683 = vadd.f32 0.0, %v2682
      %v2684 = vpop.f32.mrb[0].mxu0
      %2685 = vdwg.mxu0
      %v2686 = vpack.c.bf16 %v2659, %v2656
      %v2687 = vpack.c.bf16 %v2667, %v2664
      %v2688 = vpack.c.bf16 %v2675, %v2672
      %v2689 = vpack.c.bf16 %v2683, %v2680
      %s2690 = scalar_lea.vmem %s3, 16
      %v2691 = vld [vmem:[%s2690] sm:$0x3]
      %v2693 = vsel %vm1026, %v2686, 0
      %v2696 = vsel %vm1026, %v2687, 0
      %v2699 = vsel %vm1026, %v2688, 0
      %v2702 = vsel %vm1026, %v2689, 0
      %v2705 = vsel %vm1039, %v2691, 0
      %2707 = vmatprep.subr.bf16.mxu0 0
      %2708 = vmatpush1.bf16.msra.mxu0 %v2705
      %2709 = vmatprep.subr.bf16.mxu0 0
      %2710 = vmatpush1.bf16.msra.mxu0 0
      %2711 = vmatprep.subr.bf16.mxu0 0
      %2712 = vmatpush1.bf16.msra.mxu0 0
      %2713 = vmatprep.subr.bf16.mxu0 0
      %2714 = vmatpush1.bf16.msra.mxu0 0
      %2715 = vmatprep.subr.bf16.mxu0 0
      %2716 = vmatpush1.bf16.msra.mxu0 0
      %2717 = vmatprep.subr.bf16.mxu0 0
      %2718 = vmatpush1.bf16.msra.mxu0 0
      %2719 = vmatprep.subr.bf16.mxu0 0
      %2720 = vmatpush1.bf16.msra.mxu0 0
      %2721 = vmatprep.subr.bf16.mxu0 0
      %2722 = vmatpush1.bf16.msra.mxu0 0
      %2723 = vmatprep.subr.bf16.mxu0 0
      %2724 = vmatpush1.bf16.msra.mxu0 0
      %2725 = vmatprep.subr.bf16.mxu0 0
      %2726 = vmatpush1.bf16.msra.mxu0 0
      %2727 = vmatprep.subr.bf16.mxu0 0
      %2728 = vmatpush1.bf16.msra.mxu0 0
      %2729 = vmatprep.subr.bf16.mxu0 0
      %2730 = vmatpush1.bf16.msra.mxu0 0
      %2731 = vmatprep.subr.bf16.mxu0 0
      %2732 = vmatpush1.bf16.msra.mxu0 0
      %2733 = vmatprep.subr.bf16.mxu0 0
      %2734 = vmatpush1.bf16.msra.mxu0 0
      %2735 = vmatprep.subr.bf16.mxu0 0
      %2736 = vmatpush1.bf16.msra.mxu0 0
      %2737 = vmatprep.subr.bf16.mxu0 0
      %2738 = vmatpush1.bf16.msra.mxu0 0
      %2739 = vmatprep.mubr.bf16.mxu0 0
      %2740 = vmatmul.mubr.bf16.gmra.mrb[0].mxu0 %v2693
      %v2741 = vpop.f32.mrb[0].mxu0
      %v2742 = vadd.f32 0.0, %v2741
      %v2743 = vpop.f32.mrb[0].mxu0
      %v2744 = vpop.f32.mrb[0].mxu0
      %v2745 = vadd.f32 0.0, %v2744
      %v2746 = vpop.f32.mrb[0].mxu0
      %2747 = vmatprep.mubr.bf16.mxu0 0
      %2748 = vmatmul.mubr.bf16.gmra.mrb[0].mxu0 %v2696
      %v2749 = vpop.f32.mrb[0].mxu0
      %v2750 = vadd.f32 0.0, %v2749
      %v2751 = vpop.f32.mrb[0].mxu0
      %v2752 = vpop.f32.mrb[0].mxu0
      %v2753 = vadd.f32 0.0, %v2752
      %v2754 = vpop.f32.mrb[0].mxu0
      %2755 = vmatprep.mubr.bf16.mxu0 0
      %2756 = vmatmul.mubr.bf16.gmra.mrb[0].mxu0 %v2699
      %v2757 = vpop.f32.mrb[0].mxu0
      %v2758 = vadd.f32 0.0, %v2757
      %v2759 = vpop.f32.mrb[0].mxu0
      %v2760 = vpop.f32.mrb[0].mxu0
      %v2761 = vadd.f32 0.0, %v2760
      %v2762 = vpop.f32.mrb[0].mxu0
      %2763 = vmatprep.mubr.bf16.mxu0 0
      %2764 = vmatmul.mubr.bf16.gmra.mrb[0].mxu0 %v2702
      %v2765 = vpop.f32.mrb[0].mxu0
      %v2766 = vadd.f32 0.0, %v2765
      %v2767 = vpop.f32.mrb[0].mxu0
      %v2768 = vpop.f32.mrb[0].mxu0
      %v2769 = vadd.f32 0.0, %v2768
      %v2770 = vpop.f32.mrb[0].mxu0
      %2771 = vdwg.mxu0
      %v2772 = vadd.f32 %v2564, %v2742
      %v2773 = vadd.f32 %v2565, %v2745
      %v2774 = vadd.f32 %v2566, %v2750
      %v2775 = vadd.f32 %v2567, %v2753
      %v2776 = vadd.f32 %v2568, %v2758
      %v2777 = vadd.f32 %v2569, %v2761
      %v2778 = vadd.f32 %v2570, %v2766
      %v2779 = vadd.f32 %v2571, %v2769
      %vm2780 = vcmask 64512
      %v2781 = vsel %vm2780, %v2772, 0.0
      %v2782 = vsel %vm2780, %v2773, 0.0
      %v2783 = vadd.f32 %v2781, %v2782
      %v2784 = vsel %vm2780, %v2774, 0.0
      %v2785 = vadd.f32 %v2783, %v2784
      %v2786 = vsel %vm2780, %v2775, 0.0
      %v2787 = vadd.f32 %v2785, %v2786
      %v2788 = vsel %vm2780, %v2776, 0.0
      %v2789 = vadd.f32 %v2787, %v2788
      %v2790 = vsel %vm2780, %v2777, 0.0
      %v2791 = vadd.f32 %v2789, %v2790
      %v2792 = vsel %vm2780, %v2778, 0.0
      %v2793 = vadd.f32 %v2791, %v2792
      %v2794 = vsel %vm2780, %v2779, 0.0
      %v2795 = vadd.f32 %v2793, %v2794
      %v2796 = vrot.slane %v2795, 4
      %v2797 = vadd.f32 %v2795, %v2796
      %v2798 = vrot.slane %v2797, 2
      %v2799 = vadd.f32 %v2797, %v2798
      %v2800 = vrot.slane %v2799, 1
      %v2801 = vadd.f32 %v2799, %v2800
      %v2802 = vrcp.pop 64.0
      %v2803 = vmul.f32 %v2801, %v2802
      %v2804 = vsub.f32 %v2772, %v2803
      %v2805 = vsub.f32 %v2773, %v2803
      %v2806 = vsub.f32 %v2774, %v2803
      %v2807 = vsub.f32 %v2775, %v2803
      %v2808 = vsub.f32 %v2776, %v2803
      %v2809 = vsub.f32 %v2777, %v2803
      %v2810 = vsub.f32 %v2778, %v2803
      %v2811 = vsub.f32 %v2779, %v2803
      %v2812 = vmul.f32 %v2804, %v2804
      %v2813 = vmul.f32 %v2805, %v2805
      %v2814 = vmul.f32 %v2806, %v2806
      %v2815 = vmul.f32 %v2807, %v2807
      %v2816 = vmul.f32 %v2808, %v2808
      %v2817 = vmul.f32 %v2809, %v2809
      %v2818 = vmul.f32 %v2810, %v2810
      %v2819 = vmul.f32 %v2811, %v2811
      %v2820 = vsel %vm2780, %v2812, 0.0
      %v2821 = vsel %vm2780, %v2813, 0.0
      %v2822 = vadd.f32 %v2820, %v2821
      %v2823 = vsel %vm2780, %v2814, 0.0
      %v2824 = vadd.f32 %v2822, %v2823
      %v2825 = vsel %vm2780, %v2815, 0.0
      %v2826 = vadd.f32 %v2824, %v2825
      %v2827 = vsel %vm2780, %v2816, 0.0
      %v2828 = vadd.f32 %v2826, %v2827
      %v2829 = vsel %vm2780, %v2817, 0.0
      %v2830 = vadd.f32 %v2828, %v2829
      %v2831 = vsel %vm2780, %v2818, 0.0
      %v2832 = vadd.f32 %v2830, %v2831
      %v2833 = vsel %vm2780, %v2819, 0.0
      %v2834 = vadd.f32 %v2832, %v2833
      %v2835 = vrot.slane %v2834, 4
      %v2836 = vadd.f32 %v2834, %v2835
      %v2837 = vrot.slane %v2836, 2
      %v2838 = vadd.f32 %v2836, %v2837
      %v2839 = vrot.slane %v2838, 1
      %v2840 = vadd.f32 %v2838, %v2839
      %v2841 = vmul.f32 %v2840, %v2802
      %v2842 = vadd.f32 %v2841, 1e-05
      %v2843 = vrsqrt.pop %v2842
      %v2844 = vmul.f32 %v2804, %v2843
      %v2845 = vmul.f32 %v2805, %v2843
      %v2846 = vmul.f32 %v2806, %v2843
      %v2847 = vmul.f32 %v2807, %v2843
      %v2848 = vmul.f32 %v2808, %v2843
      %v2849 = vmul.f32 %v2809, %v2843
      %v2850 = vmul.f32 %v2810, %v2843
      %v2851 = vmul.f32 %v2811, %v2843
      %v2852 = vmul.f32 %v2844, 0.2
      %v2853 = vmul.f32 %v2845, 0.2
      %v2854 = vmul.f32 %v2846, 0.2
      %v2855 = vmul.f32 %v2847, 0.2
      %v2856 = vmul.f32 %v2848, 0.2
      %v2857 = vmul.f32 %v2849, 0.2
      %v2858 = vmul.f32 %v2850, 0.2
      %v2859 = vmul.f32 %v2851, 0.2
      %v2860 = vmax.f32 %v2844, %v2852
      %v2861 = vmax.f32 %v2845, %v2853
      %v2862 = vmax.f32 %v2846, %v2854
      %v2863 = vmax.f32 %v2847, %v2855
      %v2864 = vmax.f32 %v2848, %v2856
      %v2865 = vmax.f32 %v2849, %v2857
      %v2866 = vmax.f32 %v2850, %v2858
      %v2867 = vmax.f32 %v2851, %v2859
      %v2868 = vpack.c.bf16 %v2861, %v2860
      %v2869 = vpack.c.bf16 %v2863, %v2862
      %v2870 = vpack.c.bf16 %v2865, %v2864
      %v2871 = vpack.c.bf16 %v2867, %v2866
      %v2872 = vld [vmem:[%s7] sm:$0x1]
      %v2874 = vlaneseq
      %v2875 = vshrl.u32 %v2874, 7
      %v2876 = vsub.s32 0, %v2875
      %v2877 = vrot.slane %v2872, %v2876
      %v2879 = vadd.f32 %v2877, 0.0
      %v2880 = vld [vmem:[%s8] sm:$0xf]
      %v2881 = vld [vmem:[%s8 + $0x4] sm:$0xf]
      %v2884 = vunpack.c.l.b16 %v2880
      %v2885 = vunpack.c.l.b16 %v2881
      %v2886 = vpack.c.b16 %v2885, %v2884
      %vm2887 = vcmask 523264
      %v2889 = vsel %vm2887, %v2886, 0
      %2891 = vmatprep.subr.bf16.mxu0 0
      %2892 = vmatpush1.bf16.msra.mxu0 %v2868
      %2893 = vmatprep.subr.bf16.mxu0 0
      %2894 = vmatpush1.bf16.msra.mxu0 %v2869
      %2895 = vmatprep.subr.bf16.mxu0 0
      %2896 = vmatpush1.bf16.msra.mxu0 %v2870
      %2897 = vmatprep.subr.bf16.mxu0 0
      %2898 = vmatpush1.bf16.msra.mxu0 %v2871
      %2899 = vmatprep.subr.bf16.mxu0 0
      %2900 = vmatpush1.bf16.msra.mxu0 0
      %2901 = vmatprep.subr.bf16.mxu0 0
      %2902 = vmatpush1.bf16.msra.mxu0 0
      %2903 = vmatprep.subr.bf16.mxu0 0
      %2904 = vmatpush1.bf16.msra.mxu0 0
      %2905 = vmatprep.subr.bf16.mxu0 0
      %2906 = vmatpush1.bf16.msra.mxu0 0
      %2907 = vmatprep.subr.bf16.mxu0 0
      %2908 = vmatpush1.bf16.msra.mxu0 0
      %2909 = vmatprep.subr.bf16.mxu0 0
      %2910 = vmatpush1.bf16.msra.mxu0 0
      %2911 = vmatprep.subr.bf16.mxu0 0
      %2912 = vmatpush1.bf16.msra.mxu0 0
      %2913 = vmatprep.subr.bf16.mxu0 0
      %2914 = vmatpush1.bf16.msra.mxu0 0
      %2915 = vmatprep.subr.bf16.mxu0 0
      %2916 = vmatpush1.bf16.msra.mxu0 0
      %2917 = vmatprep.subr.bf16.mxu0 0
      %2918 = vmatpush1.bf16.msra.mxu0 0
      %2919 = vmatprep.subr.bf16.mxu0 0
      %2920 = vmatpush1.bf16.msra.mxu0 0
      %2921 = vmatprep.subr.bf16.mxu0 0
      %2922 = vmatpush1.bf16.msra.mxu0 0
      %2923 = vmatprep.mubr.bf16.mxu0 0
      %2924 = vmatmul.mubr.bf16.gmra.mrb[0].mxu0 %v2889
      %v2925 = vpop.f32.mrb[0].mxu0
      %v2926 = vadd.f32 0.0, %v2925
      %v2927 = vpop.f32.mrb[0].mxu0
      %v2928 = vpop.f32.mrb[0].mxu0
      %v2929 = vadd.f32 0.0, %v2928
      %v2930 = vpop.f32.mrb[0].mxu0
      %2931 = vdwg.mxu0
      %v2932 = vpack.c.bf16 %v2929, %v2926
      %v2933 = vld [vmem:[%s6] sm:$0xf]
      %v2935 = vsel %vm2780, %v2932, 0
      %vm2937 = vcmask 1043456
      %v2939 = vsel %vm2937, %v2933, 0
      %2941 = vmatprep.subr.bf16.mxu0 0
      %2942 = vmatpush1.bf16.msra.mxu0 %v2939
      %2943 = vmatprep.subr.bf16.mxu0 0
      %2944 = vmatpush1.bf16.msra.mxu0 0
      %2945 = vmatprep.subr.bf16.mxu0 0
      %2946 = vmatpush1.bf16.msra.mxu0 0
      %2947 = vmatprep.subr.bf16.mxu0 0
      %2948 = vmatpush1.bf16.msra.mxu0 0
      %2949 = vmatprep.subr.bf16.mxu0 0
      %2950 = vmatpush1.bf16.msra.mxu0 0
      %2951 = vmatprep.subr.bf16.mxu0 0
      %2952 = vmatpush1.bf16.msra.mxu0 0
      %2953 = vmatprep.subr.bf16.mxu0 0
      %2954 = vmatpush1.bf16.msra.mxu0 0
      %2955 = vmatprep.subr.bf16.mxu0 0
      %2956 = vmatpush1.bf16.msra.mxu0 0
      %2957 = vmatprep.subr.bf16.mxu0 0
      %2958 = vmatpush1.bf16.msra.mxu0 0
      %2959 = vmatprep.subr.bf16.mxu0 0
      %2960 = vmatpush1.bf16.msra.mxu0 0
      %2961 = vmatprep.subr.bf16.mxu0 0
      %2962 = vmatpush1.bf16.msra.mxu0 0
      %2963 = vmatprep.subr.bf16.mxu0 0
      %2964 = vmatpush1.bf16.msra.mxu0 0
      %2965 = vmatprep.subr.bf16.mxu0 0
      %2966 = vmatpush1.bf16.msra.mxu0 0
      %2967 = vmatprep.subr.bf16.mxu0 0
      %2968 = vmatpush1.bf16.msra.mxu0 0
      %2969 = vmatprep.subr.bf16.mxu0 0
      %2970 = vmatpush1.bf16.msra.mxu0 0
      %2971 = vmatprep.subr.bf16.mxu0 0
      %2972 = vmatpush1.bf16.msra.mxu0 0
      %2973 = vmatprep.mubr.bf16.mxu0 0
      %2974 = vmatmul.mubr.bf16.gmra.mrb[0].mxu0 %v2935
      %v2975 = vpop.f32.mrb[0].mxu0
      %v2976 = vadd.f32 0.0, %v2975
      %v2977 = vpop.f32.mrb[0].mxu0
      %v2978 = vpop.f32.mrb[0].mxu0
      %v2979 = vadd.f32 0.0, %v2978
      %v2980 = vpop.f32.mrb[0].mxu0
      %2981 = vdwg.mxu0
      %v2982 = vadd.f32 %v2879, %v2976
      %v2983 = vadd.f32 %v2879, %v2979
      %s2984 = scalar_lea.vmem %s8, 8
      %v2985 = vld [vmem:[%s2984] sm:$0xf]
      %v2986 = vld [vmem:[%s2984 + $0x4] sm:$0xf]
      %v2989 = vunpack.c.l.b16 %v2985
      %v2990 = vunpack.c.l.b16 %v2986
      %v2991 = vpack.c.b16 %v2990, %v2989
      %v2993 = vsel %vm2887, %v2991, 0
      %2995 = vmatprep.subr.bf16.mxu0 0
      %2996 = vmatpush1.bf16.msra.mxu0 %v2868
      %2997 = vmatprep.subr.bf16.mxu0 0
      %2998 = vmatpush1.bf16.msra.mxu0 %v2869
      %2999 = vmatprep.subr.bf16.mxu0 0
      %3000 = vmatpush1.bf16.msra.mxu0 %v2870
      %3001 = vmatprep.subr.bf16.mxu0 0
      %3002 = vmatpush1.bf16.msra.mxu0 %v2871
      %3003 = vmatprep.subr.bf16.mxu0 0
      %3004 = vmatpush1.bf16.msra.mxu0 0
      %3005 = vmatprep.subr.bf16.mxu0 0
      %3006 = vmatpush1.bf16.msra.mxu0 0
      %3007 = vmatprep.subr.bf16.mxu0 0
      %3008 = vmatpush1.bf16.msra.mxu0 0
      %3009 = vmatprep.subr.bf16.mxu0 0
      %3010 = vmatpush1.bf16.msra.mxu0 0
      %3011 = vmatprep.subr.bf16.mxu0 0
      %3012 = vmatpush1.bf16.msra.mxu0 0
      %3013 = vmatprep.subr.bf16.mxu0 0
      %3014 = vmatpush1.bf16.msra.mxu0 0
      %3015 = vmatprep.subr.bf16.mxu0 0
      %3016 = vmatpush1.bf16.msra.mxu0 0
      %3017 = vmatprep.subr.bf16.mxu0 0
      %3018 = vmatpush1.bf16.msra.mxu0 0
      %3019 = vmatprep.subr.bf16.mxu0 0
      %3020 = vmatpush1.bf16.msra.mxu0 0
      %3021 = vmatprep.subr.bf16.mxu0 0
      %3022 = vmatpush1.bf16.msra.mxu0 0
      %3023 = vmatprep.subr.bf16.mxu0 0
      %3024 = vmatpush1.bf16.msra.mxu0 0
      %3025 = vmatprep.subr.bf16.mxu0 0
      %3026 = vmatpush1.bf16.msra.mxu0 0
      %3027 = vmatprep.mubr.bf16.mxu0 0
      %3028 = vmatmul.mubr.bf16.gmra.mrb[0].mxu0 %v2993
      %v3029 = vpop.f32.mrb[0].mxu0
      %v3030 = vadd.f32 0.0, %v3029
      %v3031 = vpop.f32.mrb[0].mxu0
      %v3032 = vpop.f32.mrb[0].mxu0
      %v3033 = vadd.f32 0.0, %v3032
      %v3034 = vpop.f32.mrb[0].mxu0
      %3035 = vdwg.mxu0
      %v3036 = vpack.c.bf16 %v3033, %v3030
      %s3037 = scalar_lea.vmem %s6, 4
      %v3038 = vld [vmem:[%s3037] sm:$0xf]
      %v3040 = vsel %vm2780, %v3036, 0
      %v3043 = vsel %vm2937, %v3038, 0
      %3045 = vmatprep.subr.bf16.mxu0 0
      %3046 = vmatpush1.bf16.msra.mxu0 %v3043
      %3047 = vmatprep.subr.bf16.mxu0 0
      %3048 = vmatpush1.bf16.msra.mxu0 0
      %3049 = vmatprep.subr.bf16.mxu0 0
      %3050 = vmatpush1.bf16.msra.mxu0 0
      %3051 = vmatprep.subr.bf16.mxu0 0
      %3052 = vmatpush1.bf16.msra.mxu0 0
      %3053 = vmatprep.subr.bf16.mxu0 0
      %3054 = vmatpush1.bf16.msra.mxu0 0
      %3055 = vmatprep.subr.bf16.mxu0 0
      %3056 = vmatpush1.bf16.msra.mxu0 0
      %3057 = vmatprep.subr.bf16.mxu0 0
      %3058 = vmatpush1.bf16.msra.mxu0 0
      %3059 = vmatprep.subr.bf16.mxu0 0
      %3060 = vmatpush1.bf16.msra.mxu0 0
      %3061 = vmatprep.subr.bf16.mxu0 0
      %3062 = vmatpush1.bf16.msra.mxu0 0
      %3063 = vmatprep.subr.bf16.mxu0 0
      %3064 = vmatpush1.bf16.msra.mxu0 0
      %3065 = vmatprep.subr.bf16.mxu0 0
      %3066 = vmatpush1.bf16.msra.mxu0 0
      %3067 = vmatprep.subr.bf16.mxu0 0
      %3068 = vmatpush1.bf16.msra.mxu0 0
      %3069 = vmatprep.subr.bf16.mxu0 0
      %3070 = vmatpush1.bf16.msra.mxu0 0
      %3071 = vmatprep.subr.bf16.mxu0 0
      %3072 = vmatpush1.bf16.msra.mxu0 0
      %3073 = vmatprep.subr.bf16.mxu0 0
      %3074 = vmatpush1.bf16.msra.mxu0 0
      %3075 = vmatprep.subr.bf16.mxu0 0
      %3076 = vmatpush1.bf16.msra.mxu0 0
      %3077 = vmatprep.mubr.bf16.mxu0 0
      %3078 = vmatmul.mubr.bf16.gmra.mrb[0].mxu0 %v3040
      %v3079 = vpop.f32.mrb[0].mxu0
      %v3080 = vadd.f32 0.0, %v3079
      %v3081 = vpop.f32.mrb[0].mxu0
      %v3082 = vpop.f32.mrb[0].mxu0
      %v3083 = vadd.f32 0.0, %v3082
      %v3084 = vpop.f32.mrb[0].mxu0
      %3085 = vdwg.mxu0
      %v3086 = vadd.f32 %v2982, %v3080
      %v3087 = vadd.f32 %v2983, %v3083
      %s3088 = scalar_lea.vmem %s8, 16
      %v3089 = vld [vmem:[%s3088] sm:$0xf]
      %v3090 = vld [vmem:[%s3088 + $0x4] sm:$0xf]
      %v3093 = vunpack.c.l.b16 %v3089
      %v3094 = vunpack.c.l.b16 %v3090
      %v3095 = vpack.c.b16 %v3094, %v3093
      %v3097 = vsel %vm2887, %v3095, 0
      %3099 = vmatprep.subr.bf16.mxu0 0
      %3100 = vmatpush1.bf16.msra.mxu0 %v2868
      %3101 = vmatprep.subr.bf16.mxu0 0
      %3102 = vmatpush1.bf16.msra.mxu0 %v2869
      %3103 = vmatprep.subr.bf16.mxu0 0
      %3104 = vmatpush1.bf16.msra.mxu0 %v2870
      %3105 = vmatprep.subr.bf16.mxu0 0
      %3106 = vmatpush1.bf16.msra.mxu0 %v2871
      %3107 = vmatprep.subr.bf16.mxu0 0
      %3108 = vmatpush1.bf16.msra.mxu0 0
      %3109 = vmatprep.subr.bf16.mxu0 0
      %3110 = vmatpush1.bf16.msra.mxu0 0
      %3111 = vmatprep.subr.bf16.mxu0 0
      %3112 = vmatpush1.bf16.msra.mxu0 0
      %3113 = vmatprep.subr.bf16.mxu0 0
      %3114 = vmatpush1.bf16.msra.mxu0 0
      %3115 = vmatprep.subr.bf16.mxu0 0
      %3116 = vmatpush1.bf16.msra.mxu0 0
      %3117 = vmatprep.subr.bf16.mxu0 0
      %3118 = vmatpush1.bf16.msra.mxu0 0
      %3119 = vmatprep.subr.bf16.mxu0 0
      %3120 = vmatpush1.bf16.msra.mxu0 0
      %3121 = vmatprep.subr.bf16.mxu0 0
      %3122 = vmatpush1.bf16.msra.mxu0 0
      %3123 = vmatprep.subr.bf16.mxu0 0
      %3124 = vmatpush1.bf16.msra.mxu0 0
      %3125 = vmatprep.subr.bf16.mxu0 0
      %3126 = vmatpush1.bf16.msra.mxu0 0
      %3127 = vmatprep.subr.bf16.mxu0 0
      %3128 = vmatpush1.bf16.msra.mxu0 0
      %3129 = vmatprep.subr.bf16.mxu0 0
      %3130 = vmatpush1.bf16.msra.mxu0 0
      %3131 = vmatprep.mubr.bf16.mxu0 0
      %3132 = vmatmul.mubr.bf16.gmra.mrb[0].mxu0 %v3097
      %v3133 = vpop.f32.mrb[0].mxu0
      %v3134 = vadd.f32 0.0, %v3133
      %v3135 = vpop.f32.mrb[0].mxu0
      %v3136 = vpop.f32.mrb[0].mxu0
      %v3137 = vadd.f32 0.0, %v3136
      %v3138 = vpop.f32.mrb[0].mxu0
      %3139 = vdwg.mxu0
      %v3140 = vpack.c.bf16 %v3137, %v3134
      %s3141 = scalar_lea.vmem %s6, 8
      %v3142 = vld [vmem:[%s3141] sm:$0xf]
      %v3144 = vsel %vm2780, %v3140, 0
      %v3147 = vsel %vm2937, %v3142, 0
      %3149 = vmatprep.subr.bf16.mxu0 0
      %3150 = vmatpush1.bf16.msra.mxu0 %v3147
      %3151 = vmatprep.subr.bf16.mxu0 0
      %3152 = vmatpush1.bf16.msra.mxu0 0
      %3153 = vmatprep.subr.bf16.mxu0 0
      %3154 = vmatpush1.bf16.msra.mxu0 0
      %3155 = vmatprep.subr.bf16.mxu0 0
      %3156 = vmatpush1.bf16.msra.mxu0 0
      %3157 = vmatprep.subr.bf16.mxu0 0
      %3158 = vmatpush1.bf16.msra.mxu0 0
      %3159 = vmatprep.subr.bf16.mxu0 0
      %3160 = vmatpush1.bf16.msra.mxu0 0
      %3161 = vmatprep.subr.bf16.mxu0 0
      %3162 = vmatpush1.bf16.msra.mxu0 0
      %3163 = vmatprep.subr.bf16.mxu0 0
      %3164 = vmatpush1.bf16.msra.mxu0 0
      %3165 = vmatprep.subr.bf16.mxu0 0
      %3166 = vmatpush1.bf16.msra.mxu0 0
      %3167 = vmatprep.subr.bf16.mxu0 0
      %3168 = vmatpush1.bf16.msra.mxu0 0
      %3169 = vmatprep.subr.bf16.mxu0 0
      %3170 = vmatpush1.bf16.msra.mxu0 0
      %3171 = vmatprep.subr.bf16.mxu0 0
      %3172 = vmatpush1.bf16.msra.mxu0 0
      %3173 = vmatprep.subr.bf16.mxu0 0
      %3174 = vmatpush1.bf16.msra.mxu0 0
      %3175 = vmatprep.subr.bf16.mxu0 0
      %3176 = vmatpush1.bf16.msra.mxu0 0
      %3177 = vmatprep.subr.bf16.mxu0 0
      %3178 = vmatpush1.bf16.msra.mxu0 0
      %3179 = vmatprep.subr.bf16.mxu0 0
      %3180 = vmatpush1.bf16.msra.mxu0 0
      %3181 = vmatprep.mubr.bf16.mxu0 0
      %3182 = vmatmul.mubr.bf16.gmra.mrb[0].mxu0 %v3144
      %v3183 = vpop.f32.mrb[0].mxu0
      %v3184 = vadd.f32 0.0, %v3183
      %v3185 = vpop.f32.mrb[0].mxu0
      %v3186 = vpop.f32.mrb[0].mxu0
      %v3187 = vadd.f32 0.0, %v3186
      %v3188 = vpop.f32.mrb[0].mxu0
      %3189 = vdwg.mxu0
      %v3190 = vadd.f32 %v3086, %v3184
      %v3191 = vadd.f32 %v3087, %v3187
      %s3192 = scalar_lea.vmem %s8, 24
      %v3193 = vld [vmem:[%s3192] sm:$0xf]
      %v3194 = vld [vmem:[%s3192 + $0x4] sm:$0xf]
      %v3197 = vunpack.c.l.b16 %v3193
      %v3198 = vunpack.c.l.b16 %v3194
      %v3199 = vpack.c.b16 %v3198, %v3197
      %v3201 = vsel %vm2887, %v3199, 0
      %3203 = vmatprep.subr.bf16.mxu0 0
      %3204 = vmatpush1.bf16.msra.mxu0 %v2868
      %3205 = vmatprep.subr.bf16.mxu0 0
      %3206 = vmatpush1.bf16.msra.mxu0 %v2869
      %3207 = vmatprep.subr.bf16.mxu0 0
      %3208 = vmatpush1.bf16.msra.mxu0 %v2870
      %3209 = vmatprep.subr.bf16.mxu0 0
      %3210 = vmatpush1.bf16.msra.mxu0 %v2871
      %3211 = vmatprep.subr.bf16.mxu0 0
      %3212 = vmatpush1.bf16.msra.mxu0 0
      %3213 = vmatprep.subr.bf16.mxu0 0
      %3214 = vmatpush1.bf16.msra.mxu0 0
      %3215 = vmatprep.subr.bf16.mxu0 0
      %3216 = vmatpush1.bf16.msra.mxu0 0
      %3217 = vmatprep.subr.bf16.mxu0 0
      %3218 = vmatpush1.bf16.msra.mxu0 0
      %3219 = vmatprep.subr.bf16.mxu0 0
      %3220 = vmatpush1.bf16.msra.mxu0 0
      %3221 = vmatprep.subr.bf16.mxu0 0
      %3222 = vmatpush1.bf16.msra.mxu0 0
      %3223 = vmatprep.subr.bf16.mxu0 0
      %3224 = vmatpush1.bf16.msra.mxu0 0
      %3225 = vmatprep.subr.bf16.mxu0 0
      %3226 = vmatpush1.bf16.msra.mxu0 0
      %3227 = vmatprep.subr.bf16.mxu0 0
      %3228 = vmatpush1.bf16.msra.mxu0 0
      %3229 = vmatprep.subr.bf16.mxu0 0
      %3230 = vmatpush1.bf16.msra.mxu0 0
      %3231 = vmatprep.subr.bf16.mxu0 0
      %3232 = vmatpush1.bf16.msra.mxu0 0
      %3233 = vmatprep.subr.bf16.mxu0 0
      %3234 = vmatpush1.bf16.msra.mxu0 0
      %3235 = vmatprep.mubr.bf16.mxu0 0
      %3236 = vmatmul.mubr.bf16.gmra.mrb[0].mxu0 %v3201
      %v3237 = vpop.f32.mrb[0].mxu0
      %v3238 = vadd.f32 0.0, %v3237
      %v3239 = vpop.f32.mrb[0].mxu0
      %v3240 = vpop.f32.mrb[0].mxu0
      %v3241 = vadd.f32 0.0, %v3240
      %v3242 = vpop.f32.mrb[0].mxu0
      %3243 = vdwg.mxu0
      %v3244 = vpack.c.bf16 %v3241, %v3238
      %s3245 = scalar_lea.vmem %s6, 12
      %v3246 = vld [vmem:[%s3245] sm:$0xf]
      %v3248 = vsel %vm2780, %v3244, 0
      %v3251 = vsel %vm2937, %v3246, 0
      %3253 = vmatprep.subr.bf16.mxu0 0
      %3254 = vmatpush1.bf16.msra.mxu0 %v3251
      %3255 = vmatprep.subr.bf16.mxu0 0
      %3256 = vmatpush1.bf16.msra.mxu0 0
      %3257 = vmatprep.subr.bf16.mxu0 0
      %3258 = vmatpush1.bf16.msra.mxu0 0
      %3259 = vmatprep.subr.bf16.mxu0 0
      %3260 = vmatpush1.bf16.msra.mxu0 0
      %3261 = vmatprep.subr.bf16.mxu0 0
      %3262 = vmatpush1.bf16.msra.mxu0 0
      %3263 = vmatprep.subr.bf16.mxu0 0
      %3264 = vmatpush1.bf16.msra.mxu0 0
      %3265 = vmatprep.subr.bf16.mxu0 0
      %3266 = vmatpush1.bf16.msra.mxu0 0
      %3267 = vmatprep.subr.bf16.mxu0 0
      %3268 = vmatpush1.bf16.msra.mxu0 0
      %3269 = vmatprep.subr.bf16.mxu0 0
      %3270 = vmatpush1.bf16.msra.mxu0 0
      %3271 = vmatprep.subr.bf16.mxu0 0
      %3272 = vmatpush1.bf16.msra.mxu0 0
      %3273 = vmatprep.subr.bf16.mxu0 0
      %3274 = vmatpush1.bf16.msra.mxu0 0
      %3275 = vmatprep.subr.bf16.mxu0 0
      %3276 = vmatpush1.bf16.msra.mxu0 0
      %3277 = vmatprep.subr.bf16.mxu0 0
      %3278 = vmatpush1.bf16.msra.mxu0 0
      %3279 = vmatprep.subr.bf16.mxu0 0
      %3280 = vmatpush1.bf16.msra.mxu0 0
      %3281 = vmatprep.subr.bf16.mxu0 0
      %3282 = vmatpush1.bf16.msra.mxu0 0
      %3283 = vmatprep.subr.bf16.mxu0 0
      %3284 = vmatpush1.bf16.msra.mxu0 0
      %3285 = vmatprep.mubr.bf16.mxu0 0
      %3286 = vmatmul.mubr.bf16.gmra.mrb[0].mxu0 %v3248
      %v3287 = vpop.f32.mrb[0].mxu0
      %v3288 = vadd.f32 0.0, %v3287
      %v3289 = vpop.f32.mrb[0].mxu0
      %v3290 = vpop.f32.mrb[0].mxu0
      %v3291 = vadd.f32 0.0, %v3290
      %v3292 = vpop.f32.mrb[0].mxu0
      %3293 = vdwg.mxu0
      %v3294 = vadd.f32 %v3190, %v3288
      %v3295 = vadd.f32 %v3191, %v3291
      %s3296 = scalar_lea.vmem %s8, 32
      %v3297 = vld [vmem:[%s3296] sm:$0xf]
      %v3298 = vld [vmem:[%s3296 + $0x4] sm:$0xf]
      %v3301 = vunpack.c.l.b16 %v3297
      %v3302 = vunpack.c.l.b16 %v3298
      %v3303 = vpack.c.b16 %v3302, %v3301
      %v3305 = vsel %vm2887, %v3303, 0
      %3307 = vmatprep.subr.bf16.mxu0 0
      %3308 = vmatpush1.bf16.msra.mxu0 %v2868
      %3309 = vmatprep.subr.bf16.mxu0 0
      %3310 = vmatpush1.bf16.msra.mxu0 %v2869
      %3311 = vmatprep.subr.bf16.mxu0 0
      %3312 = vmatpush1.bf16.msra.mxu0 %v2870
      %3313 = vmatprep.subr.bf16.mxu0 0
      %3314 = vmatpush1.bf16.msra.mxu0 %v2871
      %3315 = vmatprep.subr.bf16.mxu0 0
      %3316 = vmatpush1.bf16.msra.mxu0 0
      %3317 = vmatprep.subr.bf16.mxu0 0
      %3318 = vmatpush1.bf16.msra.mxu0 0
      %3319 = vmatprep.subr.bf16.mxu0 0
      %3320 = vmatpush1.bf16.msra.mxu0 0
      %3321 = vmatprep.subr.bf16.mxu0 0
      %3322 = vmatpush1.bf16.msra.mxu0 0
      %3323 = vmatprep.subr.bf16.mxu0 0
      %3324 = vmatpush1.bf16.msra.mxu0 0
      %3325 = vmatprep.subr.bf16.mxu0 0
      %3326 = vmatpush1.bf16.msra.mxu0 0
      %3327 = vmatprep.subr.bf16.mxu0 0
      %3328 = vmatpush1.bf16.msra.mxu0 0
      %3329 = vmatprep.subr.bf16.mxu0 0
      %3330 = vmatpush1.bf16.msra.mxu0 0
      %3331 = vmatprep.subr.bf16.mxu0 0
      %3332 = vmatpush1.bf16.msra.mxu0 0
      %3333 = vmatprep.subr.bf16.mxu0 0
      %3334 = vmatpush1.bf16.msra.mxu0 0
      %3335 = vmatprep.subr.bf16.mxu0 0
      %3336 = vmatpush1.bf16.msra.mxu0 0
      %3337 = vmatprep.subr.bf16.mxu0 0
      %3338 = vmatpush1.bf16.msra.mxu0 0
      %3339 = vmatprep.mubr.bf16.mxu0 0
      %3340 = vmatmul.mubr.bf16.gmra.mrb[0].mxu0 %v3305
      %v3341 = vpop.f32.mrb[0].mxu0
      %v3342 = vadd.f32 0.0, %v3341
      %v3343 = vpop.f32.mrb[0].mxu0
      %v3344 = vpop.f32.mrb[0].mxu0
      %v3345 = vadd.f32 0.0, %v3344
      %v3346 = vpop.f32.mrb[0].mxu0
      %3347 = vdwg.mxu0
      %v3348 = vpack.c.bf16 %v3345, %v3342
      %s3349 = scalar_lea.vmem %s6, 16
      %v3350 = vld [vmem:[%s3349] sm:$0xf]
      %v3352 = vsel %vm2780, %v3348, 0
      %v3355 = vsel %vm2937, %v3350, 0
      %3357 = vmatprep.subr.bf16.mxu0 0
      %3358 = vmatpush1.bf16.msra.mxu0 %v3355
      %3359 = vmatprep.subr.bf16.mxu0 0
      %3360 = vmatpush1.bf16.msra.mxu0 0
      %3361 = vmatprep.subr.bf16.mxu0 0
      %3362 = vmatpush1.bf16.msra.mxu0 0
      %3363 = vmatprep.subr.bf16.mxu0 0
      %3364 = vmatpush1.bf16.msra.mxu0 0
      %3365 = vmatprep.subr.bf16.mxu0 0
      %3366 = vmatpush1.bf16.msra.mxu0 0
      %3367 = vmatprep.subr.bf16.mxu0 0
      %3368 = vmatpush1.bf16.msra.mxu0 0
      %3369 = vmatprep.subr.bf16.mxu0 0
      %3370 = vmatpush1.bf16.msra.mxu0 0
      %3371 = vmatprep.subr.bf16.mxu0 0
      %3372 = vmatpush1.bf16.msra.mxu0 0
      %3373 = vmatprep.subr.bf16.mxu0 0
      %3374 = vmatpush1.bf16.msra.mxu0 0
      %3375 = vmatprep.subr.bf16.mxu0 0
      %3376 = vmatpush1.bf16.msra.mxu0 0
      %3377 = vmatprep.subr.bf16.mxu0 0
      %3378 = vmatpush1.bf16.msra.mxu0 0
      %3379 = vmatprep.subr.bf16.mxu0 0
      %3380 = vmatpush1.bf16.msra.mxu0 0
      %3381 = vmatprep.subr.bf16.mxu0 0
      %3382 = vmatpush1.bf16.msra.mxu0 0
      %3383 = vmatprep.subr.bf16.mxu0 0
      %3384 = vmatpush1.bf16.msra.mxu0 0
      %3385 = vmatprep.subr.bf16.mxu0 0
      %3386 = vmatpush1.bf16.msra.mxu0 0
      %3387 = vmatprep.subr.bf16.mxu0 0
      %3388 = vmatpush1.bf16.msra.mxu0 0
      %3389 = vmatprep.mubr.bf16.mxu0 0
      %3390 = vmatmul.mubr.bf16.gmra.mrb[0].mxu0 %v3352
      %v3391 = vpop.f32.mrb[0].mxu0
      %v3392 = vadd.f32 0.0, %v3391
      %v3393 = vpop.f32.mrb[0].mxu0
      %v3394 = vpop.f32.mrb[0].mxu0
      %v3395 = vadd.f32 0.0, %v3394
      %v3396 = vpop.f32.mrb[0].mxu0
      %3397 = vdwg.mxu0
      %v3398 = vadd.f32 %v3294, %v3392
      %v3399 = vadd.f32 %v3295, %v3395
      %s3400 = scalar_lea.vmem %s8, 40
      %v3401 = vld [vmem:[%s3400] sm:$0xf]
      %v3402 = vld [vmem:[%s3400 + $0x4] sm:$0xf]
      %v3405 = vunpack.c.l.b16 %v3401
      %v3406 = vunpack.c.l.b16 %v3402
      %v3407 = vpack.c.b16 %v3406, %v3405
      %v3409 = vsel %vm2887, %v3407, 0
      %3411 = vmatprep.subr.bf16.mxu0 0
      %3412 = vmatpush1.bf16.msra.mxu0 %v2868
      %3413 = vmatprep.subr.bf16.mxu0 0
      %3414 = vmatpush1.bf16.msra.mxu0 %v2869
      %3415 = vmatprep.subr.bf16.mxu0 0
      %3416 = vmatpush1.bf16.msra.mxu0 %v2870
      %3417 = vmatprep.subr.bf16.mxu0 0
      %3418 = vmatpush1.bf16.msra.mxu0 %v2871
      %3419 = vmatprep.subr.bf16.mxu0 0
      %3420 = vmatpush1.bf16.msra.mxu0 0
      %3421 = vmatprep.subr.bf16.mxu0 0
      %3422 = vmatpush1.bf16.msra.mxu0 0
      %3423 = vmatprep.subr.bf16.mxu0 0
      %3424 = vmatpush1.bf16.msra.mxu0 0
      %3425 = vmatprep.subr.bf16.mxu0 0
      %3426 = vmatpush1.bf16.msra.mxu0 0
      %3427 = vmatprep.subr.bf16.mxu0 0
      %3428 = vmatpush1.bf16.msra.mxu0 0
      %3429 = vmatprep.subr.bf16.mxu0 0
      %3430 = vmatpush1.bf16.msra.mxu0 0
      %3431 = vmatprep.subr.bf16.mxu0 0
      %3432 = vmatpush1.bf16.msra.mxu0 0
      %3433 = vmatprep.subr.bf16.mxu0 0
      %3434 = vmatpush1.bf16.msra.mxu0 0
      %3435 = vmatprep.subr.bf16.mxu0 0
      %3436 = vmatpush1.bf16.msra.mxu0 0
      %3437 = vmatprep.subr.bf16.mxu0 0
      %3438 = vmatpush1.bf16.msra.mxu0 0
      %3439 = vmatprep.subr.bf16.mxu0 0
      %3440 = vmatpush1.bf16.msra.mxu0 0
      %3441 = vmatprep.subr.bf16.mxu0 0
      %3442 = vmatpush1.bf16.msra.mxu0 0
      %3443 = vmatprep.mubr.bf16.mxu0 0
      %3444 = vmatmul.mubr.bf16.gmra.mrb[0].mxu0 %v3409
      %v3445 = vpop.f32.mrb[0].mxu0
      %v3446 = vadd.f32 0.0, %v3445
      %v3447 = vpop.f32.mrb[0].mxu0
      %v3448 = vpop.f32.mrb[0].mxu0
      %v3449 = vadd.f32 0.0, %v3448
      %v3450 = vpop.f32.mrb[0].mxu0
      %3451 = vdwg.mxu0
      %v3452 = vpack.c.bf16 %v3449, %v3446
      %s3453 = scalar_lea.vmem %s6, 20
      %v3454 = vld [vmem:[%s3453] sm:$0xf]
      %v3456 = vsel %vm2780, %v3452, 0
      %v3459 = vsel %vm2937, %v3454, 0
      %3461 = vmatprep.subr.bf16.mxu0 0
      %3462 = vmatpush1.bf16.msra.mxu0 %v3459
      %3463 = vmatprep.subr.bf16.mxu0 0
      %3464 = vmatpush1.bf16.msra.mxu0 0
      %3465 = vmatprep.subr.bf16.mxu0 0
      %3466 = vmatpush1.bf16.msra.mxu0 0
      %3467 = vmatprep.subr.bf16.mxu0 0
      %3468 = vmatpush1.bf16.msra.mxu0 0
      %3469 = vmatprep.subr.bf16.mxu0 0
      %3470 = vmatpush1.bf16.msra.mxu0 0
      %3471 = vmatprep.subr.bf16.mxu0 0
      %3472 = vmatpush1.bf16.msra.mxu0 0
      %3473 = vmatprep.subr.bf16.mxu0 0
      %3474 = vmatpush1.bf16.msra.mxu0 0
      %3475 = vmatprep.subr.bf16.mxu0 0
      %3476 = vmatpush1.bf16.msra.mxu0 0
      %3477 = vmatprep.subr.bf16.mxu0 0
      %3478 = vmatpush1.bf16.msra.mxu0 0
      %3479 = vmatprep.subr.bf16.mxu0 0
      %3480 = vmatpush1.bf16.msra.mxu0 0
      %3481 = vmatprep.subr.bf16.mxu0 0
      %3482 = vmatpush1.bf16.msra.mxu0 0
      %3483 = vmatprep.subr.bf16.mxu0 0
      %3484 = vmatpush1.bf16.msra.mxu0 0
      %3485 = vmatprep.subr.bf16.mxu0 0
      %3486 = vmatpush1.bf16.msra.mxu0 0
      %3487 = vmatprep.subr.bf16.mxu0 0
      %3488 = vmatpush1.bf16.msra.mxu0 0
      %3489 = vmatprep.subr.bf16.mxu0 0
      %3490 = vmatpush1.bf16.msra.mxu0 0
      %3491 = vmatprep.subr.bf16.mxu0 0
      %3492 = vmatpush1.bf16.msra.mxu0 0
      %3493 = vmatprep.mubr.bf16.mxu0 0
      %3494 = vmatmul.mubr.bf16.gmra.mrb[0].mxu0 %v3456
      %v3495 = vpop.f32.mrb[0].mxu0
      %v3496 = vadd.f32 0.0, %v3495
      %v3497 = vpop.f32.mrb[0].mxu0
      %v3498 = vpop.f32.mrb[0].mxu0
      %v3499 = vadd.f32 0.0, %v3498
      %v3500 = vpop.f32.mrb[0].mxu0
      %3501 = vdwg.mxu0
      %v3502 = vadd.f32 %v3398, %v3496
      %v3503 = vadd.f32 %v3399, %v3499
      %s3504 = scalar_lea.vmem %s8, 48
      %v3505 = vld [vmem:[%s3504] sm:$0xf]
      %v3506 = vld [vmem:[%s3504 + $0x4] sm:$0xf]
      %v3509 = vunpack.c.l.b16 %v3505
      %v3510 = vunpack.c.l.b16 %v3506
      %v3511 = vpack.c.b16 %v3510, %v3509
      %v3513 = vsel %vm2887, %v3511, 0
      %3515 = vmatprep.subr.bf16.mxu0 0
      %3516 = vmatpush1.bf16.msra.mxu0 %v2868
      %3517 = vmatprep.subr.bf16.mxu0 0
      %3518 = vmatpush1.bf16.msra.mxu0 %v2869
      %3519 = vmatprep.subr.bf16.mxu0 0
      %3520 = vmatpush1.bf16.msra.mxu0 %v2870
      %3521 = vmatprep.subr.bf16.mxu0 0
      %3522 = vmatpush1.bf16.msra.mxu0 %v2871
      %3523 = vmatprep.subr.bf16.mxu0 0
      %3524 = vmatpush1.bf16.msra.mxu0 0
      %3525 = vmatprep.subr.bf16.mxu0 0
      %3526 = vmatpush1.bf16.msra.mxu0 0
      %3527 = vmatprep.subr.bf16.mxu0 0
      %3528 = vmatpush1.bf16.msra.mxu0 0
      %3529 = vmatprep.subr.bf16.mxu0 0
      %3530 = vmatpush1.bf16.msra.mxu0 0
      %3531 = vmatprep.subr.bf16.mxu0 0
      %3532 = vmatpush1.bf16.msra.mxu0 0
      %3533 = vmatprep.subr.bf16.mxu0 0
      %3534 = vmatpush1.bf16.msra.mxu0 0
      %3535 = vmatprep.subr.bf16.mxu0 0
      %3536 = vmatpush1.bf16.msra.mxu0 0
      %3537 = vmatprep.subr.bf16.mxu0 0
      %3538 = vmatpush1.bf16.msra.mxu0 0
      %3539 = vmatprep.subr.bf16.mxu0 0
      %3540 = vmatpush1.bf16.msra.mxu0 0
      %3541 = vmatprep.subr.bf16.mxu0 0
      %3542 = vmatpush1.bf16.msra.mxu0 0
      %3543 = vmatprep.subr.bf16.mxu0 0
      %3544 = vmatpush1.bf16.msra.mxu0 0
      %3545 = vmatprep.subr.bf16.mxu0 0
      %3546 = vmatpush1.bf16.msra.mxu0 0
      %3547 = vmatprep.mubr.bf16.mxu0 0
      %3548 = vmatmul.mubr.bf16.gmra.mrb[0].mxu0 %v3513
      %v3549 = vpop.f32.mrb[0].mxu0
      %v3550 = vadd.f32 0.0, %v3549
      %v3551 = vpop.f32.mrb[0].mxu0
      %v3552 = vpop.f32.mrb[0].mxu0
      %v3553 = vadd.f32 0.0, %v3552
      %v3554 = vpop.f32.mrb[0].mxu0
      %3555 = vdwg.mxu0
      %v3556 = vpack.c.bf16 %v3553, %v3550
      %s3557 = scalar_lea.vmem %s6, 24
      %v3558 = vld [vmem:[%s3557] sm:$0xf]
      %v3560 = vsel %vm2780, %v3556, 0
      %v3563 = vsel %vm2937, %v3558, 0
      %3565 = vmatprep.subr.bf16.mxu0 0
      %3566 = vmatpush1.bf16.msra.mxu0 %v3563
      %3567 = vmatprep.subr.bf16.mxu0 0
      %3568 = vmatpush1.bf16.msra.mxu0 0
      %3569 = vmatprep.subr.bf16.mxu0 0
      %3570 = vmatpush1.bf16.msra.mxu0 0
      %3571 = vmatprep.subr.bf16.mxu0 0
      %3572 = vmatpush1.bf16.msra.mxu0 0
      %3573 = vmatprep.subr.bf16.mxu0 0
      %3574 = vmatpush1.bf16.msra.mxu0 0
      %3575 = vmatprep.subr.bf16.mxu0 0
      %3576 = vmatpush1.bf16.msra.mxu0 0
      %3577 = vmatprep.subr.bf16.mxu0 0
      %3578 = vmatpush1.bf16.msra.mxu0 0
      %3579 = vmatprep.subr.bf16.mxu0 0
      %3580 = vmatpush1.bf16.msra.mxu0 0
      %3581 = vmatprep.subr.bf16.mxu0 0
      %3582 = vmatpush1.bf16.msra.mxu0 0
      %3583 = vmatprep.subr.bf16.mxu0 0
      %3584 = vmatpush1.bf16.msra.mxu0 0
      %3585 = vmatprep.subr.bf16.mxu0 0
      %3586 = vmatpush1.bf16.msra.mxu0 0
      %3587 = vmatprep.subr.bf16.mxu0 0
      %3588 = vmatpush1.bf16.msra.mxu0 0
      %3589 = vmatprep.subr.bf16.mxu0 0
      %3590 = vmatpush1.bf16.msra.mxu0 0
      %3591 = vmatprep.subr.bf16.mxu0 0
      %3592 = vmatpush1.bf16.msra.mxu0 0
      %3593 = vmatprep.subr.bf16.mxu0 0
      %3594 = vmatpush1.bf16.msra.mxu0 0
      %3595 = vmatprep.subr.bf16.mxu0 0
      %3596 = vmatpush1.bf16.msra.mxu0 0
      %3597 = vmatprep.mubr.bf16.mxu0 0
      %3598 = vmatmul.mubr.bf16.gmra.mrb[0].mxu0 %v3560
      %v3599 = vpop.f32.mrb[0].mxu0
      %v3600 = vadd.f32 0.0, %v3599
      %v3601 = vpop.f32.mrb[0].mxu0
      %v3602 = vpop.f32.mrb[0].mxu0
      %v3603 = vadd.f32 0.0, %v3602
      %v3604 = vpop.f32.mrb[0].mxu0
      %3605 = vdwg.mxu0
      %v3606 = vadd.f32 %v3502, %v3600
      %v3607 = vadd.f32 %v3503, %v3603
      %s3608 = scalar_lea.vmem %s8, 56
      %v3609 = vld [vmem:[%s3608] sm:$0xf]
      %v3610 = vld [vmem:[%s3608 + $0x4] sm:$0xf]
      %v3613 = vunpack.c.l.b16 %v3609
      %v3614 = vunpack.c.l.b16 %v3610
      %v3615 = vpack.c.b16 %v3614, %v3613
      %v3617 = vsel %vm2887, %v3615, 0
      %3619 = vmatprep.subr.bf16.mxu0 0
      %3620 = vmatpush1.bf16.msra.mxu0 %v2868
      %3621 = vmatprep.subr.bf16.mxu0 0
      %3622 = vmatpush1.bf16.msra.mxu0 %v2869
      %3623 = vmatprep.subr.bf16.mxu0 0
      %3624 = vmatpush1.bf16.msra.mxu0 %v2870
      %3625 = vmatprep.subr.bf16.mxu0 0
      %3626 = vmatpush1.bf16.msra.mxu0 %v2871
      %3627 = vmatprep.subr.bf16.mxu0 0
      %3628 = vmatpush1.bf16.msra.mxu0 0
      %3629 = vmatprep.subr.bf16.mxu0 0
      %3630 = vmatpush1.bf16.msra.mxu0 0
      %3631 = vmatprep.subr.bf16.mxu0 0
      %3632 = vmatpush1.bf16.msra.mxu0 0
      %3633 = vmatprep.subr.bf16.mxu0 0
      %3634 = vmatpush1.bf16.msra.mxu0 0
      %3635 = vmatprep.subr.bf16.mxu0 0
      %3636 = vmatpush1.bf16.msra.mxu0 0
      %3637 = vmatprep.subr.bf16.mxu0 0
      %3638 = vmatpush1.bf16.msra.mxu0 0
      %3639 = vmatprep.subr.bf16.mxu0 0
      %3640 = vmatpush1.bf16.msra.mxu0 0
      %3641 = vmatprep.subr.bf16.mxu0 0
      %3642 = vmatpush1.bf16.msra.mxu0 0
      %3643 = vmatprep.subr.bf16.mxu0 0
      %3644 = vmatpush1.bf16.msra.mxu0 0
      %3645 = vmatprep.subr.bf16.mxu0 0
      %3646 = vmatpush1.bf16.msra.mxu0 0
      %3647 = vmatprep.subr.bf16.mxu0 0
      %3648 = vmatpush1.bf16.msra.mxu0 0
      %3649 = vmatprep.subr.bf16.mxu0 0
      %3650 = vmatpush1.bf16.msra.mxu0 0
      %3651 = vmatprep.mubr.bf16.mxu0 0
      %3652 = vmatmul.mubr.bf16.gmra.mrb[0].mxu0 %v3617
      %v3653 = vpop.f32.mrb[0].mxu0
      %v3654 = vadd.f32 0.0, %v3653
      %v3655 = vpop.f32.mrb[0].mxu0
      %v3656 = vpop.f32.mrb[0].mxu0
      %v3657 = vadd.f32 0.0, %v3656
      %v3658 = vpop.f32.mrb[0].mxu0
      %3659 = vdwg.mxu0
      %v3660 = vpack.c.bf16 %v3657, %v3654
      %s3661 = scalar_lea.vmem %s6, 28
      %v3662 = vld [vmem:[%s3661] sm:$0xf]
      %v3664 = vsel %vm2780, %v3660, 0
      %v3667 = vsel %vm2937, %v3662, 0
      %3669 = vmatprep.subr.bf16.mxu0 0
      %3670 = vmatpush1.bf16.msra.mxu0 %v3667
      %3671 = vmatprep.subr.bf16.mxu0 0
      %3672 = vmatpush1.bf16.msra.mxu0 0
      %3673 = vmatprep.subr.bf16.mxu0 0
      %3674 = vmatpush1.bf16.msra.mxu0 0
      %3675 = vmatprep.subr.bf16.mxu0 0
      %3676 = vmatpush1.bf16.msra.mxu0 0
      %3677 = vmatprep.subr.bf16.mxu0 0
      %3678 = vmatpush1.bf16.msra.mxu0 0
      %3679 = vmatprep.subr.bf16.mxu0 0
      %3680 = vmatpush1.bf16.msra.mxu0 0
      %3681 = vmatprep.subr.bf16.mxu0 0
      %3682 = vmatpush1.bf16.msra.mxu0 0
      %3683 = vmatprep.subr.bf16.mxu0 0
      %3684 = vmatpush1.bf16.msra.mxu0 0
      %3685 = vmatprep.subr.bf16.mxu0 0
      %3686 = vmatpush1.bf16.msra.mxu0 0
      %3687 = vmatprep.subr.bf16.mxu0 0
      %3688 = vmatpush1.bf16.msra.mxu0 0
      %3689 = vmatprep.subr.bf16.mxu0 0
      %3690 = vmatpush1.bf16.msra.mxu0 0
      %3691 = vmatprep.subr.bf16.mxu0 0
      %3692 = vmatpush1.bf16.msra.mxu0 0
      %3693 = vmatprep.subr.bf16.mxu0 0
      %3694 = vmatpush1.bf16.msra.mxu0 0
      %3695 = vmatprep.subr.bf16.mxu0 0
      %3696 = vmatpush1.bf16.msra.mxu0 0
      %3697 = vmatprep.subr.bf16.mxu0 0
      %3698 = vmatpush1.bf16.msra.mxu0 0
      %3699 = vmatprep.subr.bf16.mxu0 0
      %3700 = vmatpush1.bf16.msra.mxu0 0
      %3701 = vmatprep.mubr.bf16.mxu0 0
      %3702 = vmatmul.mubr.bf16.gmra.mrb[0].mxu0 %v3664
      %v3703 = vpop.f32.mrb[0].mxu0
      %v3704 = vadd.f32 0.0, %v3703
      %v3705 = vpop.f32.mrb[0].mxu0
      %v3706 = vpop.f32.mrb[0].mxu0
      %v3707 = vadd.f32 0.0, %v3706
      %v3708 = vpop.f32.mrb[0].mxu0
      %3709 = vdwg.mxu0
      %v3710 = vadd.f32 %v3606, %v3704
      %v3711 = vadd.f32 %v3607, %v3707
      %s3712 = scalar_lea.vmem %s8, 64
      %v3713 = vld [vmem:[%s3712] sm:$0xf]
      %v3714 = vld [vmem:[%s3712 + $0x4] sm:$0xf]
      %v3717 = vunpack.c.l.b16 %v3713
      %v3718 = vunpack.c.l.b16 %v3714
      %v3719 = vpack.c.b16 %v3718, %v3717
      %v3721 = vsel %vm2887, %v3719, 0
      %3723 = vmatprep.subr.bf16.mxu0 0
      %3724 = vmatpush1.bf16.msra.mxu0 %v2868
      %3725 = vmatprep.subr.bf16.mxu0 0
      %3726 = vmatpush1.bf16.msra.mxu0 %v2869
      %3727 = vmatprep.subr.bf16.mxu0 0
      %3728 = vmatpush1.bf16.msra.mxu0 %v2870
      %3729 = vmatprep.subr.bf16.mxu0 0
      %3730 = vmatpush1.bf16.msra.mxu0 %v2871
      %3731 = vmatprep.subr.bf16.mxu0 0
      %3732 = vmatpush1.bf16.msra.mxu0 0
      %3733 = vmatprep.subr.bf16.mxu0 0
      %3734 = vmatpush1.bf16.msra.mxu0 0
      %3735 = vmatprep.subr.bf16.mxu0 0
      %3736 = vmatpush1.bf16.msra.mxu0 0
      %3737 = vmatprep.subr.bf16.mxu0 0
      %3738 = vmatpush1.bf16.msra.mxu0 0
      %3739 = vmatprep.subr.bf16.mxu0 0
      %3740 = vmatpush1.bf16.msra.mxu0 0
      %3741 = vmatprep.subr.bf16.mxu0 0
      %3742 = vmatpush1.bf16.msra.mxu0 0
      %3743 = vmatprep.subr.bf16.mxu0 0
      %3744 = vmatpush1.bf16.msra.mxu0 0
      %3745 = vmatprep.subr.bf16.mxu0 0
      %3746 = vmatpush1.bf16.msra.mxu0 0
      %3747 = vmatprep.subr.bf16.mxu0 0
      %3748 = vmatpush1.bf16.msra.mxu0 0
      %3749 = vmatprep.subr.bf16.mxu0 0
      %3750 = vmatpush1.bf16.msra.mxu0 0
      %3751 = vmatprep.subr.bf16.mxu0 0
      %3752 = vmatpush1.bf16.msra.mxu0 0
      %3753 = vmatprep.subr.bf16.mxu0 0
      %3754 = vmatpush1.bf16.msra.mxu0 0
      %3755 = vmatprep.mubr.bf16.mxu0 0
      %3756 = vmatmul.mubr.bf16.gmra.mrb[0].mxu0 %v3721
      %v3757 = vpop.f32.mrb[0].mxu0
      %v3758 = vadd.f32 0.0, %v3757
      %v3759 = vpop.f32.mrb[0].mxu0
      %v3760 = vpop.f32.mrb[0].mxu0
      %v3761 = vadd.f32 0.0, %v3760
      %v3762 = vpop.f32.mrb[0].mxu0
      %3763 = vdwg.mxu0
      %v3764 = vpack.c.bf16 %v3761, %v3758
      %s3765 = scalar_lea.vmem %s6, 32
      %v3766 = vld [vmem:[%s3765] sm:$0xf]
      %v3768 = vsel %vm2780, %v3764, 0
      %v3771 = vsel %vm2937, %v3766, 0
      %3773 = vmatprep.subr.bf16.mxu0 0
      %3774 = vmatpush1.bf16.msra.mxu0 %v3771
      %3775 = vmatprep.subr.bf16.mxu0 0
      %3776 = vmatpush1.bf16.msra.mxu0 0
      %3777 = vmatprep.subr.bf16.mxu0 0
      %3778 = vmatpush1.bf16.msra.mxu0 0
      %3779 = vmatprep.subr.bf16.mxu0 0
      %3780 = vmatpush1.bf16.msra.mxu0 0
      %3781 = vmatprep.subr.bf16.mxu0 0
      %3782 = vmatpush1.bf16.msra.mxu0 0
      %3783 = vmatprep.subr.bf16.mxu0 0
      %3784 = vmatpush1.bf16.msra.mxu0 0
      %3785 = vmatprep.subr.bf16.mxu0 0
      %3786 = vmatpush1.bf16.msra.mxu0 0
      %3787 = vmatprep.subr.bf16.mxu0 0
      %3788 = vmatpush1.bf16.msra.mxu0 0
      %3789 = vmatprep.subr.bf16.mxu0 0
      %3790 = vmatpush1.bf16.msra.mxu0 0
      %3791 = vmatprep.subr.bf16.mxu0 0
      %3792 = vmatpush1.bf16.msra.mxu0 0
      %3793 = vmatprep.subr.bf16.mxu0 0
      %3794 = vmatpush1.bf16.msra.mxu0 0
      %3795 = vmatprep.subr.bf16.mxu0 0
      %3796 = vmatpush1.bf16.msra.mxu0 0
      %3797 = vmatprep.subr.bf16.mxu0 0
      %3798 = vmatpush1.bf16.msra.mxu0 0
      %3799 = vmatprep.subr.bf16.mxu0 0
      %3800 = vmatpush1.bf16.msra.mxu0 0
      %3801 = vmatprep.subr.bf16.mxu0 0
      %3802 = vmatpush1.bf16.msra.mxu0 0
      %3803 = vmatprep.subr.bf16.mxu0 0
      %3804 = vmatpush1.bf16.msra.mxu0 0
      %3805 = vmatprep.mubr.bf16.mxu0 0
      %3806 = vmatmul.mubr.bf16.gmra.mrb[0].mxu0 %v3768
      %v3807 = vpop.f32.mrb[0].mxu0
      %v3808 = vadd.f32 0.0, %v3807
      %v3809 = vpop.f32.mrb[0].mxu0
      %v3810 = vpop.f32.mrb[0].mxu0
      %v3811 = vadd.f32 0.0, %v3810
      %v3812 = vpop.f32.mrb[0].mxu0
      %3813 = vdwg.mxu0
      %v3814 = vadd.f32 %v3710, %v3808
      %v3815 = vadd.f32 %v3711, %v3811
      %vm3816 = vcmask 130048
      %v3817 = vsel %vm3816, %v3814, 0.0
      %v3818 = vsel %vm3816, %v3815, 0.0
      %v3819 = vadd.f32 %v3817, %v3818
      %v3820 = vrot.slane %v3819, 4
      %v3821 = vadd.f32 %v3819, %v3820
      %v3822 = vrot.slane %v3821, 2
      %v3823 = vadd.f32 %v3821, %v3822
      %v3824 = vrot.slane %v3823, 1
      %v3825 = vadd.f32 %v3823, %v3824
      %v3826 = vrcp.pop 16.0
      %v3827 = vmul.f32 %v3825, %v3826
      %v3828 = vsub.f32 %v3814, %v3827
      %v3829 = vsub.f32 %v3815, %v3827
      %v3830 = vmul.f32 %v3828, %v3828
      %v3831 = vmul.f32 %v3829, %v3829
      %v3832 = vsel %vm3816, %v3830, 0.0
      %v3833 = vsel %vm3816, %v3831, 0.0
      %v3834 = vadd.f32 %v3832, %v3833
      %v3835 = vrot.slane %v3834, 4
      %v3836 = vadd.f32 %v3834, %v3835
      %v3837 = vrot.slane %v3836, 2
      %v3838 = vadd.f32 %v3836, %v3837
      %v3839 = vrot.slane %v3838, 1
      %v3840 = vadd.f32 %v3838, %v3839
      %v3841 = vmul.f32 %v3840, %v3826
      %v3842 = vadd.f32 %v3841, 1e-05
      %v3843 = vrsqrt.pop %v3842
      %v3844 = vmul.f32 %v3828, %v3843
      %v3845 = vmul.f32 %v3829, %v3843
      %v3846 = vmul.f32 %v3844, 0.2
      %v3847 = vmul.f32 %v3845, 0.2
      %v3848 = vmax.f32 %v3844, %v3846
      %v3849 = vmax.f32 %v3845, %v3847
      %v3850 = vpack.c.bf16 %v3849, %v3848
      %v3851 = vld [vmem:[%s10] sm:$0x1]
      %v3853 = vlaneseq
      %v3854 = vshrl.u32 %v3853, 7
      %v3855 = vsub.s32 0, %v3854
      %v3856 = vrot.slane %v3851, %v3855
      %v3858 = vadd.f32 %v3856, 0.0
      %v3859 = vld [vmem:[%s11] sm:$0x3]
      %v3861 = vsel %vm3816, %v3859, 0
      %3863 = vmatprep.subr.bf16.mxu0 0
      %3864 = vmatpush1.bf16.msra.mxu0 %v3850
      %3865 = vmatprep.subr.bf16.mxu0 0
      %3866 = vmatpush1.bf16.msra.mxu0 0
      %3867 = vmatprep.subr.bf16.mxu0 0
      %3868 = vmatpush1.bf16.msra.mxu0 0
      %3869 = vmatprep.subr.bf16.mxu0 0
      %3870 = vmatpush1.bf16.msra.mxu0 0
      %3871 = vmatprep.subr.bf16.mxu0 0
      %3872 = vmatpush1.bf16.msra.mxu0 0
      %3873 = vmatprep.subr.bf16.mxu0 0
      %3874 = vmatpush1.bf16.msra.mxu0 0
      %3875 = vmatprep.subr.bf16.mxu0 0
      %3876 = vmatpush1.bf16.msra.mxu0 0
      %3877 = vmatprep.subr.bf16.mxu0 0
      %3878 = vmatpush1.bf16.msra.mxu0 0
      %3879 = vmatprep.subr.bf16.mxu0 0
      %3880 = vmatpush1.bf16.msra.mxu0 0
      %3881 = vmatprep.subr.bf16.mxu0 0
      %3882 = vmatpush1.bf16.msra.mxu0 0
      %3883 = vmatprep.subr.bf16.mxu0 0
      %3884 = vmatpush1.bf16.msra.mxu0 0
      %3885 = vmatprep.subr.bf16.mxu0 0
      %3886 = vmatpush1.bf16.msra.mxu0 0
      %3887 = vmatprep.subr.bf16.mxu0 0
      %3888 = vmatpush1.bf16.msra.mxu0 0
      %3889 = vmatprep.subr.bf16.mxu0 0
      %3890 = vmatpush1.bf16.msra.mxu0 0
      %3891 = vmatprep.subr.bf16.mxu0 0
      %3892 = vmatpush1.bf16.msra.mxu0 0
      %3893 = vmatprep.subr.bf16.mxu0 0
      %3894 = vmatpush1.bf16.msra.mxu0 0
      %3895 = vmatprep.mubr.bf16.mxu0 0
      %3896 = vmatmul.mubr.bf16.gmra.mrb[0].mxu0 %v3861
      %v3897 = vpop.f32.mrb[0].mxu0
      %v3898 = vadd.f32 0.0, %v3897
      %v3899 = vpop.f32.mrb[0].mxu0
      %v3900 = vpop.f32.mrb[0].mxu0
      %v3901 = vpop.f32.mrb[0].mxu0
      %3902 = vdwg.mxu0
      %v3903 = vpack.c.bf16 %v3898, %v3898
      %v3904 = vld [vmem:[%s9] sm:$0xf]
      %v3905 = vld [vmem:[%s9 + $0x4] sm:$0xf]
      %v3908 = vunpack.c.l.b16 %v3904
      %v3909 = vunpack.c.l.b16 %v3905
      %v3910 = vpack.c.b16 %v3909, %v3908
      %v3913 = vsel %vm3816, %v3903, 0
      %3915 = vmatprep.subr.bf16.mxu0 0
      %3916 = vmatpush1.bf16.msra.mxu0 %v3910
      %3917 = vmatprep.subr.bf16.mxu0 0
      %3918 = vmatpush1.bf16.msra.mxu0 0
      %3919 = vmatprep.subr.bf16.mxu0 0
      %3920 = vmatpush1.bf16.msra.mxu0 0
      %3921 = vmatprep.subr.bf16.mxu0 0
      %3922 = vmatpush1.bf16.msra.mxu0 0
      %3923 = vmatprep.subr.bf16.mxu0 0
      %3924 = vmatpush1.bf16.msra.mxu0 0
      %3925 = vmatprep.subr.bf16.mxu0 0
      %3926 = vmatpush1.bf16.msra.mxu0 0
      %3927 = vmatprep.subr.bf16.mxu0 0
      %3928 = vmatpush1.bf16.msra.mxu0 0
      %3929 = vmatprep.subr.bf16.mxu0 0
      %3930 = vmatpush1.bf16.msra.mxu0 0
      %3931 = vmatprep.subr.bf16.mxu0 0
      %3932 = vmatpush1.bf16.msra.mxu0 0
      %3933 = vmatprep.subr.bf16.mxu0 0
      %3934 = vmatpush1.bf16.msra.mxu0 0
      %3935 = vmatprep.subr.bf16.mxu0 0
      %3936 = vmatpush1.bf16.msra.mxu0 0
      %3937 = vmatprep.subr.bf16.mxu0 0
      %3938 = vmatpush1.bf16.msra.mxu0 0
      %3939 = vmatprep.subr.bf16.mxu0 0
      %3940 = vmatpush1.bf16.msra.mxu0 0
      %3941 = vmatprep.subr.bf16.mxu0 0
      %3942 = vmatpush1.bf16.msra.mxu0 0
      %3943 = vmatprep.subr.bf16.mxu0 0
      %3944 = vmatpush1.bf16.msra.mxu0 0
      %3945 = vmatprep.subr.bf16.mxu0 0
      %3946 = vmatpush1.bf16.msra.mxu0 0
      %3947 = vmatprep.mubr.bf16.mxu0 0
      %3948 = vmatmul.mubr.bf16.gmra.mrb[0].mxu0 %v3913
      %v3949 = vpop.f32.mrb[0].mxu0
      %v3950 = vadd.f32 0.0, %v3949
      %v3951 = vpop.f32.mrb[0].mxu0
      %v3952 = vpop.f32.mrb[0].mxu0
      %v3953 = vpop.f32.mrb[0].mxu0
      %3954 = vdwg.mxu0
      %v3955 = vadd.f32 %v3858, %v3950
      %s3956 = scalar_lea.vmem %s11, 2
      %v3957 = vld [vmem:[%s3956] sm:$0x3]
      %v3959 = vsel %vm3816, %v3957, 0
      %3961 = vmatprep.subr.bf16.mxu0 0
      %3962 = vmatpush1.bf16.msra.mxu0 %v3850
      %3963 = vmatprep.subr.bf16.mxu0 0
      %3964 = vmatpush1.bf16.msra.mxu0 0
      %3965 = vmatprep.subr.bf16.mxu0 0
      %3966 = vmatpush1.bf16.msra.mxu0 0
      %3967 = vmatprep.subr.bf16.mxu0 0
      %3968 = vmatpush1.bf16.msra.mxu0 0
      %3969 = vmatprep.subr.bf16.mxu0 0
      %3970 = vmatpush1.bf16.msra.mxu0 0
      %3971 = vmatprep.subr.bf16.mxu0 0
      %3972 = vmatpush1.bf16.msra.mxu0 0
      %3973 = vmatprep.subr.bf16.mxu0 0
      %3974 = vmatpush1.bf16.msra.mxu0 0
      %3975 = vmatprep.subr.bf16.mxu0 0
      %3976 = vmatpush1.bf16.msra.mxu0 0
      %3977 = vmatprep.subr.bf16.mxu0 0
      %3978 = vmatpush1.bf16.msra.mxu0 0
      %3979 = vmatprep.subr.bf16.mxu0 0
      %3980 = vmatpush1.bf16.msra.mxu0 0
      %3981 = vmatprep.subr.bf16.mxu0 0
      %3982 = vmatpush1.bf16.msra.mxu0 0
      %3983 = vmatprep.subr.bf16.mxu0 0
      %3984 = vmatpush1.bf16.msra.mxu0 0
      %3985 = vmatprep.subr.bf16.mxu0 0
      %3986 = vmatpush1.bf16.msra.mxu0 0
      %3987 = vmatprep.subr.bf16.mxu0 0
      %3988 = vmatpush1.bf16.msra.mxu0 0
      %3989 = vmatprep.subr.bf16.mxu0 0
      %3990 = vmatpush1.bf16.msra.mxu0 0
      %3991 = vmatprep.subr.bf16.mxu0 0
      %3992 = vmatpush1.bf16.msra.mxu0 0
      %3993 = vmatprep.mubr.bf16.mxu0 0
      %3994 = vmatmul.mubr.bf16.gmra.mrb[0].mxu0 %v3959
      %v3995 = vpop.f32.mrb[0].mxu0
      %v3996 = vadd.f32 0.0, %v3995
      %v3997 = vpop.f32.mrb[0].mxu0
      %v3998 = vpop.f32.mrb[0].mxu0
      %v3999 = vpop.f32.mrb[0].mxu0
      %4000 = vdwg.mxu0
      %v4001 = vpack.c.bf16 %v3996, %v3996
      %s4002 = scalar_lea.vmem %s9, 8
      %v4003 = vld [vmem:[%s4002] sm:$0xf]
      %v4004 = vld [vmem:[%s4002 + $0x4] sm:$0xf]
      %v4007 = vunpack.c.l.b16 %v4003
      %v4008 = vunpack.c.l.b16 %v4004
      %v4009 = vpack.c.b16 %v4008, %v4007
      %v4012 = vsel %vm3816, %v4001, 0
      %4014 = vmatprep.subr.bf16.mxu0 0
      %4015 = vmatpush1.bf16.msra.mxu0 %v4009
      %4016 = vmatprep.subr.bf16.mxu0 0
      %4017 = vmatpush1.bf16.msra.mxu0 0
      %4018 = vmatprep.subr.bf16.mxu0 0
      %4019 = vmatpush1.bf16.msra.mxu0 0
      %4020 = vmatprep.subr.bf16.mxu0 0
      %4021 = vmatpush1.bf16.msra.mxu0 0
      %4022 = vmatprep.subr.bf16.mxu0 0
      %4023 = vmatpush1.bf16.msra.mxu0 0
      %4024 = vmatprep.subr.bf16.mxu0 0
      %4025 = vmatpush1.bf16.msra.mxu0 0
      %4026 = vmatprep.subr.bf16.mxu0 0
      %4027 = vmatpush1.bf16.msra.mxu0 0
      %4028 = vmatprep.subr.bf16.mxu0 0
      %4029 = vmatpush1.bf16.msra.mxu0 0
      %4030 = vmatprep.subr.bf16.mxu0 0
      %4031 = vmatpush1.bf16.msra.mxu0 0
      %4032 = vmatprep.subr.bf16.mxu0 0
      %4033 = vmatpush1.bf16.msra.mxu0 0
      %4034 = vmatprep.subr.bf16.mxu0 0
      %4035 = vmatpush1.bf16.msra.mxu0 0
      %4036 = vmatprep.subr.bf16.mxu0 0
      %4037 = vmatpush1.bf16.msra.mxu0 0
      %4038 = vmatprep.subr.bf16.mxu0 0
      %4039 = vmatpush1.bf16.msra.mxu0 0
      %4040 = vmatprep.subr.bf16.mxu0 0
      %4041 = vmatpush1.bf16.msra.mxu0 0
      %4042 = vmatprep.subr.bf16.mxu0 0
      %4043 = vmatpush1.bf16.msra.mxu0 0
      %4044 = vmatprep.subr.bf16.mxu0 0
      %4045 = vmatpush1.bf16.msra.mxu0 0
      %4046 = vmatprep.mubr.bf16.mxu0 0
      %4047 = vmatmul.mubr.bf16.gmra.mrb[0].mxu0 %v4012
      %v4048 = vpop.f32.mrb[0].mxu0
      %v4049 = vadd.f32 0.0, %v4048
      %v4050 = vpop.f32.mrb[0].mxu0
      %v4051 = vpop.f32.mrb[0].mxu0
      %v4052 = vpop.f32.mrb[0].mxu0
      %4053 = vdwg.mxu0
      %v4054 = vadd.f32 %v3955, %v4049
      %s4055 = scalar_lea.vmem %s11, 4
      %v4056 = vld [vmem:[%s4055] sm:$0x3]
      %v4058 = vsel %vm3816, %v4056, 0
      %4060 = vmatprep.subr.bf16.mxu0 0
      %4061 = vmatpush1.bf16.msra.mxu0 %v3850
      %4062 = vmatprep.subr.bf16.mxu0 0
      %4063 = vmatpush1.bf16.msra.mxu0 0
      %4064 = vmatprep.subr.bf16.mxu0 0
      %4065 = vmatpush1.bf16.msra.mxu0 0
      %4066 = vmatprep.subr.bf16.mxu0 0
      %4067 = vmatpush1.bf16.msra.mxu0 0
      %4068 = vmatprep.subr.bf16.mxu0 0
      %4069 = vmatpush1.bf16.msra.mxu0 0
      %4070 = vmatprep.subr.bf16.mxu0 0
      %4071 = vmatpush1.bf16.msra.mxu0 0
      %4072 = vmatprep.subr.bf16.mxu0 0
      %4073 = vmatpush1.bf16.msra.mxu0 0
      %4074 = vmatprep.subr.bf16.mxu0 0
      %4075 = vmatpush1.bf16.msra.mxu0 0
      %4076 = vmatprep.subr.bf16.mxu0 0
      %4077 = vmatpush1.bf16.msra.mxu0 0
      %4078 = vmatprep.subr.bf16.mxu0 0
      %4079 = vmatpush1.bf16.msra.mxu0 0
      %4080 = vmatprep.subr.bf16.mxu0 0
      %4081 = vmatpush1.bf16.msra.mxu0 0
      %4082 = vmatprep.subr.bf16.mxu0 0
      %4083 = vmatpush1.bf16.msra.mxu0 0
      %4084 = vmatprep.subr.bf16.mxu0 0
      %4085 = vmatpush1.bf16.msra.mxu0 0
      %4086 = vmatprep.subr.bf16.mxu0 0
      %4087 = vmatpush1.bf16.msra.mxu0 0
      %4088 = vmatprep.subr.bf16.mxu0 0
      %4089 = vmatpush1.bf16.msra.mxu0 0
      %4090 = vmatprep.subr.bf16.mxu0 0
      %4091 = vmatpush1.bf16.msra.mxu0 0
      %4092 = vmatprep.mubr.bf16.mxu0 0
      %4093 = vmatmul.mubr.bf16.gmra.mrb[0].mxu0 %v4058
      %v4094 = vpop.f32.mrb[0].mxu0
      %v4095 = vadd.f32 0.0, %v4094
      %v4096 = vpop.f32.mrb[0].mxu0
      %v4097 = vpop.f32.mrb[0].mxu0
      %v4098 = vpop.f32.mrb[0].mxu0
      %4099 = vdwg.mxu0
      %v4100 = vpack.c.bf16 %v4095, %v4095
      %s4101 = scalar_lea.vmem %s9, 16
      %v4102 = vld [vmem:[%s4101] sm:$0xf]
      %v4103 = vld [vmem:[%s4101 + $0x4] sm:$0xf]
      %v4106 = vunpack.c.l.b16 %v4102
      %v4107 = vunpack.c.l.b16 %v4103
      %v4108 = vpack.c.b16 %v4107, %v4106
      %v4111 = vsel %vm3816, %v4100, 0
      %4113 = vmatprep.subr.bf16.mxu0 0
      %4114 = vmatpush1.bf16.msra.mxu0 %v4108
      %4115 = vmatprep.subr.bf16.mxu0 0
      %4116 = vmatpush1.bf16.msra.mxu0 0
      %4117 = vmatprep.subr.bf16.mxu0 0
      %4118 = vmatpush1.bf16.msra.mxu0 0
      %4119 = vmatprep.subr.bf16.mxu0 0
      %4120 = vmatpush1.bf16.msra.mxu0 0
      %4121 = vmatprep.subr.bf16.mxu0 0
      %4122 = vmatpush1.bf16.msra.mxu0 0
      %4123 = vmatprep.subr.bf16.mxu0 0
      %4124 = vmatpush1.bf16.msra.mxu0 0
      %4125 = vmatprep.subr.bf16.mxu0 0
      %4126 = vmatpush1.bf16.msra.mxu0 0
      %4127 = vmatprep.subr.bf16.mxu0 0
      %4128 = vmatpush1.bf16.msra.mxu0 0
      %4129 = vmatprep.subr.bf16.mxu0 0
      %4130 = vmatpush1.bf16.msra.mxu0 0
      %4131 = vmatprep.subr.bf16.mxu0 0
      %4132 = vmatpush1.bf16.msra.mxu0 0
      %4133 = vmatprep.subr.bf16.mxu0 0
      %4134 = vmatpush1.bf16.msra.mxu0 0
      %4135 = vmatprep.subr.bf16.mxu0 0
      %4136 = vmatpush1.bf16.msra.mxu0 0
      %4137 = vmatprep.subr.bf16.mxu0 0
      %4138 = vmatpush1.bf16.msra.mxu0 0
      %4139 = vmatprep.subr.bf16.mxu0 0
      %4140 = vmatpush1.bf16.msra.mxu0 0
      %4141 = vmatprep.subr.bf16.mxu0 0
      %4142 = vmatpush1.bf16.msra.mxu0 0
      %4143 = vmatprep.subr.bf16.mxu0 0
      %4144 = vmatpush1.bf16.msra.mxu0 0
      %4145 = vmatprep.mubr.bf16.mxu0 0
      %4146 = vmatmul.mubr.bf16.gmra.mrb[0].mxu0 %v4111
      %v4147 = vpop.f32.mrb[0].mxu0
      %v4148 = vadd.f32 0.0, %v4147
      %v4149 = vpop.f32.mrb[0].mxu0
      %v4150 = vpop.f32.mrb[0].mxu0
      %v4151 = vpop.f32.mrb[0].mxu0
      %4152 = vdwg.mxu0
      %v4153 = vadd.f32 %v4054, %v4148
      %s4154 = scalar_lea.vmem %s11, 6
      %v4155 = vld [vmem:[%s4154] sm:$0x3]
      %v4157 = vsel %vm3816, %v4155, 0
      %4159 = vmatprep.subr.bf16.mxu0 0
      %4160 = vmatpush1.bf16.msra.mxu0 %v3850
      %4161 = vmatprep.subr.bf16.mxu0 0
      %4162 = vmatpush1.bf16.msra.mxu0 0
      %4163 = vmatprep.subr.bf16.mxu0 0
      %4164 = vmatpush1.bf16.msra.mxu0 0
      %4165 = vmatprep.subr.bf16.mxu0 0
      %4166 = vmatpush1.bf16.msra.mxu0 0
      %4167 = vmatprep.subr.bf16.mxu0 0
      %4168 = vmatpush1.bf16.msra.mxu0 0
      %4169 = vmatprep.subr.bf16.mxu0 0
      %4170 = vmatpush1.bf16.msra.mxu0 0
      %4171 = vmatprep.subr.bf16.mxu0 0
      %4172 = vmatpush1.bf16.msra.mxu0 0
      %4173 = vmatprep.subr.bf16.mxu0 0
      %4174 = vmatpush1.bf16.msra.mxu0 0
      %4175 = vmatprep.subr.bf16.mxu0 0
      %4176 = vmatpush1.bf16.msra.mxu0 0
      %4177 = vmatprep.subr.bf16.mxu0 0
      %4178 = vmatpush1.bf16.msra.mxu0 0
      %4179 = vmatprep.subr.bf16.mxu0 0
      %4180 = vmatpush1.bf16.msra.mxu0 0
      %4181 = vmatprep.subr.bf16.mxu0 0
      %4182 = vmatpush1.bf16.msra.mxu0 0
      %4183 = vmatprep.subr.bf16.mxu0 0
      %4184 = vmatpush1.bf16.msra.mxu0 0
      %4185 = vmatprep.subr.bf16.mxu0 0
      %4186 = vmatpush1.bf16.msra.mxu0 0
      %4187 = vmatprep.subr.bf16.mxu0 0
      %4188 = vmatpush1.bf16.msra.mxu0 0
      %4189 = vmatprep.subr.bf16.mxu0 0
      %4190 = vmatpush1.bf16.msra.mxu0 0
      %4191 = vmatprep.mubr.bf16.mxu0 0
      %4192 = vmatmul.mubr.bf16.gmra.mrb[0].mxu0 %v4157
      %v4193 = vpop.f32.mrb[0].mxu0
      %v4194 = vadd.f32 0.0, %v4193
      %v4195 = vpop.f32.mrb[0].mxu0
      %v4196 = vpop.f32.mrb[0].mxu0
      %v4197 = vpop.f32.mrb[0].mxu0
      %4198 = vdwg.mxu0
      %v4199 = vpack.c.bf16 %v4194, %v4194
      %s4200 = scalar_lea.vmem %s9, 24
      %v4201 = vld [vmem:[%s4200] sm:$0xf]
      %v4202 = vld [vmem:[%s4200 + $0x4] sm:$0xf]
      %v4205 = vunpack.c.l.b16 %v4201
      %v4206 = vunpack.c.l.b16 %v4202
      %v4207 = vpack.c.b16 %v4206, %v4205
      %v4210 = vsel %vm3816, %v4199, 0
      %4212 = vmatprep.subr.bf16.mxu0 0
      %4213 = vmatpush1.bf16.msra.mxu0 %v4207
      %4214 = vmatprep.subr.bf16.mxu0 0
      %4215 = vmatpush1.bf16.msra.mxu0 0
      %4216 = vmatprep.subr.bf16.mxu0 0
      %4217 = vmatpush1.bf16.msra.mxu0 0
      %4218 = vmatprep.subr.bf16.mxu0 0
      %4219 = vmatpush1.bf16.msra.mxu0 0
      %4220 = vmatprep.subr.bf16.mxu0 0
      %4221 = vmatpush1.bf16.msra.mxu0 0
      %4222 = vmatprep.subr.bf16.mxu0 0
      %4223 = vmatpush1.bf16.msra.mxu0 0
      %4224 = vmatprep.subr.bf16.mxu0 0
      %4225 = vmatpush1.bf16.msra.mxu0 0
      %4226 = vmatprep.subr.bf16.mxu0 0
      %4227 = vmatpush1.bf16.msra.mxu0 0
      %4228 = vmatprep.subr.bf16.mxu0 0
      %4229 = vmatpush1.bf16.msra.mxu0 0
      %4230 = vmatprep.subr.bf16.mxu0 0
      %4231 = vmatpush1.bf16.msra.mxu0 0
      %4232 = vmatprep.subr.bf16.mxu0 0
      %4233 = vmatpush1.bf16.msra.mxu0 0
      %4234 = vmatprep.subr.bf16.mxu0 0
      %4235 = vmatpush1.bf16.msra.mxu0 0
      %4236 = vmatprep.subr.bf16.mxu0 0
      %4237 = vmatpush1.bf16.msra.mxu0 0
      %4238 = vmatprep.subr.bf16.mxu0 0
      %4239 = vmatpush1.bf16.msra.mxu0 0
      %4240 = vmatprep.subr.bf16.mxu0 0
      %4241 = vmatpush1.bf16.msra.mxu0 0
      %4242 = vmatprep.subr.bf16.mxu0 0
      %4243 = vmatpush1.bf16.msra.mxu0 0
      %4244 = vmatprep.mubr.bf16.mxu0 0
      %4245 = vmatmul.mubr.bf16.gmra.mrb[0].mxu0 %v4210
      %v4246 = vpop.f32.mrb[0].mxu0
      %v4247 = vadd.f32 0.0, %v4246
      %v4248 = vpop.f32.mrb[0].mxu0
      %v4249 = vpop.f32.mrb[0].mxu0
      %v4250 = vpop.f32.mrb[0].mxu0
      %4251 = vdwg.mxu0
      %v4252 = vadd.f32 %v4153, %v4247
      %s4253 = scalar_lea.vmem %s11, 8
      %v4254 = vld [vmem:[%s4253] sm:$0x3]
      %v4256 = vsel %vm3816, %v4254, 0
      %4258 = vmatprep.subr.bf16.mxu0 0
      %4259 = vmatpush1.bf16.msra.mxu0 %v3850
      %4260 = vmatprep.subr.bf16.mxu0 0
      %4261 = vmatpush1.bf16.msra.mxu0 0
      %4262 = vmatprep.subr.bf16.mxu0 0
      %4263 = vmatpush1.bf16.msra.mxu0 0
      %4264 = vmatprep.subr.bf16.mxu0 0
      %4265 = vmatpush1.bf16.msra.mxu0 0
      %4266 = vmatprep.subr.bf16.mxu0 0
      %4267 = vmatpush1.bf16.msra.mxu0 0
      %4268 = vmatprep.subr.bf16.mxu0 0
      %4269 = vmatpush1.bf16.msra.mxu0 0
      %4270 = vmatprep.subr.bf16.mxu0 0
      %4271 = vmatpush1.bf16.msra.mxu0 0
      %4272 = vmatprep.subr.bf16.mxu0 0
      %4273 = vmatpush1.bf16.msra.mxu0 0
      %4274 = vmatprep.subr.bf16.mxu0 0
      %4275 = vmatpush1.bf16.msra.mxu0 0
      %4276 = vmatprep.subr.bf16.mxu0 0
      %4277 = vmatpush1.bf16.msra.mxu0 0
      %4278 = vmatprep.subr.bf16.mxu0 0
      %4279 = vmatpush1.bf16.msra.mxu0 0
      %4280 = vmatprep.subr.bf16.mxu0 0
      %4281 = vmatpush1.bf16.msra.mxu0 0
      %4282 = vmatprep.subr.bf16.mxu0 0
      %4283 = vmatpush1.bf16.msra.mxu0 0
      %4284 = vmatprep.subr.bf16.mxu0 0
      %4285 = vmatpush1.bf16.msra.mxu0 0
      %4286 = vmatprep.subr.bf16.mxu0 0
      %4287 = vmatpush1.bf16.msra.mxu0 0
      %4288 = vmatprep.subr.bf16.mxu0 0
      %4289 = vmatpush1.bf16.msra.mxu0 0
      %4290 = vmatprep.mubr.bf16.mxu0 0
      %4291 = vmatmul.mubr.bf16.gmra.mrb[0].mxu0 %v4256
      %v4292 = vpop.f32.mrb[0].mxu0
      %v4293 = vadd.f32 0.0, %v4292
      %v4294 = vpop.f32.mrb[0].mxu0
      %v4295 = vpop.f32.mrb[0].mxu0
      %v4296 = vpop.f32.mrb[0].mxu0
      %4297 = vdwg.mxu0
      %v4298 = vpack.c.bf16 %v4293, %v4293
      %s4299 = scalar_lea.vmem %s9, 32
      %v4300 = vld [vmem:[%s4299] sm:$0xf]
      %v4301 = vld [vmem:[%s4299 + $0x4] sm:$0xf]
      %v4304 = vunpack.c.l.b16 %v4300
      %v4305 = vunpack.c.l.b16 %v4301
      %v4306 = vpack.c.b16 %v4305, %v4304
      %v4309 = vsel %vm3816, %v4298, 0
      %4311 = vmatprep.subr.bf16.mxu0 0
      %4312 = vmatpush1.bf16.msra.mxu0 %v4306
      %4313 = vmatprep.subr.bf16.mxu0 0
      %4314 = vmatpush1.bf16.msra.mxu0 0
      %4315 = vmatprep.subr.bf16.mxu0 0
      %4316 = vmatpush1.bf16.msra.mxu0 0
      %4317 = vmatprep.subr.bf16.mxu0 0
      %4318 = vmatpush1.bf16.msra.mxu0 0
      %4319 = vmatprep.subr.bf16.mxu0 0
      %4320 = vmatpush1.bf16.msra.mxu0 0
      %4321 = vmatprep.subr.bf16.mxu0 0
      %4322 = vmatpush1.bf16.msra.mxu0 0
      %4323 = vmatprep.subr.bf16.mxu0 0
      %4324 = vmatpush1.bf16.msra.mxu0 0
      %4325 = vmatprep.subr.bf16.mxu0 0
      %4326 = vmatpush1.bf16.msra.mxu0 0
      %4327 = vmatprep.subr.bf16.mxu0 0
      %4328 = vmatpush1.bf16.msra.mxu0 0
      %4329 = vmatprep.subr.bf16.mxu0 0
      %4330 = vmatpush1.bf16.msra.mxu0 0
      %4331 = vmatprep.subr.bf16.mxu0 0
      %4332 = vmatpush1.bf16.msra.mxu0 0
      %4333 = vmatprep.subr.bf16.mxu0 0
      %4334 = vmatpush1.bf16.msra.mxu0 0
      %4335 = vmatprep.subr.bf16.mxu0 0
      %4336 = vmatpush1.bf16.msra.mxu0 0
      %4337 = vmatprep.subr.bf16.mxu0 0
      %4338 = vmatpush1.bf16.msra.mxu0 0
      %4339 = vmatprep.subr.bf16.mxu0 0
      %4340 = vmatpush1.bf16.msra.mxu0 0
      %4341 = vmatprep.subr.bf16.mxu0 0
      %4342 = vmatpush1.bf16.msra.mxu0 0
      %4343 = vmatprep.mubr.bf16.mxu0 0
      %4344 = vmatmul.mubr.bf16.gmra.mrb[0].mxu0 %v4309
      %v4345 = vpop.f32.mrb[0].mxu0
      %v4346 = vadd.f32 0.0, %v4345
      %v4347 = vpop.f32.mrb[0].mxu0
      %v4348 = vpop.f32.mrb[0].mxu0
      %v4349 = vpop.f32.mrb[0].mxu0
      %4350 = vdwg.mxu0
      %v4351 = vadd.f32 %v4252, %v4346
      %s4352 = scalar_lea.vmem %s11, 10
      %v4353 = vld [vmem:[%s4352] sm:$0x3]
      %v4355 = vsel %vm3816, %v4353, 0
      %4357 = vmatprep.subr.bf16.mxu0 0
      %4358 = vmatpush1.bf16.msra.mxu0 %v3850
      %4359 = vmatprep.subr.bf16.mxu0 0
      %4360 = vmatpush1.bf16.msra.mxu0 0
      %4361 = vmatprep.subr.bf16.mxu0 0
      %4362 = vmatpush1.bf16.msra.mxu0 0
      %4363 = vmatprep.subr.bf16.mxu0 0
      %4364 = vmatpush1.bf16.msra.mxu0 0
      %4365 = vmatprep.subr.bf16.mxu0 0
      %4366 = vmatpush1.bf16.msra.mxu0 0
      %4367 = vmatprep.subr.bf16.mxu0 0
      %4368 = vmatpush1.bf16.msra.mxu0 0
      %4369 = vmatprep.subr.bf16.mxu0 0
      %4370 = vmatpush1.bf16.msra.mxu0 0
      %4371 = vmatprep.subr.bf16.mxu0 0
      %4372 = vmatpush1.bf16.msra.mxu0 0
      %4373 = vmatprep.subr.bf16.mxu0 0
      %4374 = vmatpush1.bf16.msra.mxu0 0
      %4375 = vmatprep.subr.bf16.mxu0 0
      %4376 = vmatpush1.bf16.msra.mxu0 0
      %4377 = vmatprep.subr.bf16.mxu0 0
      %4378 = vmatpush1.bf16.msra.mxu0 0
      %4379 = vmatprep.subr.bf16.mxu0 0
      %4380 = vmatpush1.bf16.msra.mxu0 0
      %4381 = vmatprep.subr.bf16.mxu0 0
      %4382 = vmatpush1.bf16.msra.mxu0 0
      %4383 = vmatprep.subr.bf16.mxu0 0
      %4384 = vmatpush1.bf16.msra.mxu0 0
      %4385 = vmatprep.subr.bf16.mxu0 0
      %4386 = vmatpush1.bf16.msra.mxu0 0
      %4387 = vmatprep.subr.bf16.mxu0 0
      %4388 = vmatpush1.bf16.msra.mxu0 0
      %4389 = vmatprep.mubr.bf16.mxu0 0
      %4390 = vmatmul.mubr.bf16.gmra.mrb[0].mxu0 %v4355
      %v4391 = vpop.f32.mrb[0].mxu0
      %v4392 = vadd.f32 0.0, %v4391
      %v4393 = vpop.f32.mrb[0].mxu0
      %v4394 = vpop.f32.mrb[0].mxu0
      %v4395 = vpop.f32.mrb[0].mxu0
      %4396 = vdwg.mxu0
      %v4397 = vpack.c.bf16 %v4392, %v4392
      %s4398 = scalar_lea.vmem %s9, 40
      %v4399 = vld [vmem:[%s4398] sm:$0xf]
      %v4400 = vld [vmem:[%s4398 + $0x4] sm:$0xf]
      %v4403 = vunpack.c.l.b16 %v4399
      %v4404 = vunpack.c.l.b16 %v4400
      %v4405 = vpack.c.b16 %v4404, %v4403
      %v4408 = vsel %vm3816, %v4397, 0
      %4410 = vmatprep.subr.bf16.mxu0 0
      %4411 = vmatpush1.bf16.msra.mxu0 %v4405
      %4412 = vmatprep.subr.bf16.mxu0 0
      %4413 = vmatpush1.bf16.msra.mxu0 0
      %4414 = vmatprep.subr.bf16.mxu0 0
      %4415 = vmatpush1.bf16.msra.mxu0 0
      %4416 = vmatprep.subr.bf16.mxu0 0
      %4417 = vmatpush1.bf16.msra.mxu0 0
      %4418 = vmatprep.subr.bf16.mxu0 0
      %4419 = vmatpush1.bf16.msra.mxu0 0
      %4420 = vmatprep.subr.bf16.mxu0 0
      %4421 = vmatpush1.bf16.msra.mxu0 0
      %4422 = vmatprep.subr.bf16.mxu0 0
      %4423 = vmatpush1.bf16.msra.mxu0 0
      %4424 = vmatprep.subr.bf16.mxu0 0
      %4425 = vmatpush1.bf16.msra.mxu0 0
      %4426 = vmatprep.subr.bf16.mxu0 0
      %4427 = vmatpush1.bf16.msra.mxu0 0
      %4428 = vmatprep.subr.bf16.mxu0 0
      %4429 = vmatpush1.bf16.msra.mxu0 0
      %4430 = vmatprep.subr.bf16.mxu0 0
      %4431 = vmatpush1.bf16.msra.mxu0 0
      %4432 = vmatprep.subr.bf16.mxu0 0
      %4433 = vmatpush1.bf16.msra.mxu0 0
      %4434 = vmatprep.subr.bf16.mxu0 0
      %4435 = vmatpush1.bf16.msra.mxu0 0
      %4436 = vmatprep.subr.bf16.mxu0 0
      %4437 = vmatpush1.bf16.msra.mxu0 0
      %4438 = vmatprep.subr.bf16.mxu0 0
      %4439 = vmatpush1.bf16.msra.mxu0 0
      %4440 = vmatprep.subr.bf16.mxu0 0
      %4441 = vmatpush1.bf16.msra.mxu0 0
      %4442 = vmatprep.mubr.bf16.mxu0 0
      %4443 = vmatmul.mubr.bf16.gmra.mrb[0].mxu0 %v4408
      %v4444 = vpop.f32.mrb[0].mxu0
      %v4445 = vadd.f32 0.0, %v4444
      %v4446 = vpop.f32.mrb[0].mxu0
      %v4447 = vpop.f32.mrb[0].mxu0
      %v4448 = vpop.f32.mrb[0].mxu0
      %4449 = vdwg.mxu0
      %v4450 = vadd.f32 %v4351, %v4445
      %s4451 = scalar_lea.vmem %s11, 12
      %v4452 = vld [vmem:[%s4451] sm:$0x3]
      %v4454 = vsel %vm3816, %v4452, 0
      %4456 = vmatprep.subr.bf16.mxu0 0
      %4457 = vmatpush1.bf16.msra.mxu0 %v3850
      %4458 = vmatprep.subr.bf16.mxu0 0
      %4459 = vmatpush1.bf16.msra.mxu0 0
      %4460 = vmatprep.subr.bf16.mxu0 0
      %4461 = vmatpush1.bf16.msra.mxu0 0
      %4462 = vmatprep.subr.bf16.mxu0 0
      %4463 = vmatpush1.bf16.msra.mxu0 0
      %4464 = vmatprep.subr.bf16.mxu0 0
      %4465 = vmatpush1.bf16.msra.mxu0 0
      %4466 = vmatprep.subr.bf16.mxu0 0
      %4467 = vmatpush1.bf16.msra.mxu0 0
      %4468 = vmatprep.subr.bf16.mxu0 0
      %4469 = vmatpush1.bf16.msra.mxu0 0
      %4470 = vmatprep.subr.bf16.mxu0 0
      %4471 = vmatpush1.bf16.msra.mxu0 0
      %4472 = vmatprep.subr.bf16.mxu0 0
      %4473 = vmatpush1.bf16.msra.mxu0 0
      %4474 = vmatprep.subr.bf16.mxu0 0
      %4475 = vmatpush1.bf16.msra.mxu0 0
      %4476 = vmatprep.subr.bf16.mxu0 0
      %4477 = vmatpush1.bf16.msra.mxu0 0
      %4478 = vmatprep.subr.bf16.mxu0 0
      %4479 = vmatpush1.bf16.msra.mxu0 0
      %4480 = vmatprep.subr.bf16.mxu0 0
      %4481 = vmatpush1.bf16.msra.mxu0 0
      %4482 = vmatprep.subr.bf16.mxu0 0
      %4483 = vmatpush1.bf16.msra.mxu0 0
      %4484 = vmatprep.subr.bf16.mxu0 0
      %4485 = vmatpush1.bf16.msra.mxu0 0
      %4486 = vmatprep.subr.bf16.mxu0 0
      %4487 = vmatpush1.bf16.msra.mxu0 0
      %4488 = vmatprep.mubr.bf16.mxu0 0
      %4489 = vmatmul.mubr.bf16.gmra.mrb[0].mxu0 %v4454
      %v4490 = vpop.f32.mrb[0].mxu0
      %v4491 = vadd.f32 0.0, %v4490
      %v4492 = vpop.f32.mrb[0].mxu0
      %v4493 = vpop.f32.mrb[0].mxu0
      %v4494 = vpop.f32.mrb[0].mxu0
      %4495 = vdwg.mxu0
      %v4496 = vpack.c.bf16 %v4491, %v4491
      %s4497 = scalar_lea.vmem %s9, 48
      %v4498 = vld [vmem:[%s4497] sm:$0xf]
      %v4499 = vld [vmem:[%s4497 + $0x4] sm:$0xf]
      %v4502 = vunpack.c.l.b16 %v4498
      %v4503 = vunpack.c.l.b16 %v4499
      %v4504 = vpack.c.b16 %v4503, %v4502
      %v4507 = vsel %vm3816, %v4496, 0
      %4509 = vmatprep.subr.bf16.mxu0 0
      %4510 = vmatpush1.bf16.msra.mxu0 %v4504
      %4511 = vmatprep.subr.bf16.mxu0 0
      %4512 = vmatpush1.bf16.msra.mxu0 0
      %4513 = vmatprep.subr.bf16.mxu0 0
      %4514 = vmatpush1.bf16.msra.mxu0 0
      %4515 = vmatprep.subr.bf16.mxu0 0
      %4516 = vmatpush1.bf16.msra.mxu0 0
      %4517 = vmatprep.subr.bf16.mxu0 0
      %4518 = vmatpush1.bf16.msra.mxu0 0
      %4519 = vmatprep.subr.bf16.mxu0 0
      %4520 = vmatpush1.bf16.msra.mxu0 0
      %4521 = vmatprep.subr.bf16.mxu0 0
      %4522 = vmatpush1.bf16.msra.mxu0 0
      %4523 = vmatprep.subr.bf16.mxu0 0
      %4524 = vmatpush1.bf16.msra.mxu0 0
      %4525 = vmatprep.subr.bf16.mxu0 0
      %4526 = vmatpush1.bf16.msra.mxu0 0
      %4527 = vmatprep.subr.bf16.mxu0 0
      %4528 = vmatpush1.bf16.msra.mxu0 0
      %4529 = vmatprep.subr.bf16.mxu0 0
      %4530 = vmatpush1.bf16.msra.mxu0 0
      %4531 = vmatprep.subr.bf16.mxu0 0
      %4532 = vmatpush1.bf16.msra.mxu0 0
      %4533 = vmatprep.subr.bf16.mxu0 0
      %4534 = vmatpush1.bf16.msra.mxu0 0
      %4535 = vmatprep.subr.bf16.mxu0 0
      %4536 = vmatpush1.bf16.msra.mxu0 0
      %4537 = vmatprep.subr.bf16.mxu0 0
      %4538 = vmatpush1.bf16.msra.mxu0 0
      %4539 = vmatprep.subr.bf16.mxu0 0
      %4540 = vmatpush1.bf16.msra.mxu0 0
      %4541 = vmatprep.mubr.bf16.mxu0 0
      %4542 = vmatmul.mubr.bf16.gmra.mrb[0].mxu0 %v4507
      %v4543 = vpop.f32.mrb[0].mxu0
      %v4544 = vadd.f32 0.0, %v4543
      %v4545 = vpop.f32.mrb[0].mxu0
      %v4546 = vpop.f32.mrb[0].mxu0
      %v4547 = vpop.f32.mrb[0].mxu0
      %4548 = vdwg.mxu0
      %v4549 = vadd.f32 %v4450, %v4544
      %s4550 = scalar_lea.vmem %s11, 14
      %v4551 = vld [vmem:[%s4550] sm:$0x3]
      %v4553 = vsel %vm3816, %v4551, 0
      %4555 = vmatprep.subr.bf16.mxu0 0
      %4556 = vmatpush1.bf16.msra.mxu0 %v3850
      %4557 = vmatprep.subr.bf16.mxu0 0
      %4558 = vmatpush1.bf16.msra.mxu0 0
      %4559 = vmatprep.subr.bf16.mxu0 0
      %4560 = vmatpush1.bf16.msra.mxu0 0
      %4561 = vmatprep.subr.bf16.mxu0 0
      %4562 = vmatpush1.bf16.msra.mxu0 0
      %4563 = vmatprep.subr.bf16.mxu0 0
      %4564 = vmatpush1.bf16.msra.mxu0 0
      %4565 = vmatprep.subr.bf16.mxu0 0
      %4566 = vmatpush1.bf16.msra.mxu0 0
      %4567 = vmatprep.subr.bf16.mxu0 0
      %4568 = vmatpush1.bf16.msra.mxu0 0
      %4569 = vmatprep.subr.bf16.mxu0 0
      %4570 = vmatpush1.bf16.msra.mxu0 0
      %4571 = vmatprep.subr.bf16.mxu0 0
      %4572 = vmatpush1.bf16.msra.mxu0 0
      %4573 = vmatprep.subr.bf16.mxu0 0
      %4574 = vmatpush1.bf16.msra.mxu0 0
      %4575 = vmatprep.subr.bf16.mxu0 0
      %4576 = vmatpush1.bf16.msra.mxu0 0
      %4577 = vmatprep.subr.bf16.mxu0 0
      %4578 = vmatpush1.bf16.msra.mxu0 0
      %4579 = vmatprep.subr.bf16.mxu0 0
      %4580 = vmatpush1.bf16.msra.mxu0 0
      %4581 = vmatprep.subr.bf16.mxu0 0
      %4582 = vmatpush1.bf16.msra.mxu0 0
      %4583 = vmatprep.subr.bf16.mxu0 0
      %4584 = vmatpush1.bf16.msra.mxu0 0
      %4585 = vmatprep.subr.bf16.mxu0 0
      %4586 = vmatpush1.bf16.msra.mxu0 0
      %4587 = vmatprep.mubr.bf16.mxu0 0
      %4588 = vmatmul.mubr.bf16.gmra.mrb[0].mxu0 %v4553
      %v4589 = vpop.f32.mrb[0].mxu0
      %v4590 = vadd.f32 0.0, %v4589
      %v4591 = vpop.f32.mrb[0].mxu0
      %v4592 = vpop.f32.mrb[0].mxu0
      %v4593 = vpop.f32.mrb[0].mxu0
      %4594 = vdwg.mxu0
      %v4595 = vpack.c.bf16 %v4590, %v4590
      %s4596 = scalar_lea.vmem %s9, 56
      %v4597 = vld [vmem:[%s4596] sm:$0xf]
      %v4598 = vld [vmem:[%s4596 + $0x4] sm:$0xf]
      %v4601 = vunpack.c.l.b16 %v4597
      %v4602 = vunpack.c.l.b16 %v4598
      %v4603 = vpack.c.b16 %v4602, %v4601
      %v4606 = vsel %vm3816, %v4595, 0
      %4608 = vmatprep.subr.bf16.mxu0 0
      %4609 = vmatpush1.bf16.msra.mxu0 %v4603
      %4610 = vmatprep.subr.bf16.mxu0 0
      %4611 = vmatpush1.bf16.msra.mxu0 0
      %4612 = vmatprep.subr.bf16.mxu0 0
      %4613 = vmatpush1.bf16.msra.mxu0 0
      %4614 = vmatprep.subr.bf16.mxu0 0
      %4615 = vmatpush1.bf16.msra.mxu0 0
      %4616 = vmatprep.subr.bf16.mxu0 0
      %4617 = vmatpush1.bf16.msra.mxu0 0
      %4618 = vmatprep.subr.bf16.mxu0 0
      %4619 = vmatpush1.bf16.msra.mxu0 0
      %4620 = vmatprep.subr.bf16.mxu0 0
      %4621 = vmatpush1.bf16.msra.mxu0 0
      %4622 = vmatprep.subr.bf16.mxu0 0
      %4623 = vmatpush1.bf16.msra.mxu0 0
      %4624 = vmatprep.subr.bf16.mxu0 0
      %4625 = vmatpush1.bf16.msra.mxu0 0
      %4626 = vmatprep.subr.bf16.mxu0 0
      %4627 = vmatpush1.bf16.msra.mxu0 0
      %4628 = vmatprep.subr.bf16.mxu0 0
      %4629 = vmatpush1.bf16.msra.mxu0 0
      %4630 = vmatprep.subr.bf16.mxu0 0
      %4631 = vmatpush1.bf16.msra.mxu0 0
      %4632 = vmatprep.subr.bf16.mxu0 0
      %4633 = vmatpush1.bf16.msra.mxu0 0
      %4634 = vmatprep.subr.bf16.mxu0 0
      %4635 = vmatpush1.bf16.msra.mxu0 0
      %4636 = vmatprep.subr.bf16.mxu0 0
      %4637 = vmatpush1.bf16.msra.mxu0 0
      %4638 = vmatprep.subr.bf16.mxu0 0
      %4639 = vmatpush1.bf16.msra.mxu0 0
      %4640 = vmatprep.mubr.bf16.mxu0 0
      %4641 = vmatmul.mubr.bf16.gmra.mrb[0].mxu0 %v4606
      %v4642 = vpop.f32.mrb[0].mxu0
      %v4643 = vadd.f32 0.0, %v4642
      %v4644 = vpop.f32.mrb[0].mxu0
      %v4645 = vpop.f32.mrb[0].mxu0
      %v4646 = vpop.f32.mrb[0].mxu0
      %4647 = vdwg.mxu0
      %v4648 = vadd.f32 %v4549, %v4643
      %s4649 = scalar_lea.vmem %s11, 16
      %v4650 = vld [vmem:[%s4649] sm:$0x3]
      %v4652 = vsel %vm3816, %v4650, 0
      %4654 = vmatprep.subr.bf16.mxu0 0
      %4655 = vmatpush1.bf16.msra.mxu0 %v3850
      %4656 = vmatprep.subr.bf16.mxu0 0
      %4657 = vmatpush1.bf16.msra.mxu0 0
      %4658 = vmatprep.subr.bf16.mxu0 0
      %4659 = vmatpush1.bf16.msra.mxu0 0
      %4660 = vmatprep.subr.bf16.mxu0 0
      %4661 = vmatpush1.bf16.msra.mxu0 0
      %4662 = vmatprep.subr.bf16.mxu0 0
      %4663 = vmatpush1.bf16.msra.mxu0 0
      %4664 = vmatprep.subr.bf16.mxu0 0
      %4665 = vmatpush1.bf16.msra.mxu0 0
      %4666 = vmatprep.subr.bf16.mxu0 0
      %4667 = vmatpush1.bf16.msra.mxu0 0
      %4668 = vmatprep.subr.bf16.mxu0 0
      %4669 = vmatpush1.bf16.msra.mxu0 0
      %4670 = vmatprep.subr.bf16.mxu0 0
      %4671 = vmatpush1.bf16.msra.mxu0 0
      %4672 = vmatprep.subr.bf16.mxu0 0
      %4673 = vmatpush1.bf16.msra.mxu0 0
      %4674 = vmatprep.subr.bf16.mxu0 0
      %4675 = vmatpush1.bf16.msra.mxu0 0
      %4676 = vmatprep.subr.bf16.mxu0 0
      %4677 = vmatpush1.bf16.msra.mxu0 0
      %4678 = vmatprep.subr.bf16.mxu0 0
      %4679 = vmatpush1.bf16.msra.mxu0 0
      %4680 = vmatprep.subr.bf16.mxu0 0
      %4681 = vmatpush1.bf16.msra.mxu0 0
      %4682 = vmatprep.subr.bf16.mxu0 0
      %4683 = vmatpush1.bf16.msra.mxu0 0
      %4684 = vmatprep.subr.bf16.mxu0 0
      %4685 = vmatpush1.bf16.msra.mxu0 0
      %4686 = vmatprep.mubr.bf16.mxu0 0
      %4687 = vmatmul.mubr.bf16.gmra.mrb[0].mxu0 %v4652
      %v4688 = vpop.f32.mrb[0].mxu0
      %v4689 = vadd.f32 0.0, %v4688
      %v4690 = vpop.f32.mrb[0].mxu0
      %v4691 = vpop.f32.mrb[0].mxu0
      %v4692 = vpop.f32.mrb[0].mxu0
      %4693 = vdwg.mxu0
      %v4694 = vpack.c.bf16 %v4689, %v4689
      %s4695 = scalar_lea.vmem %s9, 64
      %v4696 = vld [vmem:[%s4695] sm:$0xf]
      %v4697 = vld [vmem:[%s4695 + $0x4] sm:$0xf]
      %v4700 = vunpack.c.l.b16 %v4696
      %v4701 = vunpack.c.l.b16 %v4697
      %v4702 = vpack.c.b16 %v4701, %v4700
      %v4705 = vsel %vm3816, %v4694, 0
      %4707 = vmatprep.subr.bf16.mxu0 0
      %4708 = vmatpush1.bf16.msra.mxu0 %v4702
      %4709 = vmatprep.subr.bf16.mxu0 0
      %4710 = vmatpush1.bf16.msra.mxu0 0
      %4711 = vmatprep.subr.bf16.mxu0 0
      %4712 = vmatpush1.bf16.msra.mxu0 0
      %4713 = vmatprep.subr.bf16.mxu0 0
      %4714 = vmatpush1.bf16.msra.mxu0 0
      %4715 = vmatprep.subr.bf16.mxu0 0
      %4716 = vmatpush1.bf16.msra.mxu0 0
      %4717 = vmatprep.subr.bf16.mxu0 0
      %4718 = vmatpush1.bf16.msra.mxu0 0
      %4719 = vmatprep.subr.bf16.mxu0 0
      %4720 = vmatpush1.bf16.msra.mxu0 0
      %4721 = vmatprep.subr.bf16.mxu0 0
      %4722 = vmatpush1.bf16.msra.mxu0 0
      %4723 = vmatprep.subr.bf16.mxu0 0
      %4724 = vmatpush1.bf16.msra.mxu0 0
      %4725 = vmatprep.subr.bf16.mxu0 0
      %4726 = vmatpush1.bf16.msra.mxu0 0
      %4727 = vmatprep.subr.bf16.mxu0 0
      %4728 = vmatpush1.bf16.msra.mxu0 0
      %4729 = vmatprep.subr.bf16.mxu0 0
      %4730 = vmatpush1.bf16.msra.mxu0 0
      %4731 = vmatprep.subr.bf16.mxu0 0
      %4732 = vmatpush1.bf16.msra.mxu0 0
      %4733 = vmatprep.subr.bf16.mxu0 0
      %4734 = vmatpush1.bf16.msra.mxu0 0
      %4735 = vmatprep.subr.bf16.mxu0 0
      %4736 = vmatpush1.bf16.msra.mxu0 0
      %4737 = vmatprep.subr.bf16.mxu0 0
      %4738 = vmatpush1.bf16.msra.mxu0 0
      %4739 = vmatprep.mubr.bf16.mxu0 0
      %4740 = vmatmul.mubr.bf16.gmra.mrb[0].mxu0 %v4705
      %v4741 = vpop.f32.mrb[0].mxu0
      %v4742 = vadd.f32 0.0, %v4741
      %v4743 = vpop.f32.mrb[0].mxu0
      %v4744 = vpop.f32.mrb[0].mxu0
      %v4745 = vpop.f32.mrb[0].mxu0
      %4746 = vdwg.mxu0
      %v4747 = vadd.f32 %v4648, %v4742
      %vm4748 = vcmask 257024
      %v4749 = vsel %vm4748, %v4747, 0.0
      %v4750 = vrot.slane %v4749, 4
      %v4751 = vadd.f32 %v4749, %v4750
      %v4752 = vrot.slane %v4751, 2
      %v4753 = vadd.f32 %v4751, %v4752
      %v4754 = vrot.slane %v4753, 1
      %v4755 = vadd.f32 %v4753, %v4754
      %v4756 = vrcp.pop 4.0
      %v4757 = vmul.f32 %v4755, %v4756
      %v4758 = vsub.f32 %v4747, %v4757
      %v4759 = vmul.f32 %v4758, %v4758
      %v4760 = vsel %vm4748, %v4759, 0.0
      %v4761 = vrot.slane %v4760, 4
      %v4762 = vadd.f32 %v4760, %v4761
      %v4763 = vrot.slane %v4762, 2
      %v4764 = vadd.f32 %v4762, %v4763
      %v4765 = vrot.slane %v4764, 1
      %v4766 = vadd.f32 %v4764, %v4765
      %v4767 = vmul.f32 %v4766, %v4756
      %v4768 = vadd.f32 %v4767, 1e-05
      %v4769 = vrsqrt.pop %v4768
      %v4770 = vmul.f32 %v4758, %v4769
      %v4771 = vmul.f32 %v4770, 0.2
      %v4772 = vmax.f32 %v4770, %v4771
      %v4773 = vpack.c.bf16 %v4772, %v4772
      %v4774 = vld [vmem:[%s12] sm:$0xf]
      %v4775 = vld [vmem:[%s12 + $0x4] sm:$0xf]
      %v4776 = vld [vmem:[%s12 + $0x8] sm:$0xf]
      %v4777 = vld [vmem:[%s12 + $0xc] sm:$0xf]
      %v4778 = vld [vmem:[#allocation2] sm:$0x1]
      %v4780 = vlaneseq
      %v4781 = vshrl.u32 %v4780, 7
      %v4782 = vsub.s32 0, %v4781
      %v4783 = vrot.slane %v4778, %v4782
      %v4789 = vunpack.c.l.b16 %v4774
      %v4790 = vunpack.c.l.b16 %v4775
      %v4791 = vunpack.c.l.b16 %v4776
      %v4792 = vunpack.c.l.b16 %v4777
      %v4793 = vpack.c.b16 %v4790, %v4789
      %v4794 = vpack.c.b16 %v4792, %v4791
      %vm4797 = vcmask 261120
      %v4799 = vsel %vm4797, %v4773, 0
      %4801 = vmatprep.subr.bf16.mxu0 0
      %4802 = vmatpush1.bf16.msra.mxu0 %v4793
      %4803 = vmatprep.subr.bf16.mxu0 0
      %4804 = vmatpush1.bf16.msra.mxu0 %v4794
      %4805 = vmatprep.subr.bf16.mxu0 0
      %4806 = vmatpush1.bf16.msra.mxu0 0
      %4807 = vmatprep.subr.bf16.mxu0 0
      %4808 = vmatpush1.bf16.msra.mxu0 0
      %4809 = vmatprep.subr.bf16.mxu0 0
      %4810 = vmatpush1.bf16.msra.mxu0 0
      %4811 = vmatprep.subr.bf16.mxu0 0
      %4812 = vmatpush1.bf16.msra.mxu0 0
      %4813 = vmatprep.subr.bf16.mxu0 0
      %4814 = vmatpush1.bf16.msra.mxu0 0
      %4815 = vmatprep.subr.bf16.mxu0 0
      %4816 = vmatpush1.bf16.msra.mxu0 0
      %4817 = vmatprep.subr.bf16.mxu0 0
      %4818 = vmatpush1.bf16.msra.mxu0 0
      %4819 = vmatprep.subr.bf16.mxu0 0
      %4820 = vmatpush1.bf16.msra.mxu0 0
      %4821 = vmatprep.subr.bf16.mxu0 0
      %4822 = vmatpush1.bf16.msra.mxu0 0
      %4823 = vmatprep.subr.bf16.mxu0 0
      %4824 = vmatpush1.bf16.msra.mxu0 0
      %4825 = vmatprep.subr.bf16.mxu0 0
      %4826 = vmatpush1.bf16.msra.mxu0 0
      %4827 = vmatprep.subr.bf16.mxu0 0
      %4828 = vmatpush1.bf16.msra.mxu0 0
      %4829 = vmatprep.subr.bf16.mxu0 0
      %4830 = vmatpush1.bf16.msra.mxu0 0
      %4831 = vmatprep.subr.bf16.mxu0 0
      %4832 = vmatpush1.bf16.msra.mxu0 0
      %4833 = vmatprep.mubr.bf16.mxu0 0
      %4834 = vmatmul.mubr.bf16.gmra.mrb[0].mxu0 %v4799
      %v4835 = vpop.f32.mrb[0].mxu0
      %v4836 = vadd.f32 %v4783, %v4835
      %v4837 = vpop.f32.mrb[0].mxu0
      %v4838 = vpop.f32.mrb[0].mxu0
      %v4839 = vpop.f32.mrb[0].mxu0
      %4840 = vdwg.mxu0
      %v4841 = vxor.u32 %v4836, 2147483648
      %v4842 = vmul.f32 %v4841, 1.442695
      %v4843 = vpow.pop %v4842
      %v4844 = vadd.f32 %v4843, 1.0
      %v4845 = vrcp.pop %v4844
      %v4846 = vmul.f32 1.0, %v4845
      %vm4847 = vcmask 3072
      %4848 = vst.msk [vmem:[%s467] sm:$0xf] %vm4847, %v4846
      %p4849 = scmp.lt.s32.totalorder %s27, 1
      %s4850 = scalar_select %p4849, %s27, 1
      %s4851 = smul.addr %s4850, 4
      %s4852 = scalar_lea.vmem %s14, %s4851
      // Predicated region
      $region77: #{discriminator_forward.1} parent=75 // pred_check
        %p4853 = pneg %p344
      $region78: #{discriminator_forward.1} parent=75 // pred_check_branch
        %4855 = sbr.rel (%p4853) target = $region80
      $region79: #{discriminator_forward.1} parent=75 // pred_region
        _
      $region80: #{discriminator_forward.1} parent=75 // pred_fallthru
        _
    $region76: #{discriminator_forward.1} parent=5 // pred_fallthru
      _
    %p4856 = scmp.le.s32.totalorder 2, %s22
    // Predicated region
    $region81: #{discriminator_forward.1} parent=5 // pred_check
      %p4857 = pneg %p4856
    $region82: #{discriminator_forward.1} parent=5 // pred_check_branch
      %4859 = sbr.rel (%p4857) target = $region84
    $region83: #{discriminator_forward.1} parent=5 // pred_region
      %s4860 = ssub.s32 %s22, 2
      // Predicated region
      $region85: #{discriminator_forward.1} parent=83 // pred_check
        %p4861 = pneg %p350
      $region86: #{discriminator_forward.1} parent=83 // pred_check_branch
        %4863 = sbr.rel (%p4861) target = $region88
      $region87: #{discriminator_forward.1} parent=83 // pred_region
        %p4864 = scmp.lt.s32.totalorder %s28, 1
        %s4865 = scalar_select %p4864, %s28, 1
        %s4866 = smul.addr %s4865, 4
        %s4867 = scalar_lea.vmem %s14, %s4866
      $region88: #{discriminator_forward.1} parent=83 // pred_fallthru
        _
    $region84: #{discriminator_forward.1} parent=5 // pred_fallthru
      _
  $region6: #{discriminator_forward.1} parent=0 // loop_footer
    %s26 = sadd.s32 1, %s22
  $region7: #{discriminator_forward.1} parent=0 // loop_footer_branch
    %21 = sbr.rel target = $region3
  $region8: #{discriminator_forward.1} parent=0 // loop_exit
    _

</llo_original>
